<compile_context>
chip_gen: v7x
topology: tpu7x:2x2x1
jax: 0.10.0
libtpu: 0.0.40
codegen_flags: <defaults>
</compile_context>

<pallas_src>
import functools

import jax
import jax.numpy as jnp
from jax.experimental import pallas as pl
from jax.experimental.pallas import tpu as pltpu

BN_EPS = 1e-5
LEAKY_SLOPE = 0.2


def _round_up(x, m):
    return ((x + m - 1) // m) * m


# ----------------------------- Pallas kernel --------------------------------

def _disc_block_kernel(x_ref, w_ref, b_ref, g_ref, beta_ref, *rest,
                       r_true, alpha, fuse_linear):
    """Fused Conv(matmul) + BatchNorm(batch stats) + LeakyReLU [+ Linear] block.

    grid = (2, num_r_tiles): axis 0 is the pass (0 = stats, 1 = normalize+write),
    axis 1 tiles the row dimension R = N*Hout*Wout.
    """
    if fuse_linear:
        wl_ref, bl_ref, o_ref, s_scale, s_shift = rest
    else:
        o_ref, s_scale, s_shift = rest

    pass_idx = pl.program_id(0)
    tile_idx = pl.program_id(1)
    tile_r = x_ref.shape[0]

    # Conv as MXU matmul: bf16 operands, f32 accumulate, fused bias.
    y = jnp.dot(x_ref[...], w_ref[...], preferred_element_type=jnp.float32)
    y = y + b_ref[...]

    @pl.when((pass_idx == 0) & (tile_idx == 0))
    def _():
        s_scale[...] = jnp.zeros_like(s_scale)
        s_shift[...] = jnp.zeros_like(s_shift)

    @pl.when(pass_idx == 0)
    def _():
        # Accumulate per-channel sum and sum-of-squares, masking zero-padded rows.
        row = tile_idx * tile_r + jax.lax.broadcasted_iota(jnp.int32, (tile_r, 1), 0)
        valid = row < r_true
        ym = jnp.where(valid, y, 0.0)
        s_scale[...] += jnp.sum(ym, axis=0, keepdims=True)       # sum
        s_shift[...] += jnp.sum(ym * ym, axis=0, keepdims=True)  # sum of squares

    @pl.when((pass_idx == 1) & (tile_idx == 0))
    def _():
        # Finalize: training-mode (biased) BN stats; fold gamma/beta into scale/shift.
        inv_n = 1.0 / float(r_true)
        mean = s_scale[...] * inv_n
        var = s_shift[...] * inv_n - mean * mean
        inv_std = jax.lax.rsqrt(var + BN_EPS)
        scale = g_ref[...] * inv_std
        s_shift[...] = beta_ref[...] - mean * scale
        s_scale[...] = scale

    @pl.when(pass_idx == 1)
    def _():
        a = y * s_scale[...] + s_shift[...]
        a = jnp.where(a >= 0.0, a, alpha * a)                    # LeakyReLU(0.2)
        if fuse_linear:
            # Flatten + Linear(64 -> 1) as a VPU multiply + lane reduction.
            o_ref[...] = jnp.sum(a * wl_ref[...], axis=1, keepdims=True) + bl_ref[...]
        else:
            o_ref[...] = a


# ------------------------------ wrappers -------------------------------------

def _im2col(x_nhwc, k_h, k_w, stride):
    """Channels-last im2col using strided slices only (no transposes)."""
    n, h, w, c_in = x_nhwc.shape
    h_out = (h - k_h) // stride + 1
    w_out = (w - k_w) // stride + 1
    cols = []
    for kh in range(k_h):
        for kw in range(k_w):
            cols.append(x_nhwc[:,
                               kh:kh + (h_out - 1) * stride + 1:stride,
                               kw:kw + (w_out - 1) * stride + 1:stride, :])
    p = jnp.concatenate(cols, axis=-1)                  # (N, Hout, Wout, kH*kW*Cin)
    return p.reshape(n * h_out * w_out, k_h * k_w * c_in), (n, h_out, w_out)


def disc_block(x_nhwc, p, kernel_size, stride, linear_params=None, tile_r=256):
    k_h, k_w = kernel_size
    x_col, (n, h_out, w_out) = _im2col(x_nhwc, k_h, k_w, stride)
    r, k = x_col.shape
    c_out = p["w"].shape[0]

    tile = min(tile_r, _round_up(r, 8))
    num_tiles = (r + tile - 1) // tile
    r_pad = num_tiles * tile
    if r_pad != r:
        x_col = jnp.pad(x_col, ((0, r_pad - r), (0, 0)))

    # bf16 MXU operands; bias / BN params stay f32.
    x_col = x_col.astype(jnp.bfloat16)
    w_mat = p["w"].transpose(2, 3, 1, 0).reshape(k, c_out).astype(jnp.bfloat16)
    b = p["b"].reshape(1, c_out).astype(jnp.float32)
    gamma = p["gamma"].reshape(1, c_out).astype(jnp.float32)
    beta = p["beta"].reshape(1, c_out).astype(jnp.float32)

    fuse_linear = linear_params is not None
    out_cols = 1 if fuse_linear else c_out

    in_specs = [
        pl.BlockSpec((tile, k), lambda pp, t: (t, 0)),       # x_col tile (pipelined)
        pl.BlockSpec((k, c_out), lambda pp, t: (0, 0)),      # weights: resident in VMEM
        pl.BlockSpec((1, c_out), lambda pp, t: (0, 0)),      # bias
        pl.BlockSpec((1, c_out), lambda pp, t: (0, 0)),      # gamma
        pl.BlockSpec((1, c_out), lambda pp, t: (0, 0)),      # beta
    ]
    args = [x_col, w_mat, b, gamma, beta]
    if fuse_linear:
        w_lin, b_lin = linear_params
        in_specs += [
            pl.BlockSpec((1, c_out), lambda pp, t: (0, 0)),  # linear weight (1, 64)
            pl.BlockSpec((1, 1), lambda pp, t: (0, 0)),      # linear bias
        ]
        args += [w_lin.reshape(1, c_out).astype(jnp.float32),
                 b_lin.reshape(1, 1).astype(jnp.float32)]

    kern = functools.partial(_disc_block_kernel, r_true=r, alpha=LEAKY_SLOPE,
                             fuse_linear=fuse_linear)

    out = pl.pallas_call(
        kern,
        out_shape=jax.ShapeDtypeStruct((r_pad, out_cols), jnp.float32),
        grid=(2, num_tiles),
        in_specs=in_specs,
        out_specs=pl.BlockSpec((tile, out_cols), lambda pp, t: (t, 0)),
        scratch_shapes=[pltpu.VMEM((1, c_out), jnp.float32),   # sum  -> scale
                        pltpu.VMEM((1, c_out), jnp.float32)],  # sumsq -> shift
        compiler_params=pltpu.CompilerParams(
            dimension_semantics=("arbitrary", "arbitrary")),
    )(*args)

    out = out[:r]
    if fuse_linear:
        return out                                        # (N, 1) since Hout = Wout = 1
    return out.reshape(n, h_out, w_out, c_out)            # stay channels-last (NHWC)


# ----------------------------- Discriminator ---------------------------------

BLOCK_DEFS = [
    # (in_channels, out_channels, kernel_size, stride)
    (1, 16, (3, 3), 2),
    (16, 32, (5, 5), 2),
    (32, 64, (5, 5), 2),
]


def init_discriminator_params(key):
    blocks = []
    for (cin, cout, (kh, kw), _s) in BLOCK_DEFS:
        key, k_w, k_b = jax.random.split(key, 3)
        fan_in = cin * kh * kw
        bound = 1.0 / float(fan_in) ** 0.5
        blocks.append({
            "w": jax.random.uniform(k_w, (cout, cin, kh, kw), jnp.float32, -bound, bound),
            "b": jax.random.uniform(k_b, (cout,), jnp.float32, -bound, bound),
            "gamma": jnp.ones((cout,), jnp.float32),     # BatchNorm2d default init
            "beta": jnp.zeros((cout,), jnp.float32),
        })
    key, k_lw, k_lb = jax.random.split(key, 3)
    bound = 1.0 / 64.0 ** 0.5
    linear = {
        "w": jax.random.uniform(k_lw, (1, 64), jnp.float32, -bound, bound),
        "b": jax.random.uniform(k_lb, (1,), jnp.float32, -bound, bound),
    }
    return {"blocks": blocks, "linear": linear}


def discriminator_forward(params, images_nchw):
    # External boundary is PyTorch NCHW; internally everything is channels-last (lane axis = C).
    x = jnp.transpose(images_nchw, (0, 2, 3, 1))          # (N, H, W, C)
    n_blocks = len(BLOCK_DEFS)
    for i, (p, (_cin, _cout, ks, stride)) in enumerate(zip(params["blocks"], BLOCK_DEFS)):
        is_last = i == n_blocks - 1
        lin = (params["linear"]["w"], params["linear"]["b"]) if is_last else None
        x = disc_block(x, p, ks, stride, linear_params=lin)
    return x                                              # (N, 1) == Flatten + Linear output


if __name__ == "__main__":
    key = jax.random.PRNGKey(0)
    k_img, k_par = jax.random.split(key)

    batch = 2
    images = jax.random.normal(k_img, (batch, 1, 28, 28), dtype=jnp.float32)
    params = init_discriminator_params(k_par)

    fwd = jax.jit(discriminator_forward)
    out = fwd(params, images)
    out = jax.block_until_ready(out)

    assert out.shape == (batch, 1), out.shape
    assert bool(jnp.all(jnp.isfinite(out)))

    print("KERNEL_OK")
</pallas_src>

<mosaic_0001>
module attributes {stable_mosaic.version = 11 : i64} {
  func.func @_disc_block_kernel(%arg0: i32, %arg1: i32, %arg2: memref<256x9xbf16, #tpu.memory_space<vmem>>, %arg3: memref<9x16xbf16, #tpu.memory_space<vmem>>, %arg4: memref<1x16xf32, #tpu.memory_space<vmem>>, %arg5: memref<1x16xf32, #tpu.memory_space<vmem>>, %arg6: memref<1x16xf32, #tpu.memory_space<vmem>>, %arg7: memref<256x16xf32, #tpu.memory_space<vmem>>, %arg8: memref<1x16xf32, #tpu.memory_space<vmem>>, %arg9: memref<1x16xf32, #tpu.memory_space<vmem>>) attributes {dimension_semantics = [#tpu.dimension_semantics<arbitrary>, #tpu.dimension_semantics<arbitrary>], iteration_bounds = array<i64: 2, 2>, scalar_prefetch = 0 : i64, scratch_operands = 2 : i64, tpu.core_type = #tpu.core_type<tc>, window_params = [{transform_indices = @transform_0, window_bounds = array<i64: 256, 9>}, {pipeline_mode = #tpu.pipeline_mode<synchronous>, transform_indices = @transform_1, window_bounds = array<i64: 9, 16>}, {pipeline_mode = #tpu.pipeline_mode<synchronous>, transform_indices = @transform_2, window_bounds = array<i64: 1, 16>}, {pipeline_mode = #tpu.pipeline_mode<synchronous>, transform_indices = @transform_3, window_bounds = array<i64: 1, 16>}, {pipeline_mode = #tpu.pipeline_mode<synchronous>, transform_indices = @transform_4, window_bounds = array<i64: 1, 16>}, {transform_indices = @transform_5, window_bounds = array<i64: 256, 16>}]} {
    %c0 = arith.constant 0 : index
    %c0_0 = arith.constant 0 : index
    %0 = vector.load %arg2[%c0, %c0_0] : memref<256x9xbf16, #tpu.memory_space<vmem>>, vector<256x9xbf16>
    %c0_1 = arith.constant 0 : index
    %c0_2 = arith.constant 0 : index
    %1 = vector.load %arg3[%c0_1, %c0_2] : memref<9x16xbf16, #tpu.memory_space<vmem>>, vector<9x16xbf16>
    %cst = arith.constant dense<0.000000e+00> : vector<256x16xf32>
    %2 = tpu.matmul %0, %1, %cst {dimension_numbers = #tpu.dot_dimension_numbers<[1], [0], [0], [1], [0, 0, 1, 1], [], []>} : vector<256x9xbf16>, vector<9x16xbf16>, vector<256x16xf32> -> vector<256x16xf32>
    %c0_3 = arith.constant 0 : index
    %c0_4 = arith.constant 0 : index
    %3 = vector.load %arg4[%c0_3, %c0_4] : memref<1x16xf32, #tpu.memory_space<vmem>>, vector<1x16xf32>
    %4 = vector.broadcast %3 : vector<1x16xf32> to vector<256x16xf32>
    %5 = arith.addf %2, %4 : vector<256x16xf32>
    %c0_i32 = arith.constant 0 : i32
    %6 = arith.cmpi eq, %arg0, %c0_i32 : i32
    %c0_i32_5 = arith.constant 0 : i32
    %7 = arith.cmpi eq, %arg1, %c0_i32_5 : i32
    %8 = arith.andi %6, %7 : i1
    %9 = arith.extui %8 : i1 to i32
    %c0_i32_6 = arith.constant 0 : i32
    %10 = arith.cmpi ne, %9, %c0_i32_6 : i32
    scf.if %10 {
      %cst_13 = arith.constant 0.000000e+00 : f32
      %22 = vector.broadcast %cst_13 : f32 to vector<1x16xf32>
      %c0_14 = arith.constant 0 : index
      %c0_15 = arith.constant 0 : index
      %23 = vector.load %arg8[%c0_14, %c0_15] : memref<1x16xf32, #tpu.memory_space<vmem>>, vector<1x16xf32>
      tpu.vector_store %arg8[%c0_14, %c0_15], %22 {strides = array<i32>} : memref<1x16xf32, #tpu.memory_space<vmem>>, vector<1x16xf32>,
      %cst_16 = arith.constant 0.000000e+00 : f32
      %24 = vector.broadcast %cst_16 : f32 to vector<1x16xf32>
      %c0_17 = arith.constant 0 : index
      %c0_18 = arith.constant 0 : index
      %25 = vector.load %arg9[%c0_17, %c0_18] : memref<1x16xf32, #tpu.memory_space<vmem>>, vector<1x16xf32>
      tpu.vector_store %arg9[%c0_17, %c0_18], %24 {strides = array<i32>} : memref<1x16xf32, #tpu.memory_space<vmem>>, vector<1x16xf32>,
    } else {
    }
    %c0_i32_7 = arith.constant 0 : i32
    %11 = arith.cmpi eq, %arg0, %c0_i32_7 : i32
    %12 = arith.extui %11 : i1 to i32
    %c0_i32_8 = arith.constant 0 : i32
    %13 = arith.cmpi ne, %12, %c0_i32_8 : i32
    scf.if %13 {
      %c256_i32 = arith.constant 256 : i32
      %22 = arith.muli %arg1, %c256_i32 : i32
      %23 = tpu.iota {dimensions = array<i32: 0>} : vector<256x1xi32>
      %24 = vector.broadcast %22 : i32 to vector<256x1xi32>
      %25 = arith.addi %24, %23 : vector<256x1xi32>
      %c338_i32 = arith.constant 338 : i32
      %26 = vector.broadcast %c338_i32 : i32 to vector<256x1xi32>
      %27 = arith.cmpi slt, %25, %26 : vector<256x1xi32>
      %cst_13 = arith.constant 0.000000e+00 : f32
      %28 = vector.shape_cast %27 : vector<256x1xi1> to vector<256x1xi1>
      %29 = vector.broadcast %28 : vector<256x1xi1> to vector<256x16xi1>
      %30 = vector.broadcast %cst_13 : f32 to vector<256x16xf32>
      %31 = arith.select %29, %5, %30 : vector<256x16xi1>, vector<256x16xf32>
      %c0_14 = arith.constant 0 : index
      %c0_15 = arith.constant 0 : index
      %32 = vector.load %arg8[%c0_14, %c0_15] : memref<1x16xf32, #tpu.memory_space<vmem>>, vector<1x16xf32>
      %cst_16 = arith.constant dense<0.000000e+00> : vector<16xf32>
      %33 = vector.multi_reduction <add>, %31, %cst_16 [0] : vector<256x16xf32> to vector<16xf32>
      %34 = vector.shape_cast %33 : vector<16xf32> to vector<1x16xf32>
      %35 = arith.addf %32, %34 : vector<1x16xf32>
      %c0_17 = arith.constant 0 : index
      %c0_18 = arith.constant 0 : index
      %36 = vector.load %arg8[%c0_17, %c0_18] : memref<1x16xf32, #tpu.memory_space<vmem>>, vector<1x16xf32>
      tpu.vector_store %arg8[%c0_17, %c0_18], %35 {strides = array<i32>} : memref<1x16xf32, #tpu.memory_space<vmem>>, vector<1x16xf32>,
      %c0_19 = arith.constant 0 : index
      %c0_20 = arith.constant 0 : index
      %37 = vector.load %arg9[%c0_19, %c0_20] : memref<1x16xf32, #tpu.memory_space<vmem>>, vector<1x16xf32>
      %38 = arith.mulf %31, %31 : vector<256x16xf32>
      %cst_21 = arith.constant dense<0.000000e+00> : vector<16xf32>
      %39 = vector.multi_reduction <add>, %38, %cst_21 [0] : vector<256x16xf32> to vector<16xf32>
      %40 = vector.shape_cast %39 : vector<16xf32> to vector<1x16xf32>
      %41 = arith.addf %37, %40 : vector<1x16xf32>
      %c0_22 = arith.constant 0 : index
      %c0_23 = arith.constant 0 : index
      %42 = vector.load %arg9[%c0_22, %c0_23] : memref<1x16xf32, #tpu.memory_space<vmem>>, vector<1x16xf32>
      tpu.vector_store %arg9[%c0_22, %c0_23], %41 {strides = array<i32>} : memref<1x16xf32, #tpu.memory_space<vmem>>, vector<1x16xf32>,
    } else {
    }
    %c1_i32 = arith.constant 1 : i32
    %14 = arith.cmpi eq, %arg0, %c1_i32 : i32
    %c0_i32_9 = arith.constant 0 : i32
    %15 = arith.cmpi eq, %arg1, %c0_i32_9 : i32
    %16 = arith.andi %14, %15 : i1
    %17 = arith.extui %16 : i1 to i32
    %c0_i32_10 = arith.constant 0 : i32
    %18 = arith.cmpi ne, %17, %c0_i32_10 : i32
    scf.if %18 {
      %c0_13 = arith.constant 0 : index
      %c0_14 = arith.constant 0 : index
      %22 = vector.load %arg8[%c0_13, %c0_14] : memref<1x16xf32, #tpu.memory_space<vmem>>, vector<1x16xf32>
      %cst_15 = arith.constant 2.958580e-03 : f32
      %23 = vector.broadcast %cst_15 : f32 to vector<1x16xf32>
      %24 = arith.mulf %22, %23 : vector<1x16xf32>
      %c0_16 = arith.constant 0 : index
      %c0_17 = arith.constant 0 : index
      %25 = vector.load %arg9[%c0_16, %c0_17] : memref<1x16xf32, #tpu.memory_space<vmem>>, vector<1x16xf32>
      %cst_18 = arith.constant 2.958580e-03 : f32
      %26 = vector.broadcast %cst_18 : f32 to vector<1x16xf32>
      %27 = arith.mulf %25, %26 : vector<1x16xf32>
      %28 = arith.mulf %24, %24 : vector<1x16xf32>
      %29 = arith.subf %27, %28 : vector<1x16xf32>
      %cst_19 = arith.constant 9.99999974E-6 : f32
      %30 = vector.broadcast %cst_19 : f32 to vector<1x16xf32>
      %31 = arith.addf %29, %30 : vector<1x16xf32>
      %32 = math.rsqrt %31 : vector<1x16xf32>
      %c0_20 = arith.constant 0 : index
      %c0_21 = arith.constant 0 : index
      %33 = vector.load %arg5[%c0_20, %c0_21] : memref<1x16xf32, #tpu.memory_space<vmem>>, vector<1x16xf32>
      %34 = arith.mulf %33, %32 : vector<1x16xf32>
      %c0_22 = arith.constant 0 : index
      %c0_23 = arith.constant 0 : index
      %35 = vector.load %arg6[%c0_22, %c0_23] : memref<1x16xf32, #tpu.memory_space<vmem>>, vector<1x16xf32>
      %36 = arith.mulf %24, %34 : vector<1x16xf32>
      %37 = arith.subf %35, %36 : vector<1x16xf32>
      %c0_24 = arith.constant 0 : index
      %c0_25 = arith.constant 0 : index
      %38 = vector.load %arg9[%c0_24, %c0_25] : memref<1x16xf32, #tpu.memory_space<vmem>>, vector<1x16xf32>
      tpu.vector_store %arg9[%c0_24, %c0_25], %37 {strides = array<i32>} : memref<1x16xf32, #tpu.memory_space<vmem>>, vector<1x16xf32>,
      %c0_26 = arith.constant 0 : index
      %c0_27 = arith.constant 0 : index
      %39 = vector.load %arg8[%c0_26, %c0_27] : memref<1x16xf32, #tpu.memory_space<vmem>>, vector<1x16xf32>
      tpu.vector_store %arg8[%c0_26, %c0_27], %34 {strides = array<i32>} : memref<1x16xf32, #tpu.memory_space<vmem>>, vector<1x16xf32>,
    } else {
    }
    %c1_i32_11 = arith.constant 1 : i32
    %19 = arith.cmpi eq, %arg0, %c1_i32_11 : i32
    %20 = arith.extui %19 : i1 to i32
    %c0_i32_12 = arith.constant 0 : i32
    %21 = arith.cmpi ne, %20, %c0_i32_12 : i32
    scf.if %21 {
      %c0_13 = arith.constant 0 : index
      %c0_14 = arith.constant 0 : index
      %22 = vector.load %arg8[%c0_13, %c0_14] : memref<1x16xf32, #tpu.memory_space<vmem>>, vector<1x16xf32>
      %23 = vector.broadcast %22 : vector<1x16xf32> to vector<256x16xf32>
      %24 = arith.mulf %5, %23 : vector<256x16xf32>
      %c0_15 = arith.constant 0 : index
      %c0_16 = arith.constant 0 : index
      %25 = vector.load %arg9[%c0_15, %c0_16] : memref<1x16xf32, #tpu.memory_space<vmem>>, vector<1x16xf32>
      %26 = vector.broadcast %25 : vector<1x16xf32> to vector<256x16xf32>
      %27 = arith.addf %24, %26 : vector<256x16xf32>
      %cst_17 = arith.constant 0.000000e+00 : f32
      %28 = vector.broadcast %cst_17 : f32 to vector<256x16xf32>
      %29 = arith.cmpf oge, %27, %28 : vector<256x16xf32>
      %cst_18 = arith.constant 2.000000e-01 : f32
      %30 = vector.broadcast %cst_18 : f32 to vector<256x16xf32>
      %31 = arith.mulf %30, %27 : vector<256x16xf32>
      %32 = arith.select %29, %27, %31 : vector<256x16xi1>, vector<256x16xf32>
      %c0_19 = arith.constant 0 : index
      %c0_20 = arith.constant 0 : index
      %33 = vector.load %arg7[%c0_19, %c0_20] : memref<256x16xf32, #tpu.memory_space<vmem>>, vector<256x16xf32>
      tpu.vector_store %arg7[%c0_19, %c0_20], %32 {strides = array<i32>} : memref<256x16xf32, #tpu.memory_space<vmem>>, vector<256x16xf32>,
    } else {
    }
    return
  }
  func.func @transform_0(%arg0: i32, %arg1: i32) -> (i32, i32) {
    %c0_i32 = arith.constant 0 : i32
    %c0_i32_0 = arith.constant 0 : i32
    return %arg1, %c0_i32 : i32, i32
  }
  func.func @transform_1(%arg0: i32, %arg1: i32) -> (i32, i32) {
    %c0_i32 = arith.constant 0 : i32
    %c0_i32_0 = arith.constant 0 : i32
    %c0_i32_1 = arith.constant 0 : i32
    return %c0_i32, %c0_i32_0 : i32, i32
  }
  func.func @transform_2(%arg0: i32, %arg1: i32) -> (i32, i32) {
    %c0_i32 = arith.constant 0 : i32
    %c0_i32_0 = arith.constant 0 : i32
    %c0_i32_1 = arith.constant 0 : i32
    return %c0_i32, %c0_i32_0 : i32, i32
  }
  func.func @transform_3(%arg0: i32, %arg1: i32) -> (i32, i32) {
    %c0_i32 = arith.constant 0 : i32
    %c0_i32_0 = arith.constant 0 : i32
    %c0_i32_1 = arith.constant 0 : i32
    return %c0_i32, %c0_i32_0 : i32, i32
  }
  func.func @transform_4(%arg0: i32, %arg1: i32) -> (i32, i32) {
    %c0_i32 = arith.constant 0 : i32
    %c0_i32_0 = arith.constant 0 : i32
    %c0_i32_1 = arith.constant 0 : i32
    return %c0_i32, %c0_i32_0 : i32, i32
  }
  func.func @transform_5(%arg0: i32, %arg1: i32) -> (i32, i32) {
    %c0_i32 = arith.constant 0 : i32
    %c0_i32_0 = arith.constant 0 : i32
    return %arg1, %c0_i32 : i32, i32
  }
}

module attributes {stable_mosaic.version = 11 : i64} {
  func.func @_disc_block_kernel(%arg0: i32, %arg1: i32, %arg2: memref<56x400xbf16, #tpu.memory_space<vmem>>, %arg3: memref<400x32xbf16, #tpu.memory_space<vmem>>, %arg4: memref<1x32xf32, #tpu.memory_space<vmem>>, %arg5: memref<1x32xf32, #tpu.memory_space<vmem>>, %arg6: memref<1x32xf32, #tpu.memory_space<vmem>>, %arg7: memref<56x32xf32, #tpu.memory_space<vmem>>, %arg8: memref<1x32xf32, #tpu.memory_space<vmem>>, %arg9: memref<1x32xf32, #tpu.memory_space<vmem>>) attributes {dimension_semantics = [#tpu.dimension_semantics<arbitrary>, #tpu.dimension_semantics<arbitrary>], iteration_bounds = array<i64: 2, 1>, scalar_prefetch = 0 : i64, scratch_operands = 2 : i64, tpu.core_type = #tpu.core_type<tc>, window_params = [{transform_indices = @transform_0, window_bounds = array<i64: 56, 400>}, {pipeline_mode = #tpu.pipeline_mode<synchronous>, transform_indices = @transform_1, window_bounds = array<i64: 400, 32>}, {pipeline_mode = #tpu.pipeline_mode<synchronous>, transform_indices = @transform_2, window_bounds = array<i64: 1, 32>}, {pipeline_mode = #tpu.pipeline_mode<synchronous>, transform_indices = @transform_3, window_bounds = array<i64: 1, 32>}, {pipeline_mode = #tpu.pipeline_mode<synchronous>, transform_indices = @transform_4, window_bounds = array<i64: 1, 32>}, {transform_indices = @transform_5, window_bounds = array<i64: 56, 32>}]} {
    %c0 = arith.constant 0 : index
    %c0_0 = arith.constant 0 : index
    %0 = vector.load %arg2[%c0, %c0_0] : memref<56x400xbf16, #tpu.memory_space<vmem>>, vector<56x400xbf16>
    %c0_1 = arith.constant 0 : index
    %c0_2 = arith.constant 0 : index
    %1 = vector.load %arg3[%c0_1, %c0_2] : memref<400x32xbf16, #tpu.memory_space<vmem>>, vector<400x32xbf16>
    %cst = arith.constant dense<0.000000e+00> : vector<56x32xf32>
    %2 = tpu.matmul %0, %1, %cst {dimension_numbers = #tpu.dot_dimension_numbers<[1], [0], [0], [1], [0, 0, 1, 1], [], []>} : vector<56x400xbf16>, vector<400x32xbf16>, vector<56x32xf32> -> vector<56x32xf32>
    %c0_3 = arith.constant 0 : index
    %c0_4 = arith.constant 0 : index
    %3 = vector.load %arg4[%c0_3, %c0_4] : memref<1x32xf32, #tpu.memory_space<vmem>>, vector<1x32xf32>
    %4 = vector.broadcast %3 : vector<1x32xf32> to vector<56x32xf32>
    %5 = arith.addf %2, %4 : vector<56x32xf32>
    %c0_i32 = arith.constant 0 : i32
    %6 = arith.cmpi eq, %arg0, %c0_i32 : i32
    %c0_i32_5 = arith.constant 0 : i32
    %7 = arith.cmpi eq, %arg1, %c0_i32_5 : i32
    %8 = arith.andi %6, %7 : i1
    %9 = arith.extui %8 : i1 to i32
    %c0_i32_6 = arith.constant 0 : i32
    %10 = arith.cmpi ne, %9, %c0_i32_6 : i32
    scf.if %10 {
      %cst_13 = arith.constant 0.000000e+00 : f32
      %22 = vector.broadcast %cst_13 : f32 to vector<1x32xf32>
      %c0_14 = arith.constant 0 : index
      %c0_15 = arith.constant 0 : index
      %23 = vector.load %arg8[%c0_14, %c0_15] : memref<1x32xf32, #tpu.memory_space<vmem>>, vector<1x32xf32>
      tpu.vector_store %arg8[%c0_14, %c0_15], %22 {strides = array<i32>} : memref<1x32xf32, #tpu.memory_space<vmem>>, vector<1x32xf32>,
      %cst_16 = arith.constant 0.000000e+00 : f32
      %24 = vector.broadcast %cst_16 : f32 to vector<1x32xf32>
      %c0_17 = arith.constant 0 : index
      %c0_18 = arith.constant 0 : index
      %25 = vector.load %arg9[%c0_17, %c0_18] : memref<1x32xf32, #tpu.memory_space<vmem>>, vector<1x32xf32>
      tpu.vector_store %arg9[%c0_17, %c0_18], %24 {strides = array<i32>} : memref<1x32xf32, #tpu.memory_space<vmem>>, vector<1x32xf32>,
    } else {
    }
    %c0_i32_7 = arith.constant 0 : i32
    %11 = arith.cmpi eq, %arg0, %c0_i32_7 : i32
    %12 = arith.extui %11 : i1 to i32
    %c0_i32_8 = arith.constant 0 : i32
    %13 = arith.cmpi ne, %12, %c0_i32_8 : i32
    scf.if %13 {
      %c56_i32 = arith.constant 56 : i32
      %22 = arith.muli %arg1, %c56_i32 : i32
      %23 = tpu.iota {dimensions = array<i32: 0>} : vector<56x1xi32>
      %24 = vector.broadcast %22 : i32 to vector<56x1xi32>
      %25 = arith.addi %24, %23 : vector<56x1xi32>
      %c50_i32 = arith.constant 50 : i32
      %26 = vector.broadcast %c50_i32 : i32 to vector<56x1xi32>
      %27 = arith.cmpi slt, %25, %26 : vector<56x1xi32>
      %cst_13 = arith.constant 0.000000e+00 : f32
      %28 = vector.shape_cast %27 : vector<56x1xi1> to vector<56x1xi1>
      %29 = vector.broadcast %28 : vector<56x1xi1> to vector<56x32xi1>
      %30 = vector.broadcast %cst_13 : f32 to vector<56x32xf32>
      %31 = arith.select %29, %5, %30 : vector<56x32xi1>, vector<56x32xf32>
      %c0_14 = arith.constant 0 : index
      %c0_15 = arith.constant 0 : index
      %32 = vector.load %arg8[%c0_14, %c0_15] : memref<1x32xf32, #tpu.memory_space<vmem>>, vector<1x32xf32>
      %cst_16 = arith.constant dense<0.000000e+00> : vector<32xf32>
      %33 = vector.multi_reduction <add>, %31, %cst_16 [0] : vector<56x32xf32> to vector<32xf32>
      %34 = vector.shape_cast %33 : vector<32xf32> to vector<1x32xf32>
      %35 = arith.addf %32, %34 : vector<1x32xf32>
      %c0_17 = arith.constant 0 : index
      %c0_18 = arith.constant 0 : index
      %36 = vector.load %arg8[%c0_17, %c0_18] : memref<1x32xf32, #tpu.memory_space<vmem>>, vector<1x32xf32>
      tpu.vector_store %arg8[%c0_17, %c0_18], %35 {strides = array<i32>} : memref<1x32xf32, #tpu.memory_space<vmem>>, vector<1x32xf32>,
      %c0_19 = arith.constant 0 : index
      %c0_20 = arith.constant 0 : index
      %37 = vector.load %arg9[%c0_19, %c0_20] : memref<1x32xf32, #tpu.memory_space<vmem>>, vector<1x32xf32>
      %38 = arith.mulf %31, %31 : vector<56x32xf32>
      %cst_21 = arith.constant dense<0.000000e+00> : vector<32xf32>
      %39 = vector.multi_reduction <add>, %38, %cst_21 [0] : vector<56x32xf32> to vector<32xf32>
      %40 = vector.shape_cast %39 : vector<32xf32> to vector<1x32xf32>
      %41 = arith.addf %37, %40 : vector<1x32xf32>
      %c0_22 = arith.constant 0 : index
      %c0_23 = arith.constant 0 : index
      %42 = vector.load %arg9[%c0_22, %c0_23] : memref<1x32xf32, #tpu.memory_space<vmem>>, vector<1x32xf32>
      tpu.vector_store %arg9[%c0_22, %c0_23], %41 {strides = array<i32>} : memref<1x32xf32, #tpu.memory_space<vmem>>, vector<1x32xf32>,
    } else {
    }
    %c1_i32 = arith.constant 1 : i32
    %14 = arith.cmpi eq, %arg0, %c1_i32 : i32
    %c0_i32_9 = arith.constant 0 : i32
    %15 = arith.cmpi eq, %arg1, %c0_i32_9 : i32
    %16 = arith.andi %14, %15 : i1
    %17 = arith.extui %16 : i1 to i32
    %c0_i32_10 = arith.constant 0 : i32
    %18 = arith.cmpi ne, %17, %c0_i32_10 : i32
    scf.if %18 {
      %c0_13 = arith.constant 0 : index
      %c0_14 = arith.constant 0 : index
      %22 = vector.load %arg8[%c0_13, %c0_14] : memref<1x32xf32, #tpu.memory_space<vmem>>, vector<1x32xf32>
      %cst_15 = arith.constant 2.000000e-02 : f32
      %23 = vector.broadcast %cst_15 : f32 to vector<1x32xf32>
      %24 = arith.mulf %22, %23 : vector<1x32xf32>
      %c0_16 = arith.constant 0 : index
      %c0_17 = arith.constant 0 : index
      %25 = vector.load %arg9[%c0_16, %c0_17] : memref<1x32xf32, #tpu.memory_space<vmem>>, vector<1x32xf32>
      %cst_18 = arith.constant 2.000000e-02 : f32
      %26 = vector.broadcast %cst_18 : f32 to vector<1x32xf32>
      %27 = arith.mulf %25, %26 : vector<1x32xf32>
      %28 = arith.mulf %24, %24 : vector<1x32xf32>
      %29 = arith.subf %27, %28 : vector<1x32xf32>
      %cst_19 = arith.constant 9.99999974E-6 : f32
      %30 = vector.broadcast %cst_19 : f32 to vector<1x32xf32>
      %31 = arith.addf %29, %30 : vector<1x32xf32>
      %32 = math.rsqrt %31 : vector<1x32xf32>
      %c0_20 = arith.constant 0 : index
      %c0_21 = arith.constant 0 : index
      %33 = vector.load %arg5[%c0_20, %c0_21] : memref<1x32xf32, #tpu.memory_space<vmem>>, vector<1x32xf32>
      %34 = arith.mulf %33, %32 : vector<1x32xf32>
      %c0_22 = arith.constant 0 : index
      %c0_23 = arith.constant 0 : index
      %35 = vector.load %arg6[%c0_22, %c0_23] : memref<1x32xf32, #tpu.memory_space<vmem>>, vector<1x32xf32>
      %36 = arith.mulf %24, %34 : vector<1x32xf32>
      %37 = arith.subf %35, %36 : vector<1x32xf32>
      %c0_24 = arith.constant 0 : index
      %c0_25 = arith.constant 0 : index
      %38 = vector.load %arg9[%c0_24, %c0_25] : memref<1x32xf32, #tpu.memory_space<vmem>>, vector<1x32xf32>
      tpu.vector_store %arg9[%c0_24, %c0_25], %37 {strides = array<i32>} : memref<1x32xf32, #tpu.memory_space<vmem>>, vector<1x32xf32>,
      %c0_26 = arith.constant 0 : index
      %c0_27 = arith.constant 0 : index
      %39 = vector.load %arg8[%c0_26, %c0_27] : memref<1x32xf32, #tpu.memory_space<vmem>>, vector<1x32xf32>
      tpu.vector_store %arg8[%c0_26, %c0_27], %34 {strides = array<i32>} : memref<1x32xf32, #tpu.memory_space<vmem>>, vector<1x32xf32>,
    } else {
    }
    %c1_i32_11 = arith.constant 1 : i32
    %19 = arith.cmpi eq, %arg0, %c1_i32_11 : i32
    %20 = arith.extui %19 : i1 to i32
    %c0_i32_12 = arith.constant 0 : i32
    %21 = arith.cmpi ne, %20, %c0_i32_12 : i32
    scf.if %21 {
      %c0_13 = arith.constant 0 : index
      %c0_14 = arith.constant 0 : index
      %22 = vector.load %arg8[%c0_13, %c0_14] : memref<1x32xf32, #tpu.memory_space<vmem>>, vector<1x32xf32>
      %23 = vector.broadcast %22 : vector<1x32xf32> to vector<56x32xf32>
      %24 = arith.mulf %5, %23 : vector<56x32xf32>
      %c0_15 = arith.constant 0 : index
      %c0_16 = arith.constant 0 : index
      %25 = vector.load %arg9[%c0_15, %c0_16] : memref<1x32xf32, #tpu.memory_space<vmem>>, vector<1x32xf32>
      %26 = vector.broadcast %25 : vector<1x32xf32> to vector<56x32xf32>
      %27 = arith.addf %24, %26 : vector<56x32xf32>
      %cst_17 = arith.constant 0.000000e+00 : f32
      %28 = vector.broadcast %cst_17 : f32 to vector<56x32xf32>
      %29 = arith.cmpf oge, %27, %28 : vector<56x32xf32>
      %cst_18 = arith.constant 2.000000e-01 : f32
      %30 = vector.broadcast %cst_18 : f32 to vector<56x32xf32>
      %31 = arith.mulf %30, %27 : vector<56x32xf32>
      %32 = arith.select %29, %27, %31 : vector<56x32xi1>, vector<56x32xf32>
      %c0_19 = arith.constant 0 : index
      %c0_20 = arith.constant 0 : index
      %33 = vector.load %arg7[%c0_19, %c0_20] : memref<56x32xf32, #tpu.memory_space<vmem>>, vector<56x32xf32>
      tpu.vector_store %arg7[%c0_19, %c0_20], %32 {strides = array<i32>} : memref<56x32xf32, #tpu.memory_space<vmem>>, vector<56x32xf32>,
    } else {
    }
    return
  }
  func.func @transform_0(%arg0: i32, %arg1: i32) -> (i32, i32) {
    %c0_i32 = arith.constant 0 : i32
    %c0_i32_0 = arith.constant 0 : i32
    return %arg1, %c0_i32 : i32, i32
  }
  func.func @transform_1(%arg0: i32, %arg1: i32) -> (i32, i32) {
    %c0_i32 = arith.constant 0 : i32
    %c0_i32_0 = arith.constant 0 : i32
    %c0_i32_1 = arith.constant 0 : i32
    return %c0_i32, %c0_i32_0 : i32, i32
  }
  func.func @transform_2(%arg0: i32, %arg1: i32) -> (i32, i32) {
    %c0_i32 = arith.constant 0 : i32
    %c0_i32_0 = arith.constant 0 : i32
    %c0_i32_1 = arith.constant 0 : i32
    return %c0_i32, %c0_i32_0 : i32, i32
  }
  func.func @transform_3(%arg0: i32, %arg1: i32) -> (i32, i32) {
    %c0_i32 = arith.constant 0 : i32
    %c0_i32_0 = arith.constant 0 : i32
    %c0_i32_1 = arith.constant 0 : i32
    return %c0_i32, %c0_i32_0 : i32, i32
  }
  func.func @transform_4(%arg0: i32, %arg1: i32) -> (i32, i32) {
    %c0_i32 = arith.constant 0 : i32
    %c0_i32_0 = arith.constant 0 : i32
    %c0_i32_1 = arith.constant 0 : i32
    return %c0_i32, %c0_i32_0 : i32, i32
  }
  func.func @transform_5(%arg0: i32, %arg1: i32) -> (i32, i32) {
    %c0_i32 = arith.constant 0 : i32
    %c0_i32_0 = arith.constant 0 : i32
    return %arg1, %c0_i32 : i32, i32
  }
}

module attributes {stable_mosaic.version = 11 : i64} {
  func.func @_disc_block_kernel(%arg0: i32, %arg1: i32, %arg2: memref<8x800xbf16, #tpu.memory_space<vmem>>, %arg3: memref<800x64xbf16, #tpu.memory_space<vmem>>, %arg4: memref<1x64xf32, #tpu.memory_space<vmem>>, %arg5: memref<1x64xf32, #tpu.memory_space<vmem>>, %arg6: memref<1x64xf32, #tpu.memory_space<vmem>>, %arg7: memref<1x64xf32, #tpu.memory_space<vmem>>, %arg8: memref<1x1xf32, #tpu.memory_space<vmem>>, %arg9: memref<8x1xf32, #tpu.memory_space<vmem>>, %arg10: memref<1x64xf32, #tpu.memory_space<vmem>>, %arg11: memref<1x64xf32, #tpu.memory_space<vmem>>) attributes {dimension_semantics = [#tpu.dimension_semantics<arbitrary>, #tpu.dimension_semantics<arbitrary>], iteration_bounds = array<i64: 2, 1>, scalar_prefetch = 0 : i64, scratch_operands = 2 : i64, tpu.core_type = #tpu.core_type<tc>, window_params = [{transform_indices = @transform_0, window_bounds = array<i64: 8, 800>}, {pipeline_mode = #tpu.pipeline_mode<synchronous>, transform_indices = @transform_1, window_bounds = array<i64: 800, 64>}, {pipeline_mode = #tpu.pipeline_mode<synchronous>, transform_indices = @transform_2, window_bounds = array<i64: 1, 64>}, {pipeline_mode = #tpu.pipeline_mode<synchronous>, transform_indices = @transform_3, window_bounds = array<i64: 1, 64>}, {pipeline_mode = #tpu.pipeline_mode<synchronous>, transform_indices = @transform_4, window_bounds = array<i64: 1, 64>}, {pipeline_mode = #tpu.pipeline_mode<synchronous>, transform_indices = @transform_5, window_bounds = array<i64: 1, 64>}, {pipeline_mode = #tpu.pipeline_mode<synchronous>, transform_indices = @transform_6, window_bounds = array<i64: 1, 1>}, {transform_indices = @transform_7, window_bounds = array<i64: 8, 1>}]} {
    %c0 = arith.constant 0 : index
    %c0_0 = arith.constant 0 : index
    %0 = vector.load %arg2[%c0, %c0_0] : memref<8x800xbf16, #tpu.memory_space<vmem>>, vector<8x800xbf16>
    %c0_1 = arith.constant 0 : index
    %c0_2 = arith.constant 0 : index
    %1 = vector.load %arg3[%c0_1, %c0_2] : memref<800x64xbf16, #tpu.memory_space<vmem>>, vector<800x64xbf16>
    %cst = arith.constant dense<0.000000e+00> : vector<8x64xf32>
    %2 = tpu.matmul %0, %1, %cst {dimension_numbers = #tpu.dot_dimension_numbers<[1], [0], [0], [1], [0, 0, 1, 1], [], []>} : vector<8x800xbf16>, vector<800x64xbf16>, vector<8x64xf32> -> vector<8x64xf32>
    %c0_3 = arith.constant 0 : index
    %c0_4 = arith.constant 0 : index
    %3 = vector.load %arg4[%c0_3, %c0_4] : memref<1x64xf32, #tpu.memory_space<vmem>>, vector<1x64xf32>
    %4 = vector.broadcast %3 : vector<1x64xf32> to vector<8x64xf32>
    %5 = arith.addf %2, %4 : vector<8x64xf32>
    %c0_i32 = arith.constant 0 : i32
    %6 = arith.cmpi eq, %arg0, %c0_i32 : i32
    %c0_i32_5 = arith.constant 0 : i32
    %7 = arith.cmpi eq, %arg1, %c0_i32_5 : i32
    %8 = arith.andi %6, %7 : i1
    %9 = arith.extui %8 : i1 to i32
    %c0_i32_6 = arith.constant 0 : i32
    %10 = arith.cmpi ne, %9, %c0_i32_6 : i32
    scf.if %10 {
      %cst_13 = arith.constant 0.000000e+00 : f32
      %22 = vector.broadcast %cst_13 : f32 to vector<1x64xf32>
      %c0_14 = arith.constant 0 : index
      %c0_15 = arith.constant 0 : index
      %23 = vector.load %arg10[%c0_14, %c0_15] : memref<1x64xf32, #tpu.memory_space<vmem>>, vector<1x64xf32>
      tpu.vector_store %arg10[%c0_14, %c0_15], %22 {strides = array<i32>} : memref<1x64xf32, #tpu.memory_space<vmem>>, vector<1x64xf32>,
      %cst_16 = arith.constant 0.000000e+00 : f32
      %24 = vector.broadcast %cst_16 : f32 to vector<1x64xf32>
      %c0_17 = arith.constant 0 : index
      %c0_18 = arith.constant 0 : index
      %25 = vector.load %arg11[%c0_17, %c0_18] : memref<1x64xf32, #tpu.memory_space<vmem>>, vector<1x64xf32>
      tpu.vector_store %arg11[%c0_17, %c0_18], %24 {strides = array<i32>} : memref<1x64xf32, #tpu.memory_space<vmem>>, vector<1x64xf32>,
    } else {
    }
    %c0_i32_7 = arith.constant 0 : i32
    %11 = arith.cmpi eq, %arg0, %c0_i32_7 : i32
    %12 = arith.extui %11 : i1 to i32
    %c0_i32_8 = arith.constant 0 : i32
    %13 = arith.cmpi ne, %12, %c0_i32_8 : i32
    scf.if %13 {
      %c8_i32 = arith.constant 8 : i32
      %22 = arith.muli %arg1, %c8_i32 : i32
      %23 = tpu.iota {dimensions = array<i32: 0>} : vector<8x1xi32>
      %24 = vector.broadcast %22 : i32 to vector<8x1xi32>
      %25 = arith.addi %24, %23 : vector<8x1xi32>
      %c2_i32 = arith.constant 2 : i32
      %26 = vector.broadcast %c2_i32 : i32 to vector<8x1xi32>
      %27 = arith.cmpi slt, %25, %26 : vector<8x1xi32>
      %cst_13 = arith.constant 0.000000e+00 : f32
      %28 = vector.shape_cast %27 : vector<8x1xi1> to vector<8x1xi1>
      %29 = vector.broadcast %28 : vector<8x1xi1> to vector<8x64xi1>
      %30 = vector.broadcast %cst_13 : f32 to vector<8x64xf32>
      %31 = arith.select %29, %5, %30 : vector<8x64xi1>, vector<8x64xf32>
      %c0_14 = arith.constant 0 : index
      %c0_15 = arith.constant 0 : index
      %32 = vector.load %arg10[%c0_14, %c0_15] : memref<1x64xf32, #tpu.memory_space<vmem>>, vector<1x64xf32>
      %cst_16 = arith.constant dense<0.000000e+00> : vector<64xf32>
      %33 = vector.multi_reduction <add>, %31, %cst_16 [0] : vector<8x64xf32> to vector<64xf32>
      %34 = vector.shape_cast %33 : vector<64xf32> to vector<1x64xf32>
      %35 = arith.addf %32, %34 : vector<1x64xf32>
      %c0_17 = arith.constant 0 : index
      %c0_18 = arith.constant 0 : index
      %36 = vector.load %arg10[%c0_17, %c0_18] : memref<1x64xf32, #tpu.memory_space<vmem>>, vector<1x64xf32>
      tpu.vector_store %arg10[%c0_17, %c0_18], %35 {strides = array<i32>} : memref<1x64xf32, #tpu.memory_space<vmem>>, vector<1x64xf32>,
      %c0_19 = arith.constant 0 : index
      %c0_20 = arith.constant 0 : index
      %37 = vector.load %arg11[%c0_19, %c0_20] : memref<1x64xf32, #tpu.memory_space<vmem>>, vector<1x64xf32>
      %38 = arith.mulf %31, %31 : vector<8x64xf32>
      %cst_21 = arith.constant dense<0.000000e+00> : vector<64xf32>
      %39 = vector.multi_reduction <add>, %38, %cst_21 [0] : vector<8x64xf32> to vector<64xf32>
      %40 = vector.shape_cast %39 : vector<64xf32> to vector<1x64xf32>
      %41 = arith.addf %37, %40 : vector<1x64xf32>
      %c0_22 = arith.constant 0 : index
      %c0_23 = arith.constant 0 : index
      %42 = vector.load %arg11[%c0_22, %c0_23] : memref<1x64xf32, #tpu.memory_space<vmem>>, vector<1x64xf32>
      tpu.vector_store %arg11[%c0_22, %c0_23], %41 {strides = array<i32>} : memref<1x64xf32, #tpu.memory_space<vmem>>, vector<1x64xf32>,
    } else {
    }
    %c1_i32 = arith.constant 1 : i32
    %14 = arith.cmpi eq, %arg0, %c1_i32 : i32
    %c0_i32_9 = arith.constant 0 : i32
    %15 = arith.cmpi eq, %arg1, %c0_i32_9 : i32
    %16 = arith.andi %14, %15 : i1
    %17 = arith.extui %16 : i1 to i32
    %c0_i32_10 = arith.constant 0 : i32
    %18 = arith.cmpi ne, %17, %c0_i32_10 : i32
    scf.if %18 {
      %c0_13 = arith.constant 0 : index
      %c0_14 = arith.constant 0 : index
      %22 = vector.load %arg10[%c0_13, %c0_14] : memref<1x64xf32, #tpu.memory_space<vmem>>, vector<1x64xf32>
      %cst_15 = arith.constant 5.000000e-01 : f32
      %23 = vector.broadcast %cst_15 : f32 to vector<1x64xf32>
      %24 = arith.mulf %22, %23 : vector<1x64xf32>
      %c0_16 = arith.constant 0 : index
      %c0_17 = arith.constant 0 : index
      %25 = vector.load %arg11[%c0_16, %c0_17] : memref<1x64xf32, #tpu.memory_space<vmem>>, vector<1x64xf32>
      %cst_18 = arith.constant 5.000000e-01 : f32
      %26 = vector.broadcast %cst_18 : f32 to vector<1x64xf32>
      %27 = arith.mulf %25, %26 : vector<1x64xf32>
      %28 = arith.mulf %24, %24 : vector<1x64xf32>
      %29 = arith.subf %27, %28 : vector<1x64xf32>
      %cst_19 = arith.constant 9.99999974E-6 : f32
      %30 = vector.broadcast %cst_19 : f32 to vector<1x64xf32>
      %31 = arith.addf %29, %30 : vector<1x64xf32>
      %32 = math.rsqrt %31 : vector<1x64xf32>
      %c0_20 = arith.constant 0 : index
      %c0_21 = arith.constant 0 : index
      %33 = vector.load %arg5[%c0_20, %c0_21] : memref<1x64xf32, #tpu.memory_space<vmem>>, vector<1x64xf32>
      %34 = arith.mulf %33, %32 : vector<1x64xf32>
      %c0_22 = arith.constant 0 : index
      %c0_23 = arith.constant 0 : index
      %35 = vector.load %arg6[%c0_22, %c0_23] : memref<1x64xf32, #tpu.memory_space<vmem>>, vector<1x64xf32>
      %36 = arith.mulf %24, %34 : vector<1x64xf32>
      %37 = arith.subf %35, %36 : vector<1x64xf32>
      %c0_24 = arith.constant 0 : index
      %c0_25 = arith.constant 0 : index
      %38 = vector.load %arg11[%c0_24, %c0_25] : memref<1x64xf32, #tpu.memory_space<vmem>>, vector<1x64xf32>
      tpu.vector_store %arg11[%c0_24, %c0_25], %37 {strides = array<i32>} : memref<1x64xf32, #tpu.memory_space<vmem>>, vector<1x64xf32>,
      %c0_26 = arith.constant 0 : index
      %c0_27 = arith.constant 0 : index
      %39 = vector.load %arg10[%c0_26, %c0_27] : memref<1x64xf32, #tpu.memory_space<vmem>>, vector<1x64xf32>
      tpu.vector_store %arg10[%c0_26, %c0_27], %34 {strides = array<i32>} : memref<1x64xf32, #tpu.memory_space<vmem>>, vector<1x64xf32>,
    } else {
    }
    %c1_i32_11 = arith.constant 1 : i32
    %19 = arith.cmpi eq, %arg0, %c1_i32_11 : i32
    %20 = arith.extui %19 : i1 to i32
    %c0_i32_12 = arith.constant 0 : i32
    %21 = arith.cmpi ne, %20, %c0_i32_12 : i32
    scf.if %21 {
      %c0_13 = arith.constant 0 : index
      %c0_14 = arith.constant 0 : index
      %22 = vector.load %arg10[%c0_13, %c0_14] : memref<1x64xf32, #tpu.memory_space<vmem>>, vector<1x64xf32>
      %23 = vector.broadcast %22 : vector<1x64xf32> to vector<8x64xf32>
      %24 = arith.mulf %5, %23 : vector<8x64xf32>
      %c0_15 = arith.constant 0 : index
      %c0_16 = arith.constant 0 : index
      %25 = vector.load %arg11[%c0_15, %c0_16] : memref<1x64xf32, #tpu.memory_space<vmem>>, vector<1x64xf32>
      %26 = vector.broadcast %25 : vector<1x64xf32> to vector<8x64xf32>
      %27 = arith.addf %24, %26 : vector<8x64xf32>
      %cst_17 = arith.constant 0.000000e+00 : f32
      %28 = vector.broadcast %cst_17 : f32 to vector<8x64xf32>
      %29 = arith.cmpf oge, %27, %28 : vector<8x64xf32>
      %cst_18 = arith.constant 2.000000e-01 : f32
      %30 = vector.broadcast %cst_18 : f32 to vector<8x64xf32>
      %31 = arith.mulf %30, %27 : vector<8x64xf32>
      %32 = arith.select %29, %27, %31 : vector<8x64xi1>, vector<8x64xf32>
      %c0_19 = arith.constant 0 : index
      %c0_20 = arith.constant 0 : index
      %33 = vector.load %arg7[%c0_19, %c0_20] : memref<1x64xf32, #tpu.memory_space<vmem>>, vector<1x64xf32>
      %34 = vector.broadcast %33 : vector<1x64xf32> to vector<8x64xf32>
      %35 = arith.mulf %32, %34 : vector<8x64xf32>
      %cst_21 = arith.constant dense<0.000000e+00> : vector<8xf32>
      %36 = vector.multi_reduction <add>, %35, %cst_21 [1] : vector<8x64xf32> to vector<8xf32>
      %37 = vector.shape_cast %36 : vector<8xf32> to vector<8x1xf32>
      %c0_22 = arith.constant 0 : index
      %c0_23 = arith.constant 0 : index
      %38 = vector.load %arg8[%c0_22, %c0_23] : memref<1x1xf32, #tpu.memory_space<vmem>>, vector<1x1xf32>
      %39 = vector.broadcast %38 : vector<1x1xf32> to vector<8x1xf32>
      %40 = arith.addf %37, %39 : vector<8x1xf32>
      %c0_24 = arith.constant 0 : index
      %c0_25 = arith.constant 0 : index
      %41 = vector.load %arg9[%c0_24, %c0_25] : memref<8x1xf32, #tpu.memory_space<vmem>>, vector<8x1xf32>
      tpu.vector_store %arg9[%c0_24, %c0_25], %40 {strides = array<i32>} : memref<8x1xf32, #tpu.memory_space<vmem>>, vector<8x1xf32>,
    } else {
    }
    return
  }
  func.func @transform_0(%arg0: i32, %arg1: i32) -> (i32, i32) {
    %c0_i32 = arith.constant 0 : i32
    %c0_i32_0 = arith.constant 0 : i32
    return %arg1, %c0_i32 : i32, i32
  }
  func.func @transform_1(%arg0: i32, %arg1: i32) -> (i32, i32) {
    %c0_i32 = arith.constant 0 : i32
    %c0_i32_0 = arith.constant 0 : i32
    %c0_i32_1 = arith.constant 0 : i32
    return %c0_i32, %c0_i32_0 : i32, i32
  }
  func.func @transform_2(%arg0: i32, %arg1: i32) -> (i32, i32) {
    %c0_i32 = arith.constant 0 : i32
    %c0_i32_0 = arith.constant 0 : i32
    %c0_i32_1 = arith.constant 0 : i32
    return %c0_i32, %c0_i32_0 : i32, i32
  }
  func.func @transform_3(%arg0: i32, %arg1: i32) -> (i32, i32) {
    %c0_i32 = arith.constant 0 : i32
    %c0_i32_0 = arith.constant 0 : i32
    %c0_i32_1 = arith.constant 0 : i32
    return %c0_i32, %c0_i32_0 : i32, i32
  }
  func.func @transform_4(%arg0: i32, %arg1: i32) -> (i32, i32) {
    %c0_i32 = arith.constant 0 : i32
    %c0_i32_0 = arith.constant 0 : i32
    %c0_i32_1 = arith.constant 0 : i32
    return %c0_i32, %c0_i32_0 : i32, i32
  }
  func.func @transform_5(%arg0: i32, %arg1: i32) -> (i32, i32) {
    %c0_i32 = arith.constant 0 : i32
    %c0_i32_0 = arith.constant 0 : i32
    %c0_i32_1 = arith.constant 0 : i32
    return %c0_i32, %c0_i32_0 : i32, i32
  }
  func.func @transform_6(%arg0: i32, %arg1: i32) -> (i32, i32) {
    %c0_i32 = arith.constant 0 : i32
    %c0_i32_0 = arith.constant 0 : i32
    %c0_i32_1 = arith.constant 0 : i32
    return %c0_i32, %c0_i32_0 : i32, i32
  }
  func.func @transform_7(%arg0: i32, %arg1: i32) -> (i32, i32) {
    %c0_i32 = arith.constant 0 : i32
    %c0_i32_0 = arith.constant 0 : i32
    return %arg1, %c0_i32 : i32, i32
  }
}

</mosaic_0001>

<llo_original>
// kernel: discriminator_forward.3
$region0: #{discriminator_forward.3}
  #allocation0 [shape = 'u32[]', space=smem, size = 0x4, offset = 0x4, fixed_abs, tag = 'smem constant byte address 0x4 - core index']
  #allocation1 [shape = 'u32[144,128]{1,0:T(1,128)}', space=vmem, size = 0x12000, scoped, tag = 'internal scratch']
  #allocation2 [shape = 'f32[1,16]{1,0:T(1,128)}', space=vmem, size = 0x200, scoped, tag = 'scratch operand']
  #allocation3 [shape = 'f32[1,16]{1,0:T(1,128)}', space=vmem, size = 0x200, scoped, tag = 'scratch operand']
  %s0 = inlined_call_operand.vmem [shape: bf16[512,9], index: 0, kind: input, shape index: {}]
  %s1 = inlined_call_operand.vmem [shape: bf16[9,16], index: 1, kind: input, shape index: {}]
  %s2 = inlined_call_operand.hbm [shape: f32[1,16], index: 2, kind: input, shape index: {}]
  %s3 = inlined_call_operand.hbm [shape: f32[1,16], index: 3, kind: input, shape index: {}]
  %s4 = inlined_call_operand.hbm [shape: f32[1,16], index: 4, kind: input, shape index: {}]
  %s5 = inlined_call_operand.vmem [shape: f32[512,16], index: 5, kind: output, shape index: {}]
  %s6 = sld [smem:[#allocation0]]
  $region81: #{discriminator_forward.3} parent=0
    _
  %s8 = ssub.s32 1, %s6
  %s9 = scalar_select 0, %s8, %s6
  $region1: #{discriminator_forward.3} parent=0
    #allocation4 [shape = 'u8[512]{0}', space=vmem, size = 0x400, scoped, tag = 'input window, operand 2, single buffered']
    #allocation5 [shape = 's32[2]{0}', space=sflag, size = 0x8, scoped, tag = 'scoped memory for discriminator_forward.3']
    #allocation6 [shape = 'u8[512]{0}', space=vmem, size = 0x400, scoped, tag = 'input window, operand 3, single buffered']
    #allocation7 [shape = 's32[1]{0}', space=sflag, size = 0x4, scoped, tag = 'scoped memory for discriminator_forward.3']
    #allocation8 [shape = 'u8[512]{0}', space=vmem, size = 0x400, scoped, tag = 'input window, operand 4, single buffered']
    %10 = vsyncpa [#allocation5], 0
    %11 = vsyncpa [#allocation7], 0
    loop: start=0, step=1, limit=6
    $region2: #{discriminator_forward.3} parent=1 // loop_pre_header
      _
    $region3: #{discriminator_forward.3} parent=1 // loop_header
      %s13 = sphi 0, %s17
      %p14 = scmp.ge.s32.totalorder %s13, 6
      %s20 = sphi 0, %s32
      %s21 = sphi 0, %s28
      %s22 = sphi 0, %s20
      %s23 = sphi 0, %s21
      %s24 = sphi 0, %s22
      %s25 = sphi 0, %s23
      %s35 = sphi 0, %s37
      %s38 = sphi 0, %s35
      %s39 = sphi 0, %s38
      %s55 = sphi 0, %s39
      %s59 = sphi 0, %s59
      %s61 = sphi 0, %s59
      %s62 = sphi 0, %s61
      %s76 = sphi 0, %s62
      %s80 = sphi 0, %s80
      %s82 = sphi 0, %s80
      %s83 = sphi 0, %s82
      %s97 = sphi 0, %s83
      %s101 = sphi 0, %s101
      %s103 = sphi 0, %s101
      %s104 = sphi 0, %s103
      %s118 = sphi 0, %s104
      %s122 = sphi 0, %s122
      %s124 = sphi 0, %s122
      %s125 = sphi 0, %s124
      %s139 = sphi 0, %s125
      %s145 = sphi 0, %s147
      %s148 = sphi 0, %s145
      %s149 = sphi 0, %s148
      %s165 = sphi 0, %s149
    $region4: #{discriminator_forward.3} parent=1 // loop_header_branch
      %16 = sbr.rel (%p14) target = $region8
    $region5: #{discriminator_forward.3} parent=1 // loop_body
      %s18 = ssub.s32 %s13, 1
      %s19 = ssub.s32 %s13, 2
      %s26 = sadd.s32 1, %s21
      %p27 = scmp.ge.s32.totalorder %s26, 2
      %s28 = scalar_select %p27, 0, %s26
      %s29 = sadd.s32 1, %s20
      %s30 = scalar_select %p27, %s29, %s20
      %p31 = scmp.ge.s32.totalorder %s30, 2
      %s32 = scalar_select %p31, 0, %s30
      %s33 = ssub.s32 %s21, %s28
      %p34 = scmp.eq.s32.totalorder %s33, 0
      %s36 = sadd.s32 %s35, 1
      %s37 = scalar_select %p34, %s35, %s36
      %p40 = pneg %p34
      %p41 = scmp.eq.s32.totalorder %s13, 3
      %p42 = por %p40, %p41
      %p43 = scmp.ne.s32.totalorder %s35, %s38
      %p44 = scmp.eq.s32.totalorder %s13, 0
      %p45 = por %p43, %p44
      %p46 = scmp.ne.s32.totalorder %s35, %s38
      %p47 = scmp.eq.s32.totalorder %s18, 3
      %p48 = por %p46, %p47
      %p49 = scmp.ne.s32.totalorder %s38, %s39
      %p50 = scmp.eq.s32.totalorder %s18, 0
      %p51 = por %p49, %p50
      %p52 = scmp.ne.s32.totalorder %s38, %s39
      %p53 = scmp.eq.s32.totalorder %s19, 3
      %p54 = por %p52, %p53
      %p56 = scmp.ne.s32.totalorder %s39, %s55
      %p57 = scmp.eq.s32.totalorder %s19, 0
      %p58 = por %p56, %p57
      %s60 = sadd.s32 %s59, 1
      %p63 = scmp.eq.s32.totalorder %s13, 3
      %p64 = scmp.ne.s32.totalorder %s59, %s61
      %p65 = scmp.eq.s32.totalorder %s13, 0
      %p66 = por %p64, %p65
      %p67 = scmp.ne.s32.totalorder %s59, %s61
      %p68 = scmp.eq.s32.totalorder %s18, 3
      %p69 = por %p67, %p68
      %p70 = scmp.ne.s32.totalorder %s61, %s62
      %p71 = scmp.eq.s32.totalorder %s18, 0
      %p72 = por %p70, %p71
      %p73 = scmp.ne.s32.totalorder %s61, %s62
      %p74 = scmp.eq.s32.totalorder %s19, 3
      %p75 = por %p73, %p74
      %p77 = scmp.ne.s32.totalorder %s62, %s76
      %p78 = scmp.eq.s32.totalorder %s19, 0
      %p79 = por %p77, %p78
      %s81 = sadd.s32 %s80, 1
      %p84 = scmp.eq.s32.totalorder %s13, 3
      %p85 = scmp.ne.s32.totalorder %s80, %s82
      %p86 = scmp.eq.s32.totalorder %s13, 0
      %p87 = por %p85, %p86
      %p88 = scmp.ne.s32.totalorder %s80, %s82
      %p89 = scmp.eq.s32.totalorder %s18, 3
      %p90 = por %p88, %p89
      %p91 = scmp.ne.s32.totalorder %s82, %s83
      %p92 = scmp.eq.s32.totalorder %s18, 0
      %p93 = por %p91, %p92
      %p94 = scmp.ne.s32.totalorder %s82, %s83
      %p95 = scmp.eq.s32.totalorder %s19, 3
      %p96 = por %p94, %p95
      %p98 = scmp.ne.s32.totalorder %s83, %s97
      %p99 = scmp.eq.s32.totalorder %s19, 0
      %p100 = por %p98, %p99
      %s102 = sadd.s32 %s101, 1
      %p105 = scmp.eq.s32.totalorder %s13, 3
      %p106 = scmp.ne.s32.totalorder %s101, %s103
      %p107 = scmp.eq.s32.totalorder %s13, 0
      %p108 = por %p106, %p107
      %p109 = scmp.ne.s32.totalorder %s101, %s103
      %p110 = scmp.eq.s32.totalorder %s18, 3
      %p111 = por %p109, %p110
      %p112 = scmp.ne.s32.totalorder %s103, %s104
      %p113 = scmp.eq.s32.totalorder %s18, 0
      %p114 = por %p112, %p113
      %p115 = scmp.ne.s32.totalorder %s103, %s104
      %p116 = scmp.eq.s32.totalorder %s19, 3
      %p117 = por %p115, %p116
      %p119 = scmp.ne.s32.totalorder %s104, %s118
      %p120 = scmp.eq.s32.totalorder %s19, 0
      %p121 = por %p119, %p120
      %s123 = sadd.s32 %s122, 1
      %p126 = scmp.eq.s32.totalorder %s13, 3
      %p127 = scmp.ne.s32.totalorder %s122, %s124
      %p128 = scmp.eq.s32.totalorder %s13, 0
      %p129 = por %p127, %p128
      %p130 = scmp.ne.s32.totalorder %s122, %s124
      %p131 = scmp.eq.s32.totalorder %s18, 3
      %p132 = por %p130, %p131
      %p133 = scmp.ne.s32.totalorder %s124, %s125
      %p134 = scmp.eq.s32.totalorder %s18, 0
      %p135 = por %p133, %p134
      %p136 = scmp.ne.s32.totalorder %s124, %s125
      %p137 = scmp.eq.s32.totalorder %s19, 3
      %p138 = por %p136, %p137
      %p140 = scmp.ne.s32.totalorder %s125, %s139
      %p141 = scmp.eq.s32.totalorder %s19, 0
      %p142 = por %p140, %p141
      %s143 = ssub.s32 %s21, %s28
      %p144 = scmp.eq.s32.totalorder %s143, 0
      %s146 = sadd.s32 %s145, 1
      %s147 = scalar_select %p144, %s145, %s146
      %p150 = pneg %p144
      %p151 = scmp.eq.s32.totalorder %s13, 3
      %p152 = por %p150, %p151
      %p153 = scmp.ne.s32.totalorder %s145, %s148
      %p154 = scmp.eq.s32.totalorder %s13, 0
      %p155 = por %p153, %p154
      %p156 = scmp.ne.s32.totalorder %s145, %s148
      %p157 = scmp.eq.s32.totalorder %s18, 3
      %p158 = por %p156, %p157
      %p159 = scmp.ne.s32.totalorder %s148, %s149
      %p160 = scmp.eq.s32.totalorder %s18, 0
      %p161 = por %p159, %p160
      %p162 = scmp.ne.s32.totalorder %s148, %s149
      %p163 = scmp.eq.s32.totalorder %s19, 3
      %p164 = por %p162, %p163
      %p166 = scmp.ne.s32.totalorder %s149, %s165
      %p167 = scmp.eq.s32.totalorder %s19, 0
      %p168 = por %p166, %p167
      %p169 = scmp.le.s32.totalorder 1, %s13
      %p170 = scmp.lt.s32.totalorder %s13, 5
      %p171 = pnand %p169, %p170
      %p172 = pneg %p171
      // Predicated region
      $region9: #{discriminator_forward.3} parent=5 // pred_check
        _
      $region10: #{discriminator_forward.3} parent=5 // pred_check_branch
        %174 = sbr.rel (%p171) target = $region12
      $region11: #{discriminator_forward.3} parent=5 // pred_region
        %s175 = ssub.s32 %s13, 1
        // Predicated region
        $region13: #{discriminator_forward.3} parent=11 // pred_check
          %p176 = pneg %p72
        $region14: #{discriminator_forward.3} parent=11 // pred_check_branch
          %178 = sbr.rel (%p176) target = $region16
        $region15: #{discriminator_forward.3} parent=11 // pred_region
          _
        $region16: #{discriminator_forward.3} parent=11 // pred_fallthru
          _
        // Predicated region
        $region17: #{discriminator_forward.3} parent=11 // pred_check
          %p179 = pneg %p93
        $region18: #{discriminator_forward.3} parent=11 // pred_check_branch
          %181 = sbr.rel (%p179) target = $region20
        $region19: #{discriminator_forward.3} parent=11 // pred_region
          %s183 = ssub.s32 16, 16
          %184 = vsyncadd [#allocation5], %s183
          %s186 = sshll.u32 [#allocation4], 4
          %s187 = int_to_ptr.vmem [resolvable:$true] %s186
          %189 = dma.hbm_to_vmem [thread:$0]  %s2, 16, %s187, [#allocation5]
        $region20: #{discriminator_forward.3} parent=11 // pred_fallthru
          _
        // Predicated region
        $region21: #{discriminator_forward.3} parent=11 // pred_check
          %p190 = pneg %p114
        $region22: #{discriminator_forward.3} parent=11 // pred_check_branch
          %192 = sbr.rel (%p190) target = $region24
        $region23: #{discriminator_forward.3} parent=11 // pred_region
          %s194 = ssub.s32 16, 16
          %195 = vsyncadd [#allocation7], %s194
          %s197 = sshll.u32 [#allocation6], 4
          %s198 = int_to_ptr.vmem [resolvable:$true] %s197
          %200 = dma.hbm_to_vmem [thread:$0]  %s3, 16, %s198, [#allocation7]
        $region24: #{discriminator_forward.3} parent=11 // pred_fallthru
          _
        // Predicated region
        $region25: #{discriminator_forward.3} parent=11 // pred_check
          %p201 = pneg %p135
        $region26: #{discriminator_forward.3} parent=11 // pred_check_branch
          %203 = sbr.rel (%p201) target = $region28
        $region27: #{discriminator_forward.3} parent=11 // pred_region
          %s205 = ssub.s32 16, 16
          %206 = vsyncadd [#allocation7], %s205
          %s208 = sshll.u32 [#allocation8], 4
          %s209 = int_to_ptr.vmem [resolvable:$true] %s208
          %211 = dma.hbm_to_vmem [thread:$0]  %s4, 16, %s209, [#allocation7]
        $region28: #{discriminator_forward.3} parent=11 // pred_fallthru
          _
      $region12: #{discriminator_forward.3} parent=5 // pred_fallthru
        _
      %p212 = scmp.lt.s32.totalorder %s13, 4
      // Predicated region
      $region29: #{discriminator_forward.3} parent=5 // pred_check
        %p213 = pneg %p212
      $region30: #{discriminator_forward.3} parent=5 // pred_check_branch
        %215 = sbr.rel (%p213) target = $region32
      $region31: #{discriminator_forward.3} parent=5 // pred_region
        // Predicated region
        $region33: #{discriminator_forward.3} parent=31 // pred_check
          %p216 = pneg %p45
        $region34: #{discriminator_forward.3} parent=31 // pred_check_branch
          %218 = sbr.rel (%p216) target = $region36
        $region35: #{discriminator_forward.3} parent=31 // pred_region
          %s219 = smul.u32 32, %s21
          %p220 = scmp.lt.s32.totalorder %s219, 63
          %s221 = scalar_select %p220, %s219, 63
          %s222 = smul.addr %s221, 4
          %s223 = scalar_lea.vmem %s0, %s222
          %s224 = smul.u32 32, %s21
        $region36: #{discriminator_forward.3} parent=31 // pred_fallthru
          _
      $region32: #{discriminator_forward.3} parent=5 // pred_fallthru
        _
      %p225 = scmp.le.s32.totalorder 1, %s13
      %p226 = scmp.lt.s32.totalorder %s13, 5
      %p227 = pnand %p225, %p226
      %p228 = pneg %p227
      // Predicated region
      $region37: #{discriminator_forward.3} parent=5 // pred_check
        _
      $region38: #{discriminator_forward.3} parent=5 // pred_check_branch
        %230 = sbr.rel (%p227) target = $region40
      $region39: #{discriminator_forward.3} parent=5 // pred_region
        %s231 = ssub.s32 %s13, 1
        // Predicated region
        $region41: #{discriminator_forward.3} parent=39 // pred_check
          %p232 = pneg %p93
        $region42: #{discriminator_forward.3} parent=39 // pred_check_branch
          %234 = sbr.rel (%p232) target = $region44
        $region43: #{discriminator_forward.3} parent=39 // pred_region
          %235 = dma.done [#allocation5], 16
        $region44: #{discriminator_forward.3} parent=39 // pred_fallthru
          _
        // Predicated region
        $region45: #{discriminator_forward.3} parent=39 // pred_check
          %p236 = pneg %p114
        $region46: #{discriminator_forward.3} parent=39 // pred_check_branch
          %238 = sbr.rel (%p236) target = $region48
        $region47: #{discriminator_forward.3} parent=39 // pred_region
          %239 = dma.done [#allocation7], 16
        $region48: #{discriminator_forward.3} parent=39 // pred_fallthru
          _
        // Predicated region
        $region49: #{discriminator_forward.3} parent=39 // pred_check
          %p240 = pneg %p135
        $region50: #{discriminator_forward.3} parent=39 // pred_check_branch
          %242 = sbr.rel (%p240) target = $region52
        $region51: #{discriminator_forward.3} parent=39 // pred_region
          %243 = dma.done [#allocation7], 16
        $region52: #{discriminator_forward.3} parent=39 // pred_fallthru
          _
        %s244 = smul.u32 32, %s23
        %p245 = scmp.lt.s32.totalorder %s244, 63
        %s246 = scalar_select %p245, %s244, 63
        %s247 = smul.addr %s246, 4
        %s248 = scalar_lea.vmem %s0, %s247
        %p249 = pneg %p51
        %p250 = pneg %p48
        %p251 = pneg %p72
        %p252 = pneg %p69
        %p253 = pneg %p93
        %p254 = pneg %p90
        %p255 = pneg %p114
        %p256 = pneg %p111
        %p257 = pneg %p135
        %p258 = pneg %p132
        %p259 = pneg %p161
        %p260 = pneg %p158
        %s261 = smul.u32 32, %s23
        %p262 = scmp.lt.s32.totalorder %s261, 63
        %s263 = scalar_select %p262, %s261, 63
        %s264 = smul.addr %s263, 8
        %s265 = scalar_lea.vmem %s5, %s264
        %s266 = smul.u32 32, %s23
        %p267 = scmp.lt.s32.totalorder %s266, 63
        %s268 = scalar_select %p267, %s266, 63
        %s269 = smul.addr %s268, 4
        %s270 = scalar_lea.vmem %s0, %s269
        %s271 = smul.u32 32, %s23
        %s272 = smul.u32 32, %s23
        %p273 = scmp.lt.s32.totalorder %s272, 63
        %s274 = scalar_select %p273, %s272, 63
        %s275 = smul.addr %s274, 8
        %s276 = scalar_lea.vmem %s5, %s275
        %s277 = smul.u32 32, %s23
        %v279 = vld [vmem:[%s270] sm:$0xf]
        %v280 = vld [vmem:[%s270 + $0x4] sm:$0xf]
        %v281 = vld [vmem:[%s270 + $0x8] sm:$0xf]
        %v282 = vld [vmem:[%s270 + $0xc] sm:$0xf]
        %v283 = vld [vmem:[%s270 + $0x10] sm:$0xf]
        %v284 = vld [vmem:[%s270 + $0x14] sm:$0xf]
        %v285 = vld [vmem:[%s270 + $0x18] sm:$0xf]
        %v286 = vld [vmem:[%s270 + $0x1c] sm:$0xf]
        %v287 = vld [vmem:[%s270 + $0x20] sm:$0xf]
        %v288 = vld [vmem:[%s270 + $0x24] sm:$0xf]
        %v289 = vld [vmem:[%s270 + $0x28] sm:$0xf]
        %v290 = vld [vmem:[%s270 + $0x2c] sm:$0xf]
        %v291 = vld [vmem:[%s270 + $0x30] sm:$0xf]
        %v292 = vld [vmem:[%s270 + $0x34] sm:$0xf]
        %v293 = vld [vmem:[%s270 + $0x38] sm:$0xf]
        %v294 = vld [vmem:[%s270 + $0x3c] sm:$0xf]
        %v295 = vld [vmem:[%s270 + $0x40] sm:$0xf]
        %v296 = vld [vmem:[%s270 + $0x44] sm:$0xf]
        %v297 = vld [vmem:[%s270 + $0x48] sm:$0xf]
        %v298 = vld [vmem:[%s270 + $0x4c] sm:$0xf]
        %v299 = vld [vmem:[%s270 + $0x50] sm:$0xf]
        %v300 = vld [vmem:[%s270 + $0x54] sm:$0xf]
        %v301 = vld [vmem:[%s270 + $0x58] sm:$0xf]
        %v302 = vld [vmem:[%s270 + $0x5c] sm:$0xf]
        %v303 = vld [vmem:[%s270 + $0x60] sm:$0xf]
        %v304 = vld [vmem:[%s270 + $0x64] sm:$0xf]
        %v305 = vld [vmem:[%s270 + $0x68] sm:$0xf]
        %v306 = vld [vmem:[%s270 + $0x6c] sm:$0xf]
        %v307 = vld [vmem:[%s270 + $0x70] sm:$0xf]
        %v308 = vld [vmem:[%s270 + $0x74] sm:$0xf]
        %v309 = vld [vmem:[%s270 + $0x78] sm:$0xf]
        %v310 = vld [vmem:[%s270 + $0x7c] sm:$0xf]
        %v311 = vld [vmem:[%s1] sm:$0xf]
        %v312 = vld [vmem:[%s1 + $0x4] sm:$0x1]
        %v313 = vld [vmem:[#allocation4] sm:$0x1]
        %v315 = vlaneseq
        %v316 = vshrl.u32 %v315, 7
        %v317 = vsub.s32 0, %v316
        %v318 = vrot.slane %v313, %v317
        %v352 = vunpack.c.l.b16 %v279
        %v353 = vunpack.c.l.b16 %v280
        %v354 = vunpack.c.l.b16 %v281
        %v355 = vunpack.c.l.b16 %v282
        %v356 = vunpack.c.l.b16 %v283
        %v357 = vunpack.c.l.b16 %v284
        %v358 = vunpack.c.l.b16 %v285
        %v359 = vunpack.c.l.b16 %v286
        %v360 = vunpack.c.l.b16 %v287
        %v361 = vunpack.c.l.b16 %v288
        %v362 = vunpack.c.l.b16 %v289
        %v363 = vunpack.c.l.b16 %v290
        %v364 = vunpack.c.l.b16 %v291
        %v365 = vunpack.c.l.b16 %v292
        %v366 = vunpack.c.l.b16 %v293
        %v367 = vunpack.c.l.b16 %v294
        %v368 = vunpack.c.l.b16 %v295
        %v369 = vunpack.c.l.b16 %v296
        %v370 = vunpack.c.l.b16 %v297
        %v371 = vunpack.c.l.b16 %v298
        %v372 = vunpack.c.l.b16 %v299
        %v373 = vunpack.c.l.b16 %v300
        %v374 = vunpack.c.l.b16 %v301
        %v375 = vunpack.c.l.b16 %v302
        %v376 = vunpack.c.l.b16 %v303
        %v377 = vunpack.c.l.b16 %v304
        %v378 = vunpack.c.l.b16 %v305
        %v379 = vunpack.c.l.b16 %v306
        %v380 = vunpack.c.l.b16 %v307
        %v381 = vunpack.c.l.b16 %v308
        %v382 = vunpack.c.l.b16 %v309
        %v383 = vunpack.c.l.b16 %v310
        %v384 = vpack.c.b16 %v353, %v352
        %v385 = vpack.c.b16 %v355, %v354
        %v386 = vpack.c.b16 %v357, %v356
        %v387 = vpack.c.b16 %v359, %v358
        %v388 = vpack.c.b16 %v361, %v360
        %v389 = vpack.c.b16 %v363, %v362
        %v390 = vpack.c.b16 %v365, %v364
        %v391 = vpack.c.b16 %v367, %v366
        %v392 = vpack.c.b16 %v369, %v368
        %v393 = vpack.c.b16 %v371, %v370
        %v394 = vpack.c.b16 %v373, %v372
        %v395 = vpack.c.b16 %v375, %v374
        %v396 = vpack.c.b16 %v377, %v376
        %v397 = vpack.c.b16 %v379, %v378
        %v398 = vpack.c.b16 %v381, %v380
        %v399 = vpack.c.b16 %v383, %v382
        %v402 = vunpack.c.l.b16 %v311
        %v403 = vunpack.c.l.b16 %v312
        %v404 = vpack.c.b16 %v403, %v402
        %vm405 = vcmask 72704
        %v407 = vsel %vm405, %v384, 0
        %v410 = vsel %vm405, %v385, 0
        %v413 = vsel %vm405, %v386, 0
        %v416 = vsel %vm405, %v387, 0
        %v419 = vsel %vm405, %v388, 0
        %v422 = vsel %vm405, %v389, 0
        %v425 = vsel %vm405, %v390, 0
        %v428 = vsel %vm405, %v391, 0
        %v431 = vsel %vm405, %v392, 0
        %v434 = vsel %vm405, %v393, 0
        %v437 = vsel %vm405, %v394, 0
        %v440 = vsel %vm405, %v395, 0
        %v443 = vsel %vm405, %v396, 0
        %v446 = vsel %vm405, %v397, 0
        %v449 = vsel %vm405, %v398, 0
        %v452 = vsel %vm405, %v399, 0
        %vm454 = vcmask 1043456
        %vm455 = vcmask 1044480
        %v456 = vsel %vm454, 4294967295, 65535
        %v457 = vsel %vm455, %v456, 0
        %v459 = vand.u32 %v404, %v457
        %461 = vmatprep.subr.bf16.mxu0 0
        %462 = vmatpush1.bf16.msra.mxu0 %v459
        %463 = vmatprep.subr.bf16.mxu0 0
        %464 = vmatpush1.bf16.msra.mxu0 0
        %465 = vmatprep.subr.bf16.mxu0 0
        %466 = vmatpush1.bf16.msra.mxu0 0
        %467 = vmatprep.subr.bf16.mxu0 0
        %468 = vmatpush1.bf16.msra.mxu0 0
        %469 = vmatprep.subr.bf16.mxu0 0
        %470 = vmatpush1.bf16.msra.mxu0 0
        %471 = vmatprep.subr.bf16.mxu0 0
        %472 = vmatpush1.bf16.msra.mxu0 0
        %473 = vmatprep.subr.bf16.mxu0 0
        %474 = vmatpush1.bf16.msra.mxu0 0
        %475 = vmatprep.subr.bf16.mxu0 0
        %476 = vmatpush1.bf16.msra.mxu0 0
        %477 = vmatprep.subr.bf16.mxu0 0
        %478 = vmatpush1.bf16.msra.mxu0 0
        %479 = vmatprep.subr.bf16.mxu0 0
        %480 = vmatpush1.bf16.msra.mxu0 0
        %481 = vmatprep.subr.bf16.mxu0 0
        %482 = vmatpush1.bf16.msra.mxu0 0
        %483 = vmatprep.subr.bf16.mxu0 0
        %484 = vmatpush1.bf16.msra.mxu0 0
        %485 = vmatprep.subr.bf16.mxu0 0
        %486 = vmatpush1.bf16.msra.mxu0 0
        %487 = vmatprep.subr.bf16.mxu0 0
        %488 = vmatpush1.bf16.msra.mxu0 0
        %489 = vmatprep.subr.bf16.mxu0 0
        %490 = vmatpush1.bf16.msra.mxu0 0
        %491 = vmatprep.subr.bf16.mxu0 0
        %492 = vmatpush1.bf16.msra.mxu0 0
        %493 = vmatprep.mubr.bf16.mxu0 0
        %494 = vmatmul.mubr.bf16.gmra.mrb[0].mxu0 %v407
        %v495 = vpop.f32.mrb[0].mxu0
        %v496 = vadd.f32 %v318, %v495
        %v497 = vpop.f32.mrb[0].mxu0
        %v498 = vpop.f32.mrb[0].mxu0
        %v499 = vadd.f32 %v318, %v498
        %v500 = vpop.f32.mrb[0].mxu0
        %501 = vmatprep.mubr.bf16.mxu0 0
        %502 = vmatmul.mubr.bf16.gmra.mrb[0].mxu0 %v410
        %v503 = vpop.f32.mrb[0].mxu0
        %v504 = vadd.f32 %v318, %v503
        %v505 = vpop.f32.mrb[0].mxu0
        %v506 = vpop.f32.mrb[0].mxu0
        %v507 = vadd.f32 %v318, %v506
        %v508 = vpop.f32.mrb[0].mxu0
        %509 = vmatprep.mubr.bf16.mxu0 0
        %510 = vmatmul.mubr.bf16.gmra.mrb[0].mxu0 %v413
        %v511 = vpop.f32.mrb[0].mxu0
        %v512 = vadd.f32 %v318, %v511
        %v513 = vpop.f32.mrb[0].mxu0
        %v514 = vpop.f32.mrb[0].mxu0
        %v515 = vadd.f32 %v318, %v514
        %v516 = vpop.f32.mrb[0].mxu0
        %517 = vmatprep.mubr.bf16.mxu0 0
        %518 = vmatmul.mubr.bf16.gmra.mrb[0].mxu0 %v416
        %v519 = vpop.f32.mrb[0].mxu0
        %v520 = vadd.f32 %v318, %v519
        %v521 = vpop.f32.mrb[0].mxu0
        %v522 = vpop.f32.mrb[0].mxu0
        %v523 = vadd.f32 %v318, %v522
        %v524 = vpop.f32.mrb[0].mxu0
        %525 = vmatprep.mubr.bf16.mxu0 0
        %526 = vmatmul.mubr.bf16.gmra.mrb[0].mxu0 %v419
        %v527 = vpop.f32.mrb[0].mxu0
        %v528 = vadd.f32 %v318, %v527
        %v529 = vpop.f32.mrb[0].mxu0
        %v530 = vpop.f32.mrb[0].mxu0
        %v531 = vadd.f32 %v318, %v530
        %v532 = vpop.f32.mrb[0].mxu0
        %533 = vmatprep.mubr.bf16.mxu0 0
        %534 = vmatmul.mubr.bf16.gmra.mrb[0].mxu0 %v422
        %v535 = vpop.f32.mrb[0].mxu0
        %v536 = vadd.f32 %v318, %v535
        %v537 = vpop.f32.mrb[0].mxu0
        %v538 = vpop.f32.mrb[0].mxu0
        %v539 = vadd.f32 %v318, %v538
        %v540 = vpop.f32.mrb[0].mxu0
        %541 = vmatprep.mubr.bf16.mxu0 0
        %542 = vmatmul.mubr.bf16.gmra.mrb[0].mxu0 %v425
        %v543 = vpop.f32.mrb[0].mxu0
        %v544 = vadd.f32 %v318, %v543
        %v545 = vpop.f32.mrb[0].mxu0
        %v546 = vpop.f32.mrb[0].mxu0
        %v547 = vadd.f32 %v318, %v546
        %v548 = vpop.f32.mrb[0].mxu0
        %549 = vmatprep.mubr.bf16.mxu0 0
        %550 = vmatmul.mubr.bf16.gmra.mrb[0].mxu0 %v428
        %v551 = vpop.f32.mrb[0].mxu0
        %v552 = vadd.f32 %v318, %v551
        %v553 = vpop.f32.mrb[0].mxu0
        %v554 = vpop.f32.mrb[0].mxu0
        %v555 = vadd.f32 %v318, %v554
        %v556 = vpop.f32.mrb[0].mxu0
        %557 = vmatprep.mubr.bf16.mxu0 0
        %558 = vmatmul.mubr.bf16.gmra.mrb[0].mxu0 %v431
        %v559 = vpop.f32.mrb[0].mxu0
        %v560 = vadd.f32 %v318, %v559
        %v561 = vpop.f32.mrb[0].mxu0
        %v562 = vpop.f32.mrb[0].mxu0
        %v563 = vadd.f32 %v318, %v562
        %v564 = vpop.f32.mrb[0].mxu0
        %565 = vmatprep.mubr.bf16.mxu0 0
        %566 = vmatmul.mubr.bf16.gmra.mrb[0].mxu0 %v434
        %v567 = vpop.f32.mrb[0].mxu0
        %v568 = vadd.f32 %v318, %v567
        %v569 = vpop.f32.mrb[0].mxu0
        %v570 = vpop.f32.mrb[0].mxu0
        %v571 = vadd.f32 %v318, %v570
        %v572 = vpop.f32.mrb[0].mxu0
        %573 = vmatprep.mubr.bf16.mxu0 0
        %574 = vmatmul.mubr.bf16.gmra.mrb[0].mxu0 %v437
        %v575 = vpop.f32.mrb[0].mxu0
        %v576 = vadd.f32 %v318, %v575
        %v577 = vpop.f32.mrb[0].mxu0
        %v578 = vpop.f32.mrb[0].mxu0
        %v579 = vadd.f32 %v318, %v578
        %v580 = vpop.f32.mrb[0].mxu0
        %581 = vmatprep.mubr.bf16.mxu0 0
        %582 = vmatmul.mubr.bf16.gmra.mrb[0].mxu0 %v440
        %v583 = vpop.f32.mrb[0].mxu0
        %v584 = vadd.f32 %v318, %v583
        %v585 = vpop.f32.mrb[0].mxu0
        %v586 = vpop.f32.mrb[0].mxu0
        %v587 = vadd.f32 %v318, %v586
        %v588 = vpop.f32.mrb[0].mxu0
        %589 = vmatprep.mubr.bf16.mxu0 0
        %590 = vmatmul.mubr.bf16.gmra.mrb[0].mxu0 %v443
        %v591 = vpop.f32.mrb[0].mxu0
        %v592 = vadd.f32 %v318, %v591
        %v593 = vpop.f32.mrb[0].mxu0
        %v594 = vpop.f32.mrb[0].mxu0
        %v595 = vadd.f32 %v318, %v594
        %v596 = vpop.f32.mrb[0].mxu0
        %597 = vmatprep.mubr.bf16.mxu0 0
        %598 = vmatmul.mubr.bf16.gmra.mrb[0].mxu0 %v446
        %v599 = vpop.f32.mrb[0].mxu0
        %v600 = vadd.f32 %v318, %v599
        %v601 = vpop.f32.mrb[0].mxu0
        %v602 = vpop.f32.mrb[0].mxu0
        %v603 = vadd.f32 %v318, %v602
        %v604 = vpop.f32.mrb[0].mxu0
        %605 = vmatprep.mubr.bf16.mxu0 0
        %606 = vmatmul.mubr.bf16.gmra.mrb[0].mxu0 %v449
        %v607 = vpop.f32.mrb[0].mxu0
        %v608 = vadd.f32 %v318, %v607
        %v609 = vpop.f32.mrb[0].mxu0
        %v610 = vpop.f32.mrb[0].mxu0
        %v611 = vadd.f32 %v318, %v610
        %v612 = vpop.f32.mrb[0].mxu0
        %613 = vmatprep.mubr.bf16.mxu0 0
        %614 = vmatmul.mubr.bf16.gmra.mrb[0].mxu0 %v452
        %v615 = vpop.f32.mrb[0].mxu0
        %v616 = vadd.f32 %v318, %v615
        %v617 = vpop.f32.mrb[0].mxu0
        %v618 = vpop.f32.mrb[0].mxu0
        %v619 = vadd.f32 %v318, %v618
        %v620 = vpop.f32.mrb[0].mxu0
        %621 = vdwg.mxu0
        %p622 = scmp.eq.s32.totalorder %s22, 0
        %p623 = scmp.eq.s32.totalorder %s23, 0
        %p624 = pnand %p622, %p623
        %p625 = pneg %p624
        // Predicated region
        $region53: #{discriminator_forward.3} parent=39 // pred_check
          _
        $region54: #{discriminator_forward.3} parent=39 // pred_check_branch
          %627 = sbr.rel (%p624) target = $region56
        $region55: #{discriminator_forward.3} parent=39 // pred_region
          %vm628 = vcmask 122880
          %629 = vst.msk [vmem:[#allocation2] sm:$0x1] %vm628, 0.0
          %630 = vst.msk [vmem:[#allocation3] sm:$0x1] %vm628, 0.0
        $region56: #{discriminator_forward.3} parent=39 // pred_fallthru
          _
        // Predicated region
        $region57: #{discriminator_forward.3} parent=39 // pred_check
          %p631 = pneg %p622
        $region58: #{discriminator_forward.3} parent=39 // pred_check_branch
          %633 = sbr.rel (%p631) target = $region60
        $region59: #{discriminator_forward.3} parent=39 // pred_region
          %s634 = smul.u32 %s23, 256
          %v635 = vlaneseq
          %v636 = vshrl.u32 %v635, 7
          %v637 = vadd.s32 %v636, 8
          %v638 = vadd.s32 %v636, 16
          %v639 = vadd.s32 %v636, 24
          %v640 = vadd.s32 %v636, 32
          %v641 = vadd.s32 %v636, 40
          %v642 = vadd.s32 %v636, 48
          %v643 = vadd.s32 %v636, 56
          %v644 = vadd.s32 %v636, 64
          %v645 = vadd.s32 %v636, 72
          %v646 = vadd.s32 %v636, 80
          %v647 = vadd.s32 %v636, 88
          %v648 = vadd.s32 %v636, 96
          %v649 = vadd.s32 %v636, 104
          %v650 = vadd.s32 %v636, 112
          %v651 = vadd.s32 %v636, 120
          %v652 = vadd.s32 %v636, 128
          %v653 = vadd.s32 %v636, 136
          %v654 = vadd.s32 %v636, 144
          %v655 = vadd.s32 %v636, 152
          %v656 = vadd.s32 %v636, 160
          %v657 = vadd.s32 %v636, 168
          %v658 = vadd.s32 %v636, 176
          %v659 = vadd.s32 %v636, 184
          %v660 = vadd.s32 %v636, 192
          %v661 = vadd.s32 %v636, 200
          %v662 = vadd.s32 %v636, 208
          %v663 = vadd.s32 %v636, 216
          %v664 = vadd.s32 %v636, 224
          %v665 = vadd.s32 %v636, 232
          %v666 = vadd.s32 %v636, 240
          %v667 = vadd.s32 %v636, 248
          %v668 = vstv %s634
          %v669 = vadd.s32 %v668, %v636
          %v670 = vadd.s32 %v668, %v637
          %v671 = vadd.s32 %v668, %v638
          %v672 = vadd.s32 %v668, %v639
          %v673 = vadd.s32 %v668, %v640
          %v674 = vadd.s32 %v668, %v641
          %v675 = vadd.s32 %v668, %v642
          %v676 = vadd.s32 %v668, %v643
          %v677 = vadd.s32 %v668, %v644
          %v678 = vadd.s32 %v668, %v645
          %v679 = vadd.s32 %v668, %v646
          %v680 = vadd.s32 %v668, %v647
          %v681 = vadd.s32 %v668, %v648
          %v682 = vadd.s32 %v668, %v649
          %v683 = vadd.s32 %v668, %v650
          %v684 = vadd.s32 %v668, %v651
          %v685 = vadd.s32 %v668, %v652
          %v686 = vadd.s32 %v668, %v653
          %v687 = vadd.s32 %v668, %v654
          %v688 = vadd.s32 %v668, %v655
          %v689 = vadd.s32 %v668, %v656
          %v690 = vadd.s32 %v668, %v657
          %v691 = vadd.s32 %v668, %v658
          %v692 = vadd.s32 %v668, %v659
          %v693 = vadd.s32 %v668, %v660
          %v694 = vadd.s32 %v668, %v661
          %v695 = vadd.s32 %v668, %v662
          %v696 = vadd.s32 %v668, %v663
          %v697 = vadd.s32 %v668, %v664
          %v698 = vadd.s32 %v668, %v665
          %v699 = vadd.s32 %v668, %v666
          %v700 = vadd.s32 %v668, %v667
          %vm701 = vcmp.lt.s32.totalorder %v669, 338
          %vm702 = vcmp.lt.s32.totalorder %v670, 338
          %vm703 = vcmp.lt.s32.totalorder %v671, 338
          %vm704 = vcmp.lt.s32.totalorder %v672, 338
          %vm705 = vcmp.lt.s32.totalorder %v673, 338
          %vm706 = vcmp.lt.s32.totalorder %v674, 338
          %vm707 = vcmp.lt.s32.totalorder %v675, 338
          %vm708 = vcmp.lt.s32.totalorder %v676, 338
          %vm709 = vcmp.lt.s32.totalorder %v677, 338
          %vm710 = vcmp.lt.s32.totalorder %v678, 338
          %vm711 = vcmp.lt.s32.totalorder %v679, 338
          %vm712 = vcmp.lt.s32.totalorder %v680, 338
          %vm713 = vcmp.lt.s32.totalorder %v681, 338
          %vm714 = vcmp.lt.s32.totalorder %v682, 338
          %vm715 = vcmp.lt.s32.totalorder %v683, 338
          %vm716 = vcmp.lt.s32.totalorder %v684, 338
          %vm717 = vcmp.lt.s32.totalorder %v685, 338
          %vm718 = vcmp.lt.s32.totalorder %v686, 338
          %vm719 = vcmp.lt.s32.totalorder %v687, 338
          %vm720 = vcmp.lt.s32.totalorder %v688, 338
          %vm721 = vcmp.lt.s32.totalorder %v689, 338
          %vm722 = vcmp.lt.s32.totalorder %v690, 338
          %vm723 = vcmp.lt.s32.totalorder %v691, 338
          %vm724 = vcmp.lt.s32.totalorder %v692, 338
          %vm725 = vcmp.lt.s32.totalorder %v693, 338
          %vm726 = vcmp.lt.s32.totalorder %v694, 338
          %vm727 = vcmp.lt.s32.totalorder %v695, 338
          %vm728 = vcmp.lt.s32.totalorder %v696, 338
          %vm729 = vcmp.lt.s32.totalorder %v697, 338
          %vm730 = vcmp.lt.s32.totalorder %v698, 338
          %vm731 = vcmp.lt.s32.totalorder %v699, 338
          %vm732 = vcmp.lt.s32.totalorder %v700, 338
          %v733 = vsel %vm701, 1, 0
          %v734 = vsel %vm702, 1, 0
          %v735 = vsel %vm703, 1, 0
          %v736 = vsel %vm704, 1, 0
          %v737 = vsel %vm705, 1, 0
          %v738 = vsel %vm706, 1, 0
          %v739 = vsel %vm707, 1, 0
          %v740 = vsel %vm708, 1, 0
          %v741 = vsel %vm709, 1, 0
          %v742 = vsel %vm710, 1, 0
          %v743 = vsel %vm711, 1, 0
          %v744 = vsel %vm712, 1, 0
          %v745 = vsel %vm713, 1, 0
          %v746 = vsel %vm714, 1, 0
          %v747 = vsel %vm715, 1, 0
          %v748 = vsel %vm716, 1, 0
          %v749 = vsel %vm717, 1, 0
          %v750 = vsel %vm718, 1, 0
          %v751 = vsel %vm719, 1, 0
          %v752 = vsel %vm720, 1, 0
          %v753 = vsel %vm721, 1, 0
          %v754 = vsel %vm722, 1, 0
          %v755 = vsel %vm723, 1, 0
          %v756 = vsel %vm724, 1, 0
          %v757 = vsel %vm725, 1, 0
          %v758 = vsel %vm726, 1, 0
          %v759 = vsel %vm727, 1, 0
          %v760 = vsel %vm728, 1, 0
          %v761 = vsel %vm729, 1, 0
          %v762 = vsel %vm730, 1, 0
          %v763 = vsel %vm731, 1, 0
          %v764 = vsel %vm732, 1, 0
          %vm765 = vcmp.eq.s32.totalorder %v733, 1
          %vm766 = vcmp.eq.s32.totalorder %v734, 1
          %vm767 = vcmp.eq.s32.totalorder %v735, 1
          %vm768 = vcmp.eq.s32.totalorder %v736, 1
          %vm769 = vcmp.eq.s32.totalorder %v737, 1
          %vm770 = vcmp.eq.s32.totalorder %v738, 1
          %vm771 = vcmp.eq.s32.totalorder %v739, 1
          %vm772 = vcmp.eq.s32.totalorder %v740, 1
          %vm773 = vcmp.eq.s32.totalorder %v741, 1
          %vm774 = vcmp.eq.s32.totalorder %v742, 1
          %vm775 = vcmp.eq.s32.totalorder %v743, 1
          %vm776 = vcmp.eq.s32.totalorder %v744, 1
          %vm777 = vcmp.eq.s32.totalorder %v745, 1
          %vm778 = vcmp.eq.s32.totalorder %v746, 1
          %vm779 = vcmp.eq.s32.totalorder %v747, 1
          %vm780 = vcmp.eq.s32.totalorder %v748, 1
          %vm781 = vcmp.eq.s32.totalorder %v749, 1
          %vm782 = vcmp.eq.s32.totalorder %v750, 1
          %vm783 = vcmp.eq.s32.totalorder %v751, 1
          %vm784 = vcmp.eq.s32.totalorder %v752, 1
          %vm785 = vcmp.eq.s32.totalorder %v753, 1
          %vm786 = vcmp.eq.s32.totalorder %v754, 1
          %vm787 = vcmp.eq.s32.totalorder %v755, 1
          %vm788 = vcmp.eq.s32.totalorder %v756, 1
          %vm789 = vcmp.eq.s32.totalorder %v757, 1
          %vm790 = vcmp.eq.s32.totalorder %v758, 1
          %vm791 = vcmp.eq.s32.totalorder %v759, 1
          %vm792 = vcmp.eq.s32.totalorder %v760, 1
          %vm793 = vcmp.eq.s32.totalorder %v761, 1
          %vm794 = vcmp.eq.s32.totalorder %v762, 1
          %vm795 = vcmp.eq.s32.totalorder %v763, 1
          %vm796 = vcmp.eq.s32.totalorder %v764, 1
          %v797 = vsel %vm765, %v496, 0.0
          %v798 = vsel %vm766, %v499, 0.0
          %v799 = vsel %vm767, %v504, 0.0
          %v800 = vsel %vm768, %v507, 0.0
          %v801 = vsel %vm769, %v512, 0.0
          %v802 = vsel %vm770, %v515, 0.0
          %v803 = vsel %vm771, %v520, 0.0
          %v804 = vsel %vm772, %v523, 0.0
          %v805 = vsel %vm773, %v528, 0.0
          %v806 = vsel %vm774, %v531, 0.0
          %v807 = vsel %vm775, %v536, 0.0
          %v808 = vsel %vm776, %v539, 0.0
          %v809 = vsel %vm777, %v544, 0.0
          %v810 = vsel %vm778, %v547, 0.0
          %v811 = vsel %vm779, %v552, 0.0
          %v812 = vsel %vm780, %v555, 0.0
          %v813 = vsel %vm781, %v560, 0.0
          %v814 = vsel %vm782, %v563, 0.0
          %v815 = vsel %vm783, %v568, 0.0
          %v816 = vsel %vm784, %v571, 0.0
          %v817 = vsel %vm785, %v576, 0.0
          %v818 = vsel %vm786, %v579, 0.0
          %v819 = vsel %vm787, %v584, 0.0
          %v820 = vsel %vm788, %v587, 0.0
          %v821 = vsel %vm789, %v592, 0.0
          %v822 = vsel %vm790, %v595, 0.0
          %v823 = vsel %vm791, %v600, 0.0
          %v824 = vsel %vm792, %v603, 0.0
          %v825 = vsel %vm793, %v608, 0.0
          %v826 = vsel %vm794, %v611, 0.0
          %v827 = vsel %vm795, %v616, 0.0
          %v828 = vsel %vm796, %v619, 0.0
          %v829 = vld [vmem:[#allocation2] sm:$0x1]
          %vm830 = vcmask 130048
          %v831 = vsel %vm830, %v797, 0.0
          %v832 = vsel %vm830, %v798, 0.0
          %v833 = vadd.f32 %v831, %v832
          %v834 = vsel %vm830, %v799, 0.0
          %v835 = vadd.f32 %v833, %v834
          %v836 = vsel %vm830, %v800, 0.0
          %v837 = vadd.f32 %v835, %v836
          %v838 = vsel %vm830, %v801, 0.0
          %v839 = vadd.f32 %v837, %v838
          %v840 = vsel %vm830, %v802, 0.0
          %v841 = vadd.f32 %v839, %v840
          %v842 = vsel %vm830, %v803, 0.0
          %v843 = vadd.f32 %v841, %v842
          %v844 = vsel %vm830, %v804, 0.0
          %v845 = vadd.f32 %v843, %v844
          %v846 = vsel %vm830, %v805, 0.0
          %v847 = vadd.f32 %v845, %v846
          %v848 = vsel %vm830, %v806, 0.0
          %v849 = vadd.f32 %v847, %v848
          %v850 = vsel %vm830, %v807, 0.0
          %v851 = vadd.f32 %v849, %v850
          %v852 = vsel %vm830, %v808, 0.0
          %v853 = vadd.f32 %v851, %v852
          %v854 = vsel %vm830, %v809, 0.0
          %v855 = vadd.f32 %v853, %v854
          %v856 = vsel %vm830, %v810, 0.0
          %v857 = vadd.f32 %v855, %v856
          %v858 = vsel %vm830, %v811, 0.0
          %v859 = vadd.f32 %v857, %v858
          %v860 = vsel %vm830, %v812, 0.0
          %v861 = vadd.f32 %v859, %v860
          %v862 = vsel %vm830, %v813, 0.0
          %v863 = vadd.f32 %v861, %v862
          %v864 = vsel %vm830, %v814, 0.0
          %v865 = vadd.f32 %v863, %v864
          %v866 = vsel %vm830, %v815, 0.0
          %v867 = vadd.f32 %v865, %v866
          %v868 = vsel %vm830, %v816, 0.0
          %v869 = vadd.f32 %v867, %v868
          %v870 = vsel %vm830, %v817, 0.0
          %v871 = vadd.f32 %v869, %v870
          %v872 = vsel %vm830, %v818, 0.0
          %v873 = vadd.f32 %v871, %v872
          %v874 = vsel %vm830, %v819, 0.0
          %v875 = vadd.f32 %v873, %v874
          %v876 = vsel %vm830, %v820, 0.0
          %v877 = vadd.f32 %v875, %v876
          %v878 = vsel %vm830, %v821, 0.0
          %v879 = vadd.f32 %v877, %v878
          %v880 = vsel %vm830, %v822, 0.0
          %v881 = vadd.f32 %v879, %v880
          %v882 = vsel %vm830, %v823, 0.0
          %v883 = vadd.f32 %v881, %v882
          %v884 = vsel %vm830, %v824, 0.0
          %v885 = vadd.f32 %v883, %v884
          %v886 = vsel %vm830, %v825, 0.0
          %v887 = vadd.f32 %v885, %v886
          %v888 = vsel %vm830, %v826, 0.0
          %v889 = vadd.f32 %v887, %v888
          %v890 = vsel %vm830, %v827, 0.0
          %v891 = vadd.f32 %v889, %v890
          %v892 = vsel %vm830, %v828, 0.0
          %v893 = vadd.f32 %v891, %v892
          %v894 = vrot.slane %v893, 4
          %v895 = vadd.f32 %v893, %v894
          %v896 = vrot.slane %v895, 2
          %v897 = vadd.f32 %v895, %v896
          %v898 = vrot.slane %v897, 1
          %v899 = vadd.f32 %v897, %v898
          %v900 = vadd.f32 %v829, %v899
          %vm901 = vcmask 122880
          %902 = vst.msk [vmem:[#allocation2] sm:$0x1] %vm901, %v900
          %v903 = vld [vmem:[#allocation3] sm:$0x1]
          %v904 = vmul.f32 %v797, %v797
          %v905 = vmul.f32 %v798, %v798
          %v906 = vmul.f32 %v799, %v799
          %v907 = vmul.f32 %v800, %v800
          %v908 = vmul.f32 %v801, %v801
          %v909 = vmul.f32 %v802, %v802
          %v910 = vmul.f32 %v803, %v803
          %v911 = vmul.f32 %v804, %v804
          %v912 = vmul.f32 %v805, %v805
          %v913 = vmul.f32 %v806, %v806
          %v914 = vmul.f32 %v807, %v807
          %v915 = vmul.f32 %v808, %v808
          %v916 = vmul.f32 %v809, %v809
          %v917 = vmul.f32 %v810, %v810
          %v918 = vmul.f32 %v811, %v811
          %v919 = vmul.f32 %v812, %v812
          %v920 = vmul.f32 %v813, %v813
          %v921 = vmul.f32 %v814, %v814
          %v922 = vmul.f32 %v815, %v815
          %v923 = vmul.f32 %v816, %v816
          %v924 = vmul.f32 %v817, %v817
          %v925 = vmul.f32 %v818, %v818
          %v926 = vmul.f32 %v819, %v819
          %v927 = vmul.f32 %v820, %v820
          %v928 = vmul.f32 %v821, %v821
          %v929 = vmul.f32 %v822, %v822
          %v930 = vmul.f32 %v823, %v823
          %v931 = vmul.f32 %v824, %v824
          %v932 = vmul.f32 %v825, %v825
          %v933 = vmul.f32 %v826, %v826
          %v934 = vmul.f32 %v827, %v827
          %v935 = vmul.f32 %v828, %v828
          %v936 = vsel %vm830, %v904, 0.0
          %v937 = vsel %vm830, %v905, 0.0
          %v938 = vadd.f32 %v936, %v937
          %v939 = vsel %vm830, %v906, 0.0
          %v940 = vadd.f32 %v938, %v939
          %v941 = vsel %vm830, %v907, 0.0
          %v942 = vadd.f32 %v940, %v941
          %v943 = vsel %vm830, %v908, 0.0
          %v944 = vadd.f32 %v942, %v943
          %v945 = vsel %vm830, %v909, 0.0
          %v946 = vadd.f32 %v944, %v945
          %v947 = vsel %vm830, %v910, 0.0
          %v948 = vadd.f32 %v946, %v947
          %v949 = vsel %vm830, %v911, 0.0
          %v950 = vadd.f32 %v948, %v949
          %v951 = vsel %vm830, %v912, 0.0
          %v952 = vadd.f32 %v950, %v951
          %v953 = vsel %vm830, %v913, 0.0
          %v954 = vadd.f32 %v952, %v953
          %v955 = vsel %vm830, %v914, 0.0
          %v956 = vadd.f32 %v954, %v955
          %v957 = vsel %vm830, %v915, 0.0
          %v958 = vadd.f32 %v956, %v957
          %v959 = vsel %vm830, %v916, 0.0
          %v960 = vadd.f32 %v958, %v959
          %v961 = vsel %vm830, %v917, 0.0
          %v962 = vadd.f32 %v960, %v961
          %v963 = vsel %vm830, %v918, 0.0
          %v964 = vadd.f32 %v962, %v963
          %v965 = vsel %vm830, %v919, 0.0
          %v966 = vadd.f32 %v964, %v965
          %v967 = vsel %vm830, %v920, 0.0
          %v968 = vadd.f32 %v966, %v967
          %v969 = vsel %vm830, %v921, 0.0
          %v970 = vadd.f32 %v968, %v969
          %v971 = vsel %vm830, %v922, 0.0
          %v972 = vadd.f32 %v970, %v971
          %v973 = vsel %vm830, %v923, 0.0
          %v974 = vadd.f32 %v972, %v973
          %v975 = vsel %vm830, %v924, 0.0
          %v976 = vadd.f32 %v974, %v975
          %v977 = vsel %vm830, %v925, 0.0
          %v978 = vadd.f32 %v976, %v977
          %v979 = vsel %vm830, %v926, 0.0
          %v980 = vadd.f32 %v978, %v979
          %v981 = vsel %vm830, %v927, 0.0
          %v982 = vadd.f32 %v980, %v981
          %v983 = vsel %vm830, %v928, 0.0
          %v984 = vadd.f32 %v982, %v983
          %v985 = vsel %vm830, %v929, 0.0
          %v986 = vadd.f32 %v984, %v985
          %v987 = vsel %vm830, %v930, 0.0
          %v988 = vadd.f32 %v986, %v987
          %v989 = vsel %vm830, %v931, 0.0
          %v990 = vadd.f32 %v988, %v989
          %v991 = vsel %vm830, %v932, 0.0
          %v992 = vadd.f32 %v990, %v991
          %v993 = vsel %vm830, %v933, 0.0
          %v994 = vadd.f32 %v992, %v993
          %v995 = vsel %vm830, %v934, 0.0
          %v996 = vadd.f32 %v994, %v995
          %v997 = vsel %vm830, %v935, 0.0
          %v998 = vadd.f32 %v996, %v997
          %v999 = vrot.slane %v998, 4
          %v1000 = vadd.f32 %v998, %v999
          %v1001 = vrot.slane %v1000, 2
          %v1002 = vadd.f32 %v1000, %v1001
          %v1003 = vrot.slane %v1002, 1
          %v1004 = vadd.f32 %v1002, %v1003
          %v1005 = vadd.f32 %v903, %v1004
          %1006 = vst.msk [vmem:[#allocation3] sm:$0x1] %vm901, %v1005
        $region60: #{discriminator_forward.3} parent=39 // pred_fallthru
          _
        %p1007 = scmp.eq.s32.totalorder %s22, 1
        %p1008 = pnand %p1007, %p623
        %p1009 = pneg %p1008
        // Predicated region
        $region61: #{discriminator_forward.3} parent=39 // pred_check
          _
        $region62: #{discriminator_forward.3} parent=39 // pred_check_branch
          %1011 = sbr.rel (%p1008) target = $region64
        $region63: #{discriminator_forward.3} parent=39 // pred_region
          %v1012 = vld [vmem:[#allocation2] sm:$0x1]
          %v1013 = vmul.f32 %v1012, 0.00295858
          %v1014 = vld [vmem:[#allocation3] sm:$0x1]
          %v1015 = vmul.f32 %v1014, 0.00295858
          %v1016 = vmul.f32 %v1013, %v1013
          %v1017 = vsub.f32 %v1015, %v1016
          %v1018 = vadd.f32 %v1017, 1e-05
          %v1019 = vrsqrt.pop %v1018
          %v1020 = vld [vmem:[#allocation6] sm:$0x1]
          %v1021 = vmul.f32 %v1020, %v1019
          %v1022 = vld [vmem:[#allocation8] sm:$0x1]
          %v1023 = vmul.f32 %v1013, %v1021
          %v1024 = vsub.f32 %v1022, %v1023
          %vm1025 = vcmask 122880
          %1026 = vst.msk [vmem:[#allocation3] sm:$0x1] %vm1025, %v1024
          %1027 = vst.msk [vmem:[#allocation2] sm:$0x1] %vm1025, %v1021
        $region64: #{discriminator_forward.3} parent=39 // pred_fallthru
          _
        // Predicated region
        $region65: #{discriminator_forward.3} parent=39 // pred_check
          %p1028 = pneg %p1007
        $region66: #{discriminator_forward.3} parent=39 // pred_check_branch
          %1030 = sbr.rel (%p1028) target = $region68
        $region67: #{discriminator_forward.3} parent=39 // pred_region
          %v1031 = vld [vmem:[#allocation2] sm:$0x1]
          %v1033 = vlaneseq
          %v1034 = vshrl.u32 %v1033, 7
          %v1035 = vsub.s32 0, %v1034
          %v1036 = vrot.slane %v1031, %v1035
          %v1038 = vmul.f32 %v496, %v1036
          %v1039 = vmul.f32 %v499, %v1036
          %v1040 = vmul.f32 %v504, %v1036
          %v1041 = vmul.f32 %v507, %v1036
          %v1042 = vmul.f32 %v512, %v1036
          %v1043 = vmul.f32 %v515, %v1036
          %v1044 = vmul.f32 %v520, %v1036
          %v1045 = vmul.f32 %v523, %v1036
          %v1046 = vmul.f32 %v528, %v1036
          %v1047 = vmul.f32 %v531, %v1036
          %v1048 = vmul.f32 %v536, %v1036
          %v1049 = vmul.f32 %v539, %v1036
          %v1050 = vmul.f32 %v544, %v1036
          %v1051 = vmul.f32 %v547, %v1036
          %v1052 = vmul.f32 %v552, %v1036
          %v1053 = vmul.f32 %v555, %v1036
          %v1054 = vmul.f32 %v560, %v1036
          %v1055 = vmul.f32 %v563, %v1036
          %v1056 = vmul.f32 %v568, %v1036
          %v1057 = vmul.f32 %v571, %v1036
          %v1058 = vmul.f32 %v576, %v1036
          %v1059 = vmul.f32 %v579, %v1036
          %v1060 = vmul.f32 %v584, %v1036
          %v1061 = vmul.f32 %v587, %v1036
          %v1062 = vmul.f32 %v592, %v1036
          %v1063 = vmul.f32 %v595, %v1036
          %v1064 = vmul.f32 %v600, %v1036
          %v1065 = vmul.f32 %v603, %v1036
          %v1066 = vmul.f32 %v608, %v1036
          %v1067 = vmul.f32 %v611, %v1036
          %v1068 = vmul.f32 %v616, %v1036
          %v1069 = vmul.f32 %v619, %v1036
          %v1070 = vld [vmem:[#allocation3] sm:$0x1]
          %v1072 = vlaneseq
          %v1073 = vshrl.u32 %v1072, 7
          %v1074 = vsub.s32 0, %v1073
          %v1075 = vrot.slane %v1070, %v1074
          %v1077 = vadd.f32 %v1038, %v1075
          %v1078 = vadd.f32 %v1039, %v1075
          %v1079 = vadd.f32 %v1040, %v1075
          %v1080 = vadd.f32 %v1041, %v1075
          %v1081 = vadd.f32 %v1042, %v1075
          %v1082 = vadd.f32 %v1043, %v1075
          %v1083 = vadd.f32 %v1044, %v1075
          %v1084 = vadd.f32 %v1045, %v1075
          %v1085 = vadd.f32 %v1046, %v1075
          %v1086 = vadd.f32 %v1047, %v1075
          %v1087 = vadd.f32 %v1048, %v1075
          %v1088 = vadd.f32 %v1049, %v1075
          %v1089 = vadd.f32 %v1050, %v1075
          %v1090 = vadd.f32 %v1051, %v1075
          %v1091 = vadd.f32 %v1052, %v1075
          %v1092 = vadd.f32 %v1053, %v1075
          %v1093 = vadd.f32 %v1054, %v1075
          %v1094 = vadd.f32 %v1055, %v1075
          %v1095 = vadd.f32 %v1056, %v1075
          %v1096 = vadd.f32 %v1057, %v1075
          %v1097 = vadd.f32 %v1058, %v1075
          %v1098 = vadd.f32 %v1059, %v1075
          %v1099 = vadd.f32 %v1060, %v1075
          %v1100 = vadd.f32 %v1061, %v1075
          %v1101 = vadd.f32 %v1062, %v1075
          %v1102 = vadd.f32 %v1063, %v1075
          %v1103 = vadd.f32 %v1064, %v1075
          %v1104 = vadd.f32 %v1065, %v1075
          %v1105 = vadd.f32 %v1066, %v1075
          %v1106 = vadd.f32 %v1067, %v1075
          %v1107 = vadd.f32 %v1068, %v1075
          %v1108 = vadd.f32 %v1069, %v1075
          %vm1109 = vcmp.ge.f32.partialorder %v1077, 0.0
          %vm1110 = vcmp.ge.f32.partialorder %v1078, 0.0
          %vm1111 = vcmp.ge.f32.partialorder %v1079, 0.0
          %vm1112 = vcmp.ge.f32.partialorder %v1080, 0.0
          %vm1113 = vcmp.ge.f32.partialorder %v1081, 0.0
          %vm1114 = vcmp.ge.f32.partialorder %v1082, 0.0
          %vm1115 = vcmp.ge.f32.partialorder %v1083, 0.0
          %vm1116 = vcmp.ge.f32.partialorder %v1084, 0.0
          %vm1117 = vcmp.ge.f32.partialorder %v1085, 0.0
          %vm1118 = vcmp.ge.f32.partialorder %v1086, 0.0
          %vm1119 = vcmp.ge.f32.partialorder %v1087, 0.0
          %vm1120 = vcmp.ge.f32.partialorder %v1088, 0.0
          %vm1121 = vcmp.ge.f32.partialorder %v1089, 0.0
          %vm1122 = vcmp.ge.f32.partialorder %v1090, 0.0
          %vm1123 = vcmp.ge.f32.partialorder %v1091, 0.0
          %vm1124 = vcmp.ge.f32.partialorder %v1092, 0.0
          %vm1125 = vcmp.ge.f32.partialorder %v1093, 0.0
          %vm1126 = vcmp.ge.f32.partialorder %v1094, 0.0
          %vm1127 = vcmp.ge.f32.partialorder %v1095, 0.0
          %vm1128 = vcmp.ge.f32.partialorder %v1096, 0.0
          %vm1129 = vcmp.ge.f32.partialorder %v1097, 0.0
          %vm1130 = vcmp.ge.f32.partialorder %v1098, 0.0
          %vm1131 = vcmp.ge.f32.partialorder %v1099, 0.0
          %vm1132 = vcmp.ge.f32.partialorder %v1100, 0.0
          %vm1133 = vcmp.ge.f32.partialorder %v1101, 0.0
          %vm1134 = vcmp.ge.f32.partialorder %v1102, 0.0
          %vm1135 = vcmp.ge.f32.partialorder %v1103, 0.0
          %vm1136 = vcmp.ge.f32.partialorder %v1104, 0.0
          %vm1137 = vcmp.ge.f32.partialorder %v1105, 0.0
          %vm1138 = vcmp.ge.f32.partialorder %v1106, 0.0
          %vm1139 = vcmp.ge.f32.partialorder %v1107, 0.0
          %vm1140 = vcmp.ge.f32.partialorder %v1108, 0.0
          %v1141 = vmul.f32 %v1077, 0.2
          %v1142 = vmul.f32 %v1078, 0.2
          %v1143 = vmul.f32 %v1079, 0.2
          %v1144 = vmul.f32 %v1080, 0.2
          %v1145 = vmul.f32 %v1081, 0.2
          %v1146 = vmul.f32 %v1082, 0.2
          %v1147 = vmul.f32 %v1083, 0.2
          %v1148 = vmul.f32 %v1084, 0.2
          %v1149 = vmul.f32 %v1085, 0.2
          %v1150 = vmul.f32 %v1086, 0.2
          %v1151 = vmul.f32 %v1087, 0.2
          %v1152 = vmul.f32 %v1088, 0.2
          %v1153 = vmul.f32 %v1089, 0.2
          %v1154 = vmul.f32 %v1090, 0.2
          %v1155 = vmul.f32 %v1091, 0.2
          %v1156 = vmul.f32 %v1092, 0.2
          %v1157 = vmul.f32 %v1093, 0.2
          %v1158 = vmul.f32 %v1094, 0.2
          %v1159 = vmul.f32 %v1095, 0.2
          %v1160 = vmul.f32 %v1096, 0.2
          %v1161 = vmul.f32 %v1097, 0.2
          %v1162 = vmul.f32 %v1098, 0.2
          %v1163 = vmul.f32 %v1099, 0.2
          %v1164 = vmul.f32 %v1100, 0.2
          %v1165 = vmul.f32 %v1101, 0.2
          %v1166 = vmul.f32 %v1102, 0.2
          %v1167 = vmul.f32 %v1103, 0.2
          %v1168 = vmul.f32 %v1104, 0.2
          %v1169 = vmul.f32 %v1105, 0.2
          %v1170 = vmul.f32 %v1106, 0.2
          %v1171 = vmul.f32 %v1107, 0.2
          %v1172 = vmul.f32 %v1108, 0.2
          %v1173 = vsel %vm1109, %v1077, %v1141
          %v1174 = vsel %vm1110, %v1078, %v1142
          %v1175 = vsel %vm1111, %v1079, %v1143
          %v1176 = vsel %vm1112, %v1080, %v1144
          %v1177 = vsel %vm1113, %v1081, %v1145
          %v1178 = vsel %vm1114, %v1082, %v1146
          %v1179 = vsel %vm1115, %v1083, %v1147
          %v1180 = vsel %vm1116, %v1084, %v1148
          %v1181 = vsel %vm1117, %v1085, %v1149
          %v1182 = vsel %vm1118, %v1086, %v1150
          %v1183 = vsel %vm1119, %v1087, %v1151
          %v1184 = vsel %vm1120, %v1088, %v1152
          %v1185 = vsel %vm1121, %v1089, %v1153
          %v1186 = vsel %vm1122, %v1090, %v1154
          %v1187 = vsel %vm1123, %v1091, %v1155
          %v1188 = vsel %vm1124, %v1092, %v1156
          %v1189 = vsel %vm1125, %v1093, %v1157
          %v1190 = vsel %vm1126, %v1094, %v1158
          %v1191 = vsel %vm1127, %v1095, %v1159
          %v1192 = vsel %vm1128, %v1096, %v1160
          %v1193 = vsel %vm1129, %v1097, %v1161
          %v1194 = vsel %vm1130, %v1098, %v1162
          %v1195 = vsel %vm1131, %v1099, %v1163
          %v1196 = vsel %vm1132, %v1100, %v1164
          %v1197 = vsel %vm1133, %v1101, %v1165
          %v1198 = vsel %vm1134, %v1102, %v1166
          %v1199 = vsel %vm1135, %v1103, %v1167
          %v1200 = vsel %vm1136, %v1104, %v1168
          %v1201 = vsel %vm1137, %v1105, %v1169
          %v1202 = vsel %vm1138, %v1106, %v1170
          %v1203 = vsel %vm1139, %v1107, %v1171
          %v1204 = vsel %vm1140, %v1108, %v1172
          %vm1205 = vcmask 130048
          %1206 = vst.msk [vmem:[%s276] sm:$0xff] %vm1205, %v1173
          %1207 = vst.msk [vmem:[%s276 + $0x8] sm:$0xff] %vm1205, %v1174
          %1208 = vst.msk [vmem:[%s276 + $0x10] sm:$0xff] %vm1205, %v1175
          %1209 = vst.msk [vmem:[%s276 + $0x18] sm:$0xff] %vm1205, %v1176
          %1210 = vst.msk [vmem:[%s276 + $0x20] sm:$0xff] %vm1205, %v1177
          %1211 = vst.msk [vmem:[%s276 + $0x28] sm:$0xff] %vm1205, %v1178
          %1212 = vst.msk [vmem:[%s276 + $0x30] sm:$0xff] %vm1205, %v1179
          %1213 = vst.msk [vmem:[%s276 + $0x38] sm:$0xff] %vm1205, %v1180
          %1214 = vst.msk [vmem:[%s276 + $0x40] sm:$0xff] %vm1205, %v1181
          %1215 = vst.msk [vmem:[%s276 + $0x48] sm:$0xff] %vm1205, %v1182
          %1216 = vst.msk [vmem:[%s276 + $0x50] sm:$0xff] %vm1205, %v1183
          %1217 = vst.msk [vmem:[%s276 + $0x58] sm:$0xff] %vm1205, %v1184
          %1218 = vst.msk [vmem:[%s276 + $0x60] sm:$0xff] %vm1205, %v1185
          %1219 = vst.msk [vmem:[%s276 + $0x68] sm:$0xff] %vm1205, %v1186
          %1220 = vst.msk [vmem:[%s276 + $0x70] sm:$0xff] %vm1205, %v1187
          %1221 = vst.msk [vmem:[%s276 + $0x78] sm:$0xff] %vm1205, %v1188
          %1222 = vst.msk [vmem:[%s276 + $0x80] sm:$0xff] %vm1205, %v1189
          %1223 = vst.msk [vmem:[%s276 + $0x88] sm:$0xff] %vm1205, %v1190
          %1224 = vst.msk [vmem:[%s276 + $0x90] sm:$0xff] %vm1205, %v1191
          %1225 = vst.msk [vmem:[%s276 + $0x98] sm:$0xff] %vm1205, %v1192
          %1226 = vst.msk [vmem:[%s276 + $0xa0] sm:$0xff] %vm1205, %v1193
          %1227 = vst.msk [vmem:[%s276 + $0xa8] sm:$0xff] %vm1205, %v1194
          %1228 = vst.msk [vmem:[%s276 + $0xb0] sm:$0xff] %vm1205, %v1195
          %1229 = vst.msk [vmem:[%s276 + $0xb8] sm:$0xff] %vm1205, %v1196
          %1230 = vst.msk [vmem:[%s276 + $0xc0] sm:$0xff] %vm1205, %v1197
          %1231 = vst.msk [vmem:[%s276 + $0xc8] sm:$0xff] %vm1205, %v1198
          %1232 = vst.msk [vmem:[%s276 + $0xd0] sm:$0xff] %vm1205, %v1199
          %1233 = vst.msk [vmem:[%s276 + $0xd8] sm:$0xff] %vm1205, %v1200
          %1234 = vst.msk [vmem:[%s276 + $0xe0] sm:$0xff] %vm1205, %v1201
          %1235 = vst.msk [vmem:[%s276 + $0xe8] sm:$0xff] %vm1205, %v1202
          %1236 = vst.msk [vmem:[%s276 + $0xf0] sm:$0xff] %vm1205, %v1203
          %1237 = vst.msk [vmem:[%s276 + $0xf8] sm:$0xff] %vm1205, %v1204
        $region68: #{discriminator_forward.3} parent=39 // pred_fallthru
          _
        %s1238 = smul.u32 32, %s23
        %p1239 = scmp.lt.s32.totalorder %s1238, 63
        %s1240 = scalar_select %p1239, %s1238, 63
        %s1241 = smul.addr %s1240, 8
        %s1242 = scalar_lea.vmem %s5, %s1241
        // Predicated region
        $region69: #{discriminator_forward.3} parent=39 // pred_check
          %p1243 = pneg %p158
        $region70: #{discriminator_forward.3} parent=39 // pred_check_branch
          %1245 = sbr.rel (%p1243) target = $region72
        $region71: #{discriminator_forward.3} parent=39 // pred_region
          %s1246 = smul.u32 32, %s23
        $region72: #{discriminator_forward.3} parent=39 // pred_fallthru
          _
      $region40: #{discriminator_forward.3} parent=5 // pred_fallthru
        _
      %p1247 = scmp.le.s32.totalorder 2, %s13
      // Predicated region
      $region73: #{discriminator_forward.3} parent=5 // pred_check
        %p1248 = pneg %p1247
      $region74: #{discriminator_forward.3} parent=5 // pred_check_branch
        %1250 = sbr.rel (%p1248) target = $region76
      $region75: #{discriminator_forward.3} parent=5 // pred_region
        %s1251 = ssub.s32 %s13, 2
        // Predicated region
        $region77: #{discriminator_forward.3} parent=75 // pred_check
          %p1252 = pneg %p164
        $region78: #{discriminator_forward.3} parent=75 // pred_check_branch
          %1254 = sbr.rel (%p1252) target = $region80
        $region79: #{discriminator_forward.3} parent=75 // pred_region
          %s1255 = smul.u32 32, %s25
          %p1256 = scmp.lt.s32.totalorder %s1255, 63
          %s1257 = scalar_select %p1256, %s1255, 63
          %s1258 = smul.addr %s1257, 8
          %s1259 = scalar_lea.vmem %s5, %s1258
        $region80: #{discriminator_forward.3} parent=75 // pred_fallthru
          _
      $region76: #{discriminator_forward.3} parent=5 // pred_fallthru
        _
    $region6: #{discriminator_forward.3} parent=1 // loop_footer
      %s17 = sadd.s32 1, %s13
    $region7: #{discriminator_forward.3} parent=1 // loop_footer_branch
      %12 = sbr.rel target = $region3
    $region8: #{discriminator_forward.3} parent=1 // loop_exit
      _
    %1260 = vsyncpa [#allocation5], 1
    %s1261 = scalar_lea.sflag [#allocation5], 1
    %1262 = vsyncpa %s1261, 1
    %1263 = vsyncpa [#allocation7], 1

// kernel: discriminator_forward.4
$region0: #{discriminator_forward.4}
  #allocation0 [shape = 'u32[]', space=smem, size = 0x4, offset = 0x4, fixed_abs, tag = 'smem constant byte address 0x4 - core index']
  #allocation1 [shape = 'u32[144,128]{1,0:T(1,128)}', space=vmem, size = 0x12000, scoped, tag = 'internal scratch']
  #allocation2 [shape = 'f32[1,32]{1,0:T(1,128)}', space=vmem, size = 0x200, scoped, tag = 'scratch operand']
  #allocation3 [shape = 'f32[1,32]{1,0:T(1,128)}', space=vmem, size = 0x200, scoped, tag = 'scratch operand']
  %s0 = inlined_call_operand.vmem [shape: bf16[56,400], index: 0, kind: input, shape index: {}]
  %s1 = inlined_call_operand.vmem [shape: bf16[400,32], index: 1, kind: input, shape index: {}]
  %s2 = inlined_call_operand.vmem [shape: f32[1,32], index: 2, kind: input, shape index: {}]
  %s3 = inlined_call_operand.vmem [shape: f32[1,32], index: 3, kind: input, shape index: {}]
  %s4 = inlined_call_operand.vmem [shape: f32[1,32], index: 4, kind: input, shape index: {}]
  %s5 = inlined_call_operand.vmem [shape: f32[56,32], index: 5, kind: output, shape index: {}]
  %s6 = sld [smem:[#allocation0]]
  $region69: #{discriminator_forward.4} parent=0
    _
  %s8 = ssub.s32 1, %s6
  %s9 = scalar_select 0, %s8, %s6
  loop: start=0, step=1, limit=4
  $region2: #{discriminator_forward.4} parent=0 // loop_pre_header
    _
  $region3: #{discriminator_forward.4} parent=0 // loop_header
    %s11 = sphi 0, %s15
    %p12 = scmp.ge.s32.totalorder %s11, 4
    %s18 = sphi 0, %s30
    %s19 = sphi 0, %s26
    %s20 = sphi 0, %s18
    %s21 = sphi 0, %s19
    %s22 = sphi 0, %s20
    %s23 = sphi 0, %s21
    %s33 = sphi 0, %s35
    %s36 = sphi 0, %s33
    %s37 = sphi 0, %s36
    %s53 = sphi 0, %s37
    %s57 = sphi 0, %s57
    %s59 = sphi 0, %s57
    %s60 = sphi 0, %s59
    %s74 = sphi 0, %s60
    %s78 = sphi 0, %s78
    %s80 = sphi 0, %s78
    %s81 = sphi 0, %s80
    %s95 = sphi 0, %s81
    %s99 = sphi 0, %s99
    %s101 = sphi 0, %s99
    %s102 = sphi 0, %s101
    %s116 = sphi 0, %s102
    %s120 = sphi 0, %s120
    %s122 = sphi 0, %s120
    %s123 = sphi 0, %s122
    %s137 = sphi 0, %s123
    %s143 = sphi 0, %s145
    %s146 = sphi 0, %s143
    %s147 = sphi 0, %s146
    %s163 = sphi 0, %s147
  $region4: #{discriminator_forward.4} parent=0 // loop_header_branch
    %14 = sbr.rel (%p12) target = $region8
  $region5: #{discriminator_forward.4} parent=0 // loop_body
    %s16 = ssub.s32 %s11, 1
    %s17 = ssub.s32 %s11, 2
    %s24 = sadd.s32 1, %s19
    %p25 = scmp.ge.s32.totalorder %s24, 1
    %s26 = scalar_select %p25, 0, %s24
    %s27 = sadd.s32 1, %s18
    %s28 = scalar_select %p25, %s27, %s18
    %p29 = scmp.ge.s32.totalorder %s28, 2
    %s30 = scalar_select %p29, 0, %s28
    %s31 = ssub.s32 %s19, %s26
    %p32 = scmp.eq.s32.totalorder %s31, 0
    %s34 = sadd.s32 %s33, 1
    %s35 = scalar_select %p32, %s33, %s34
    %p38 = pneg %p32
    %p39 = scmp.eq.s32.totalorder %s11, 1
    %p40 = por %p38, %p39
    %p41 = scmp.ne.s32.totalorder %s33, %s36
    %p42 = scmp.eq.s32.totalorder %s11, 0
    %p43 = por %p41, %p42
    %p44 = scmp.ne.s32.totalorder %s33, %s36
    %p45 = scmp.eq.s32.totalorder %s16, 1
    %p46 = por %p44, %p45
    %p47 = scmp.ne.s32.totalorder %s36, %s37
    %p48 = scmp.eq.s32.totalorder %s16, 0
    %p49 = por %p47, %p48
    %p50 = scmp.ne.s32.totalorder %s36, %s37
    %p51 = scmp.eq.s32.totalorder %s17, 1
    %p52 = por %p50, %p51
    %p54 = scmp.ne.s32.totalorder %s37, %s53
    %p55 = scmp.eq.s32.totalorder %s17, 0
    %p56 = por %p54, %p55
    %s58 = sadd.s32 %s57, 1
    %p61 = scmp.eq.s32.totalorder %s11, 1
    %p62 = scmp.ne.s32.totalorder %s57, %s59
    %p63 = scmp.eq.s32.totalorder %s11, 0
    %p64 = por %p62, %p63
    %p65 = scmp.ne.s32.totalorder %s57, %s59
    %p66 = scmp.eq.s32.totalorder %s16, 1
    %p67 = por %p65, %p66
    %p68 = scmp.ne.s32.totalorder %s59, %s60
    %p69 = scmp.eq.s32.totalorder %s16, 0
    %p70 = por %p68, %p69
    %p71 = scmp.ne.s32.totalorder %s59, %s60
    %p72 = scmp.eq.s32.totalorder %s17, 1
    %p73 = por %p71, %p72
    %p75 = scmp.ne.s32.totalorder %s60, %s74
    %p76 = scmp.eq.s32.totalorder %s17, 0
    %p77 = por %p75, %p76
    %s79 = sadd.s32 %s78, 1
    %p82 = scmp.eq.s32.totalorder %s11, 1
    %p83 = scmp.ne.s32.totalorder %s78, %s80
    %p84 = scmp.eq.s32.totalorder %s11, 0
    %p85 = por %p83, %p84
    %p86 = scmp.ne.s32.totalorder %s78, %s80
    %p87 = scmp.eq.s32.totalorder %s16, 1
    %p88 = por %p86, %p87
    %p89 = scmp.ne.s32.totalorder %s80, %s81
    %p90 = scmp.eq.s32.totalorder %s16, 0
    %p91 = por %p89, %p90
    %p92 = scmp.ne.s32.totalorder %s80, %s81
    %p93 = scmp.eq.s32.totalorder %s17, 1
    %p94 = por %p92, %p93
    %p96 = scmp.ne.s32.totalorder %s81, %s95
    %p97 = scmp.eq.s32.totalorder %s17, 0
    %p98 = por %p96, %p97
    %s100 = sadd.s32 %s99, 1
    %p103 = scmp.eq.s32.totalorder %s11, 1
    %p104 = scmp.ne.s32.totalorder %s99, %s101
    %p105 = scmp.eq.s32.totalorder %s11, 0
    %p106 = por %p104, %p105
    %p107 = scmp.ne.s32.totalorder %s99, %s101
    %p108 = scmp.eq.s32.totalorder %s16, 1
    %p109 = por %p107, %p108
    %p110 = scmp.ne.s32.totalorder %s101, %s102
    %p111 = scmp.eq.s32.totalorder %s16, 0
    %p112 = por %p110, %p111
    %p113 = scmp.ne.s32.totalorder %s101, %s102
    %p114 = scmp.eq.s32.totalorder %s17, 1
    %p115 = por %p113, %p114
    %p117 = scmp.ne.s32.totalorder %s102, %s116
    %p118 = scmp.eq.s32.totalorder %s17, 0
    %p119 = por %p117, %p118
    %s121 = sadd.s32 %s120, 1
    %p124 = scmp.eq.s32.totalorder %s11, 1
    %p125 = scmp.ne.s32.totalorder %s120, %s122
    %p126 = scmp.eq.s32.totalorder %s11, 0
    %p127 = por %p125, %p126
    %p128 = scmp.ne.s32.totalorder %s120, %s122
    %p129 = scmp.eq.s32.totalorder %s16, 1
    %p130 = por %p128, %p129
    %p131 = scmp.ne.s32.totalorder %s122, %s123
    %p132 = scmp.eq.s32.totalorder %s16, 0
    %p133 = por %p131, %p132
    %p134 = scmp.ne.s32.totalorder %s122, %s123
    %p135 = scmp.eq.s32.totalorder %s17, 1
    %p136 = por %p134, %p135
    %p138 = scmp.ne.s32.totalorder %s123, %s137
    %p139 = scmp.eq.s32.totalorder %s17, 0
    %p140 = por %p138, %p139
    %s141 = ssub.s32 %s19, %s26
    %p142 = scmp.eq.s32.totalorder %s141, 0
    %s144 = sadd.s32 %s143, 1
    %s145 = scalar_select %p142, %s143, %s144
    %p148 = pneg %p142
    %p149 = scmp.eq.s32.totalorder %s11, 1
    %p150 = por %p148, %p149
    %p151 = scmp.ne.s32.totalorder %s143, %s146
    %p152 = scmp.eq.s32.totalorder %s11, 0
    %p153 = por %p151, %p152
    %p154 = scmp.ne.s32.totalorder %s143, %s146
    %p155 = scmp.eq.s32.totalorder %s16, 1
    %p156 = por %p154, %p155
    %p157 = scmp.ne.s32.totalorder %s146, %s147
    %p158 = scmp.eq.s32.totalorder %s16, 0
    %p159 = por %p157, %p158
    %p160 = scmp.ne.s32.totalorder %s146, %s147
    %p161 = scmp.eq.s32.totalorder %s17, 1
    %p162 = por %p160, %p161
    %p164 = scmp.ne.s32.totalorder %s147, %s163
    %p165 = scmp.eq.s32.totalorder %s17, 0
    %p166 = por %p164, %p165
    %p167 = scmp.le.s32.totalorder 1, %s11
    %p168 = scmp.lt.s32.totalorder %s11, 3
    %p169 = pnand %p167, %p168
    %p170 = pneg %p169
    // Predicated region
    $region9: #{discriminator_forward.4} parent=5 // pred_check
      _
    $region10: #{discriminator_forward.4} parent=5 // pred_check_branch
      %172 = sbr.rel (%p169) target = $region12
    $region11: #{discriminator_forward.4} parent=5 // pred_region
      %s173 = ssub.s32 %s11, 1
      // Predicated region
      $region13: #{discriminator_forward.4} parent=11 // pred_check
        %p174 = pneg %p49
      $region14: #{discriminator_forward.4} parent=11 // pred_check_branch
        %176 = sbr.rel (%p174) target = $region16
      $region15: #{discriminator_forward.4} parent=11 // pred_region
        %s177 = smul.u32 7, %s21
        %p178 = scmp.lt.s32.totalorder %s177, 6
        %s179 = scalar_select %p178, %s177, 6
        %s180 = smul.addr %s179, 4
        %s181 = smul.addr %s180, 4
        %s182 = scalar_lea.vmem %s0, %s181
        %s183 = smul.u32 7, %s21
      $region16: #{discriminator_forward.4} parent=11 // pred_fallthru
        _
      // Predicated region
      $region17: #{discriminator_forward.4} parent=11 // pred_check
        %p184 = pneg %p70
      $region18: #{discriminator_forward.4} parent=11 // pred_check_branch
        %186 = sbr.rel (%p184) target = $region20
      $region19: #{discriminator_forward.4} parent=11 // pred_region
        _
      $region20: #{discriminator_forward.4} parent=11 // pred_fallthru
        _
      // Predicated region
      $region21: #{discriminator_forward.4} parent=11 // pred_check
        %p187 = pneg %p91
      $region22: #{discriminator_forward.4} parent=11 // pred_check_branch
        %189 = sbr.rel (%p187) target = $region24
      $region23: #{discriminator_forward.4} parent=11 // pred_region
        _
      $region24: #{discriminator_forward.4} parent=11 // pred_fallthru
        _
      // Predicated region
      $region25: #{discriminator_forward.4} parent=11 // pred_check
        %p190 = pneg %p112
      $region26: #{discriminator_forward.4} parent=11 // pred_check_branch
        %192 = sbr.rel (%p190) target = $region28
      $region27: #{discriminator_forward.4} parent=11 // pred_region
        _
      $region28: #{discriminator_forward.4} parent=11 // pred_fallthru
        _
      // Predicated region
      $region29: #{discriminator_forward.4} parent=11 // pred_check
        %p193 = pneg %p133
      $region30: #{discriminator_forward.4} parent=11 // pred_check_branch
        %195 = sbr.rel (%p193) target = $region32
      $region31: #{discriminator_forward.4} parent=11 // pred_region
        _
      $region32: #{discriminator_forward.4} parent=11 // pred_fallthru
        _
    $region12: #{discriminator_forward.4} parent=5 // pred_fallthru
      _
    %p196 = scmp.lt.s32.totalorder %s11, 2
    // Predicated region
    $region33: #{discriminator_forward.4} parent=5 // pred_check
      %p197 = pneg %p196
    $region34: #{discriminator_forward.4} parent=5 // pred_check_branch
      %199 = sbr.rel (%p197) target = $region36
    $region35: #{discriminator_forward.4} parent=5 // pred_region
      _
    $region36: #{discriminator_forward.4} parent=5 // pred_fallthru
      _
    %p200 = scmp.le.s32.totalorder 1, %s11
    %p201 = scmp.lt.s32.totalorder %s11, 3
    %p202 = pnand %p200, %p201
    %p203 = pneg %p202
    // Predicated region
    $region37: #{discriminator_forward.4} parent=5 // pred_check
      _
    $region38: #{discriminator_forward.4} parent=5 // pred_check_branch
      %205 = sbr.rel (%p202) target = $region40
    $region39: #{discriminator_forward.4} parent=5 // pred_region
      %s206 = ssub.s32 %s11, 1
      %s207 = smul.u32 7, %s21
      %p208 = scmp.lt.s32.totalorder %s207, 6
      %s209 = scalar_select %p208, %s207, 6
      %s210 = smul.addr %s209, 4
      %s211 = smul.addr %s210, 4
      %s212 = scalar_lea.vmem %s0, %s211
      %p213 = pneg %p49
      %p214 = pneg %p46
      %p215 = pneg %p70
      %p216 = pneg %p67
      %p217 = pneg %p91
      %p218 = pneg %p88
      %p219 = pneg %p112
      %p220 = pneg %p109
      %p221 = pneg %p133
      %p222 = pneg %p130
      %p223 = pneg %p159
      %p224 = pneg %p156
      %s225 = smul.u32 7, %s21
      %p226 = scmp.lt.s32.totalorder %s225, 6
      %s227 = scalar_select %p226, %s225, 6
      %s228 = smul.addr %s227, 8
      %s229 = scalar_lea.vmem %s5, %s228
      %s230 = smul.u32 7, %s21
      %p231 = scmp.lt.s32.totalorder %s230, 6
      %s232 = scalar_select %p231, %s230, 6
      %s233 = smul.addr %s232, 4
      %s234 = smul.addr %s233, 4
      %s235 = scalar_lea.vmem %s0, %s234
      %s236 = smul.u32 7, %s21
      %s237 = smul.u32 7, %s21
      %p238 = scmp.lt.s32.totalorder %s237, 6
      %s239 = scalar_select %p238, %s237, 6
      %s240 = smul.addr %s239, 8
      %s241 = scalar_lea.vmem %s5, %s240
      %s242 = smul.u32 7, %s21
      %v244 = vld [vmem:[%s235] sm:$0xff]
      %v245 = vld [vmem:[%s235 + $0x8] sm:$0xff]
      %v246 = vld [vmem:[%s235 + $0x10] sm:$0xff]
      %v247 = vld [vmem:[%s235 + $0x18] sm:$0xff]
      %v248 = vld [vmem:[%s235 + $0x20] sm:$0xff]
      %v249 = vld [vmem:[%s235 + $0x28] sm:$0xff]
      %v250 = vld [vmem:[%s235 + $0x30] sm:$0xff]
      %v251 = vld [vmem:[%s235 + $0x38] sm:$0xff]
      %v252 = vld [vmem:[%s235 + $0x40] sm:$0xff]
      %v253 = vld [vmem:[%s235 + $0x48] sm:$0xff]
      %v254 = vld [vmem:[%s235 + $0x50] sm:$0xff]
      %v255 = vld [vmem:[%s235 + $0x58] sm:$0xff]
      %v256 = vld [vmem:[%s235 + $0x60] sm:$0xff]
      %v257 = vld [vmem:[%s235 + $0x68] sm:$0xff]
      %v258 = vld [vmem:[%s1] sm:$0xf]
      %v259 = vld [vmem:[%s1 + $0x4] sm:$0xf]
      %v260 = vld [vmem:[%s1 + $0x8] sm:$0xf]
      %v261 = vld [vmem:[%s1 + $0xc] sm:$0xf]
      %v262 = vld [vmem:[%s1 + $0x10] sm:$0xf]
      %v263 = vld [vmem:[%s1 + $0x14] sm:$0xf]
      %v264 = vld [vmem:[%s1 + $0x18] sm:$0xf]
      %v265 = vld [vmem:[%s1 + $0x1c] sm:$0xf]
      %v266 = vld [vmem:[%s1 + $0x20] sm:$0xf]
      %v267 = vld [vmem:[%s1 + $0x24] sm:$0xf]
      %v268 = vld [vmem:[%s1 + $0x28] sm:$0xf]
      %v269 = vld [vmem:[%s1 + $0x2c] sm:$0xf]
      %v270 = vld [vmem:[%s1 + $0x30] sm:$0xf]
      %v271 = vld [vmem:[%s1 + $0x34] sm:$0xf]
      %v272 = vld [vmem:[%s1 + $0x38] sm:$0xf]
      %v273 = vld [vmem:[%s1 + $0x3c] sm:$0xf]
      %v274 = vld [vmem:[%s1 + $0x40] sm:$0xf]
      %v275 = vld [vmem:[%s1 + $0x44] sm:$0xf]
      %v276 = vld [vmem:[%s1 + $0x48] sm:$0xf]
      %v277 = vld [vmem:[%s1 + $0x4c] sm:$0xf]
      %v278 = vld [vmem:[%s1 + $0x50] sm:$0xf]
      %v279 = vld [vmem:[%s1 + $0x54] sm:$0xf]
      %v280 = vld [vmem:[%s1 + $0x58] sm:$0xf]
      %v281 = vld [vmem:[%s1 + $0x5c] sm:$0xf]
      %v282 = vld [vmem:[%s1 + $0x60] sm:$0xf]
      %v283 = vld [vmem:[%s1 + $0x64] sm:$0xf]
      %v284 = vld [vmem:[%s1 + $0x68] sm:$0xf]
      %v285 = vld [vmem:[%s1 + $0x6c] sm:$0xf]
      %v286 = vld [vmem:[%s1 + $0x70] sm:$0xf]
      %v287 = vld [vmem:[%s1 + $0x74] sm:$0xf]
      %v288 = vld [vmem:[%s1 + $0x78] sm:$0xf]
      %v289 = vld [vmem:[%s1 + $0x7c] sm:$0xf]
      %v290 = vld [vmem:[%s1 + $0x80] sm:$0xf]
      %v291 = vld [vmem:[%s1 + $0x84] sm:$0xf]
      %v292 = vld [vmem:[%s1 + $0x88] sm:$0xf]
      %v293 = vld [vmem:[%s1 + $0x8c] sm:$0xf]
      %v294 = vld [vmem:[%s1 + $0x90] sm:$0xf]
      %v295 = vld [vmem:[%s1 + $0x94] sm:$0xf]
      %v296 = vld [vmem:[%s1 + $0x98] sm:$0xf]
      %v297 = vld [vmem:[%s1 + $0x9c] sm:$0xf]
      %v298 = vld [vmem:[%s1 + $0xa0] sm:$0xf]
      %v299 = vld [vmem:[%s1 + $0xa4] sm:$0xf]
      %v300 = vld [vmem:[%s1 + $0xa8] sm:$0xf]
      %v301 = vld [vmem:[%s1 + $0xac] sm:$0xf]
      %v302 = vld [vmem:[%s1 + $0xb0] sm:$0xf]
      %v303 = vld [vmem:[%s1 + $0xb4] sm:$0xf]
      %v304 = vld [vmem:[%s1 + $0xb8] sm:$0xf]
      %v305 = vld [vmem:[%s1 + $0xbc] sm:$0xf]
      %v306 = vld [vmem:[%s1 + $0xc0] sm:$0xf]
      %v307 = vld [vmem:[%s1 + $0xc4] sm:$0xf]
      %v308 = vld [vmem:[%s2] sm:$0x1]
      %v310 = vlaneseq
      %v311 = vshrl.u32 %v310, 7
      %v312 = vsub.s32 0, %v311
      %v313 = vrot.slane %v308, %v312
      %v329 = vunpack.c.l.b16 %v244
      %v330 = vunpack.c.h.b16 %v244
      %v331 = vunpack.c.l.b16 %v245
      %v332 = vunpack.c.h.b16 %v245
      %v333 = vunpack.c.l.b16 %v246
      %v334 = vunpack.c.h.b16 %v246
      %v335 = vunpack.c.l.b16 %v247
      %v336 = vunpack.c.h.b16 %v247
      %v337 = vunpack.c.l.b16 %v248
      %v338 = vunpack.c.h.b16 %v248
      %v339 = vunpack.c.l.b16 %v249
      %v340 = vunpack.c.h.b16 %v249
      %v341 = vunpack.c.l.b16 %v250
      %v342 = vunpack.c.h.b16 %v250
      %v343 = vunpack.c.l.b16 %v251
      %v344 = vunpack.c.h.b16 %v251
      %v345 = vunpack.c.l.b16 %v252
      %v346 = vunpack.c.h.b16 %v252
      %v347 = vunpack.c.l.b16 %v253
      %v348 = vunpack.c.h.b16 %v253
      %v349 = vunpack.c.l.b16 %v254
      %v350 = vunpack.c.h.b16 %v254
      %v351 = vunpack.c.l.b16 %v255
      %v352 = vunpack.c.h.b16 %v255
      %v353 = vunpack.c.l.b16 %v256
      %v354 = vunpack.c.h.b16 %v256
      %v355 = vunpack.c.l.b16 %v257
      %v356 = vunpack.c.h.b16 %v257
      %v357 = vpack.c.b16 %v333, %v329
      %v358 = vpack.c.b16 %v334, %v330
      %v359 = vpack.c.b16 %v335, %v331
      %v360 = vpack.c.b16 %v336, %v332
      %v361 = vpack.c.b16 %v341, %v337
      %v362 = vpack.c.b16 %v342, %v338
      %v363 = vpack.c.b16 %v343, %v339
      %v364 = vpack.c.b16 %v344, %v340
      %v365 = vpack.c.b16 %v349, %v345
      %v366 = vpack.c.b16 %v350, %v346
      %v367 = vpack.c.b16 %v351, %v347
      %v368 = vpack.c.b16 %v352, %v348
      %v369 = vpack.c.b16 %v353, %v353
      %v370 = vpack.c.b16 %v354, %v354
      %v371 = vpack.c.b16 %v355, %v355
      %v372 = vpack.c.b16 %v356, %v356
      %v435 = vunpack.c.l.b16 %v258
      %v436 = vunpack.c.l.b16 %v259
      %v437 = vunpack.c.l.b16 %v260
      %v438 = vunpack.c.l.b16 %v261
      %v439 = vunpack.c.l.b16 %v262
      %v440 = vunpack.c.l.b16 %v263
      %v441 = vunpack.c.l.b16 %v264
      %v442 = vunpack.c.l.b16 %v265
      %v443 = vunpack.c.l.b16 %v266
      %v444 = vunpack.c.l.b16 %v267
      %v445 = vunpack.c.l.b16 %v268
      %v446 = vunpack.c.l.b16 %v269
      %v447 = vunpack.c.l.b16 %v270
      %v448 = vunpack.c.l.b16 %v271
      %v449 = vunpack.c.l.b16 %v272
      %v450 = vunpack.c.l.b16 %v273
      %v451 = vunpack.c.l.b16 %v274
      %v452 = vunpack.c.l.b16 %v275
      %v453 = vunpack.c.l.b16 %v276
      %v454 = vunpack.c.l.b16 %v277
      %v455 = vunpack.c.l.b16 %v278
      %v456 = vunpack.c.l.b16 %v279
      %v457 = vunpack.c.l.b16 %v280
      %v458 = vunpack.c.l.b16 %v281
      %v459 = vunpack.c.l.b16 %v282
      %v460 = vunpack.c.l.b16 %v283
      %v461 = vunpack.c.l.b16 %v284
      %v462 = vunpack.c.l.b16 %v285
      %v463 = vunpack.c.l.b16 %v286
      %v464 = vunpack.c.l.b16 %v287
      %v465 = vunpack.c.l.b16 %v288
      %v466 = vunpack.c.l.b16 %v289
      %v467 = vunpack.c.l.b16 %v290
      %v468 = vunpack.c.l.b16 %v291
      %v469 = vunpack.c.l.b16 %v292
      %v470 = vunpack.c.l.b16 %v293
      %v471 = vunpack.c.l.b16 %v294
      %v472 = vunpack.c.l.b16 %v295
      %v473 = vunpack.c.l.b16 %v296
      %v474 = vunpack.c.l.b16 %v297
      %v475 = vunpack.c.l.b16 %v298
      %v476 = vunpack.c.l.b16 %v299
      %v477 = vunpack.c.l.b16 %v300
      %v478 = vunpack.c.l.b16 %v301
      %v479 = vunpack.c.l.b16 %v302
      %v480 = vunpack.c.l.b16 %v303
      %v481 = vunpack.c.l.b16 %v304
      %v482 = vunpack.c.l.b16 %v305
      %v483 = vunpack.c.l.b16 %v306
      %v484 = vunpack.c.l.b16 %v307
      %v485 = vpack.c.b16 %v436, %v435
      %v486 = vpack.c.b16 %v438, %v437
      %v487 = vpack.c.b16 %v440, %v439
      %v488 = vpack.c.b16 %v442, %v441
      %v489 = vpack.c.b16 %v444, %v443
      %v490 = vpack.c.b16 %v446, %v445
      %v491 = vpack.c.b16 %v448, %v447
      %v492 = vpack.c.b16 %v450, %v449
      %v493 = vpack.c.b16 %v452, %v451
      %v494 = vpack.c.b16 %v454, %v453
      %v495 = vpack.c.b16 %v456, %v455
      %v496 = vpack.c.b16 %v458, %v457
      %v497 = vpack.c.b16 %v460, %v459
      %v498 = vpack.c.b16 %v462, %v461
      %v499 = vpack.c.b16 %v464, %v463
      %v500 = vpack.c.b16 %v466, %v465
      %v501 = vpack.c.b16 %v468, %v467
      %v502 = vpack.c.b16 %v470, %v469
      %v503 = vpack.c.b16 %v472, %v471
      %v504 = vpack.c.b16 %v474, %v473
      %v505 = vpack.c.b16 %v476, %v475
      %v506 = vpack.c.b16 %v478, %v477
      %v507 = vpack.c.b16 %v480, %v479
      %v508 = vpack.c.b16 %v482, %v481
      %v509 = vpack.c.b16 %v484, %v483
      %vm535 = vcmask 130048
      %v537 = vsel %vm535, %v360, 0
      %v540 = vsel %vm535, %v364, 0
      %v543 = vsel %vm535, %v368, 0
      %v546 = vsel %vm535, %v372, 0
      %548 = vmatprep.subr.bf16.mxu0 0
      %549 = vmatpush1.bf16.msra.mxu0 %v485
      %550 = vmatprep.subr.bf16.mxu0 0
      %551 = vmatpush1.bf16.msra.mxu0 %v486
      %552 = vmatprep.subr.bf16.mxu0 0
      %553 = vmatpush1.bf16.msra.mxu0 %v487
      %554 = vmatprep.subr.bf16.mxu0 0
      %555 = vmatpush1.bf16.msra.mxu0 %v488
      %556 = vmatprep.subr.bf16.mxu0 0
      %557 = vmatpush1.bf16.msra.mxu0 %v489
      %558 = vmatprep.subr.bf16.mxu0 0
      %559 = vmatpush1.bf16.msra.mxu0 %v490
      %560 = vmatprep.subr.bf16.mxu0 0
      %561 = vmatpush1.bf16.msra.mxu0 %v491
      %562 = vmatprep.subr.bf16.mxu0 0
      %563 = vmatpush1.bf16.msra.mxu0 %v492
      %564 = vmatprep.subr.bf16.mxu0 0
      %565 = vmatpush1.bf16.msra.mxu0 %v493
      %566 = vmatprep.subr.bf16.mxu0 0
      %567 = vmatpush1.bf16.msra.mxu0 %v494
      %568 = vmatprep.subr.bf16.mxu0 0
      %569 = vmatpush1.bf16.msra.mxu0 %v495
      %570 = vmatprep.subr.bf16.mxu0 0
      %571 = vmatpush1.bf16.msra.mxu0 %v496
      %572 = vmatprep.subr.bf16.mxu0 0
      %573 = vmatpush1.bf16.msra.mxu0 %v497
      %574 = vmatprep.subr.bf16.mxu0 0
      %575 = vmatpush1.bf16.msra.mxu0 %v498
      %576 = vmatprep.subr.bf16.mxu0 0
      %577 = vmatpush1.bf16.msra.mxu0 %v499
      %578 = vmatprep.subr.bf16.mxu0 0
      %579 = vmatpush1.bf16.msra.mxu0 %v500
      %580 = vmatprep.mubr.bf16.mxu0 %v358
      %581 = vmatmul.mubr.bf16.gmra.mrb[0].mxu0 %v357
      %v582 = vpop.f32.mrb[0].mxu0
      %v583 = vadd.f32 %v313, %v582
      %v584 = vpop.f32.mrb[0].mxu0
      %v585 = vpop.f32.mrb[0].mxu0
      %v586 = vadd.f32 %v313, %v585
      %v587 = vpop.f32.mrb[0].mxu0
      %588 = vmatprep.mubr.bf16.mxu0 %v362
      %589 = vmatmul.mubr.bf16.gmra.mrb[0].mxu0 %v361
      %v590 = vpop.f32.mrb[0].mxu0
      %v591 = vadd.f32 %v313, %v590
      %v592 = vpop.f32.mrb[0].mxu0
      %v593 = vpop.f32.mrb[0].mxu0
      %v594 = vadd.f32 %v313, %v593
      %v595 = vpop.f32.mrb[0].mxu0
      %596 = vmatprep.mubr.bf16.mxu0 %v366
      %597 = vmatmul.mubr.bf16.gmra.mrb[0].mxu0 %v365
      %v598 = vpop.f32.mrb[0].mxu0
      %v599 = vadd.f32 %v313, %v598
      %v600 = vpop.f32.mrb[0].mxu0
      %v601 = vpop.f32.mrb[0].mxu0
      %v602 = vadd.f32 %v313, %v601
      %v603 = vpop.f32.mrb[0].mxu0
      %604 = vmatprep.mubr.bf16.mxu0 %v370
      %605 = vmatmul.mubr.bf16.gmra.mrb[0].mxu0 %v369
      %v606 = vpop.f32.mrb[0].mxu0
      %v607 = vadd.f32 %v313, %v606
      %v608 = vpop.f32.mrb[0].mxu0
      %v609 = vpop.f32.mrb[0].mxu0
      %v610 = vpop.f32.mrb[0].mxu0
      %611 = vdwg.mxu0
      %612 = vmatprep.subr.bf16.mxu0 0
      %613 = vmatpush1.bf16.msra.mxu0 %v501
      %614 = vmatprep.subr.bf16.mxu0 0
      %615 = vmatpush1.bf16.msra.mxu0 %v502
      %616 = vmatprep.subr.bf16.mxu0 0
      %617 = vmatpush1.bf16.msra.mxu0 %v503
      %618 = vmatprep.subr.bf16.mxu0 0
      %619 = vmatpush1.bf16.msra.mxu0 %v504
      %620 = vmatprep.subr.bf16.mxu0 0
      %621 = vmatpush1.bf16.msra.mxu0 %v505
      %622 = vmatprep.subr.bf16.mxu0 0
      %623 = vmatpush1.bf16.msra.mxu0 %v506
      %624 = vmatprep.subr.bf16.mxu0 0
      %625 = vmatpush1.bf16.msra.mxu0 %v507
      %626 = vmatprep.subr.bf16.mxu0 0
      %627 = vmatpush1.bf16.msra.mxu0 %v508
      %628 = vmatprep.subr.bf16.mxu0 0
      %629 = vmatpush1.bf16.msra.mxu0 %v509
      %630 = vmatprep.subr.bf16.mxu0 0
      %631 = vmatpush1.bf16.msra.mxu0 0
      %632 = vmatprep.subr.bf16.mxu0 0
      %633 = vmatpush1.bf16.msra.mxu0 0
      %634 = vmatprep.subr.bf16.mxu0 0
      %635 = vmatpush1.bf16.msra.mxu0 0
      %636 = vmatprep.subr.bf16.mxu0 0
      %637 = vmatpush1.bf16.msra.mxu0 0
      %638 = vmatprep.subr.bf16.mxu0 0
      %639 = vmatpush1.bf16.msra.mxu0 0
      %640 = vmatprep.subr.bf16.mxu0 0
      %641 = vmatpush1.bf16.msra.mxu0 0
      %642 = vmatprep.subr.bf16.mxu0 0
      %643 = vmatpush1.bf16.msra.mxu0 0
      %644 = vmatprep.mubr.bf16.mxu0 %v537
      %645 = vmatmul.mubr.bf16.gmra.mrb[0].mxu0 %v359
      %v646 = vpop.f32.mrb[0].mxu0
      %v647 = vadd.f32 %v583, %v646
      %v648 = vpop.f32.mrb[0].mxu0
      %v649 = vpop.f32.mrb[0].mxu0
      %v650 = vadd.f32 %v586, %v649
      %v651 = vpop.f32.mrb[0].mxu0
      %652 = vmatprep.mubr.bf16.mxu0 %v540
      %653 = vmatmul.mubr.bf16.gmra.mrb[0].mxu0 %v363
      %v654 = vpop.f32.mrb[0].mxu0
      %v655 = vadd.f32 %v591, %v654
      %v656 = vpop.f32.mrb[0].mxu0
      %v657 = vpop.f32.mrb[0].mxu0
      %v658 = vadd.f32 %v594, %v657
      %v659 = vpop.f32.mrb[0].mxu0
      %660 = vmatprep.mubr.bf16.mxu0 %v543
      %661 = vmatmul.mubr.bf16.gmra.mrb[0].mxu0 %v367
      %v662 = vpop.f32.mrb[0].mxu0
      %v663 = vadd.f32 %v599, %v662
      %v664 = vpop.f32.mrb[0].mxu0
      %v665 = vpop.f32.mrb[0].mxu0
      %v666 = vadd.f32 %v602, %v665
      %v667 = vpop.f32.mrb[0].mxu0
      %668 = vmatprep.mubr.bf16.mxu0 %v546
      %669 = vmatmul.mubr.bf16.gmra.mrb[0].mxu0 %v371
      %v670 = vpop.f32.mrb[0].mxu0
      %v671 = vadd.f32 %v607, %v670
      %v672 = vpop.f32.mrb[0].mxu0
      %v673 = vpop.f32.mrb[0].mxu0
      %v674 = vpop.f32.mrb[0].mxu0
      %675 = vdwg.mxu0
      %p676 = scmp.eq.s32.totalorder %s20, 0
      %p677 = scmp.eq.s32.totalorder %s21, 0
      %p678 = pnand %p676, %p677
      %p679 = pneg %p678
      // Predicated region
      $region41: #{discriminator_forward.4} parent=39 // pred_check
        _
      $region42: #{discriminator_forward.4} parent=39 // pred_check_branch
        %681 = sbr.rel (%p678) target = $region44
      $region43: #{discriminator_forward.4} parent=39 // pred_region
        %vm682 = vcmask 253952
        %683 = vst.msk [vmem:[#allocation2] sm:$0x1] %vm682, 0.0
        %684 = vst.msk [vmem:[#allocation3] sm:$0x1] %vm682, 0.0
      $region44: #{discriminator_forward.4} parent=39 // pred_fallthru
        _
      // Predicated region
      $region45: #{discriminator_forward.4} parent=39 // pred_check
        %p685 = pneg %p676
      $region46: #{discriminator_forward.4} parent=39 // pred_check_branch
        %687 = sbr.rel (%p685) target = $region48
      $region47: #{discriminator_forward.4} parent=39 // pred_region
        %s688 = smul.u32 %s21, 56
        %v689 = vlaneseq
        %v690 = vshrl.u32 %v689, 7
        %v691 = vadd.s32 %v690, 8
        %v692 = vadd.s32 %v690, 16
        %v693 = vadd.s32 %v690, 24
        %v694 = vadd.s32 %v690, 32
        %v695 = vadd.s32 %v690, 40
        %v696 = vadd.s32 %v690, 48
        %v697 = vstv %s688
        %v698 = vadd.s32 %v697, %v690
        %v699 = vadd.s32 %v697, %v691
        %v700 = vadd.s32 %v697, %v692
        %v701 = vadd.s32 %v697, %v693
        %v702 = vadd.s32 %v697, %v694
        %v703 = vadd.s32 %v697, %v695
        %v704 = vadd.s32 %v697, %v696
        %vm705 = vcmp.lt.s32.totalorder %v698, 50
        %vm706 = vcmp.lt.s32.totalorder %v699, 50
        %vm707 = vcmp.lt.s32.totalorder %v700, 50
        %vm708 = vcmp.lt.s32.totalorder %v701, 50
        %vm709 = vcmp.lt.s32.totalorder %v702, 50
        %vm710 = vcmp.lt.s32.totalorder %v703, 50
        %vm711 = vcmp.lt.s32.totalorder %v704, 50
        %v712 = vsel %vm705, 1, 0
        %v713 = vsel %vm706, 1, 0
        %v714 = vsel %vm707, 1, 0
        %v715 = vsel %vm708, 1, 0
        %v716 = vsel %vm709, 1, 0
        %v717 = vsel %vm710, 1, 0
        %v718 = vsel %vm711, 1, 0
        %vm719 = vcmp.eq.s32.totalorder %v712, 1
        %vm720 = vcmp.eq.s32.totalorder %v713, 1
        %vm721 = vcmp.eq.s32.totalorder %v714, 1
        %vm722 = vcmp.eq.s32.totalorder %v715, 1
        %vm723 = vcmp.eq.s32.totalorder %v716, 1
        %vm724 = vcmp.eq.s32.totalorder %v717, 1
        %vm725 = vcmp.eq.s32.totalorder %v718, 1
        %v726 = vsel %vm719, %v647, 0.0
        %v727 = vsel %vm720, %v650, 0.0
        %v728 = vsel %vm721, %v655, 0.0
        %v729 = vsel %vm722, %v658, 0.0
        %v730 = vsel %vm723, %v663, 0.0
        %v731 = vsel %vm724, %v666, 0.0
        %v732 = vsel %vm725, %v671, 0.0
        %v733 = vld [vmem:[#allocation2] sm:$0x1]
        %vm734 = vcmask 261120
        %v735 = vsel %vm734, %v726, 0.0
        %v736 = vsel %vm734, %v727, 0.0
        %v737 = vadd.f32 %v735, %v736
        %v738 = vsel %vm734, %v728, 0.0
        %v739 = vadd.f32 %v737, %v738
        %v740 = vsel %vm734, %v729, 0.0
        %v741 = vadd.f32 %v739, %v740
        %v742 = vsel %vm734, %v730, 0.0
        %v743 = vadd.f32 %v741, %v742
        %v744 = vsel %vm734, %v731, 0.0
        %v745 = vadd.f32 %v743, %v744
        %v746 = vsel %vm734, %v732, 0.0
        %v747 = vadd.f32 %v745, %v746
        %v748 = vrot.slane %v747, 4
        %v749 = vadd.f32 %v747, %v748
        %v750 = vrot.slane %v749, 2
        %v751 = vadd.f32 %v749, %v750
        %v752 = vrot.slane %v751, 1
        %v753 = vadd.f32 %v751, %v752
        %v754 = vadd.f32 %v733, %v753
        %vm755 = vcmask 253952
        %756 = vst.msk [vmem:[#allocation2] sm:$0x1] %vm755, %v754
        %v757 = vld [vmem:[#allocation3] sm:$0x1]
        %v758 = vmul.f32 %v726, %v726
        %v759 = vmul.f32 %v727, %v727
        %v760 = vmul.f32 %v728, %v728
        %v761 = vmul.f32 %v729, %v729
        %v762 = vmul.f32 %v730, %v730
        %v763 = vmul.f32 %v731, %v731
        %v764 = vmul.f32 %v732, %v732
        %v765 = vsel %vm734, %v758, 0.0
        %v766 = vsel %vm734, %v759, 0.0
        %v767 = vadd.f32 %v765, %v766
        %v768 = vsel %vm734, %v760, 0.0
        %v769 = vadd.f32 %v767, %v768
        %v770 = vsel %vm734, %v761, 0.0
        %v771 = vadd.f32 %v769, %v770
        %v772 = vsel %vm734, %v762, 0.0
        %v773 = vadd.f32 %v771, %v772
        %v774 = vsel %vm734, %v763, 0.0
        %v775 = vadd.f32 %v773, %v774
        %v776 = vsel %vm734, %v764, 0.0
        %v777 = vadd.f32 %v775, %v776
        %v778 = vrot.slane %v777, 4
        %v779 = vadd.f32 %v777, %v778
        %v780 = vrot.slane %v779, 2
        %v781 = vadd.f32 %v779, %v780
        %v782 = vrot.slane %v781, 1
        %v783 = vadd.f32 %v781, %v782
        %v784 = vadd.f32 %v757, %v783
        %785 = vst.msk [vmem:[#allocation3] sm:$0x1] %vm755, %v784
      $region48: #{discriminator_forward.4} parent=39 // pred_fallthru
        _
      %p786 = scmp.eq.s32.totalorder %s20, 1
      %p787 = pnand %p786, %p677
      %p788 = pneg %p787
      // Predicated region
      $region49: #{discriminator_forward.4} parent=39 // pred_check
        _
      $region50: #{discriminator_forward.4} parent=39 // pred_check_branch
        %790 = sbr.rel (%p787) target = $region52
      $region51: #{discriminator_forward.4} parent=39 // pred_region
        %v791 = vld [vmem:[#allocation2] sm:$0x1]
        %v792 = vmul.f32 %v791, 0.02
        %v793 = vld [vmem:[#allocation3] sm:$0x1]
        %v794 = vmul.f32 %v793, 0.02
        %v795 = vmul.f32 %v792, %v792
        %v796 = vsub.f32 %v794, %v795
        %v797 = vadd.f32 %v796, 1e-05
        %v798 = vrsqrt.pop %v797
        %v799 = vld [vmem:[%s3] sm:$0x1]
        %v800 = vmul.f32 %v799, %v798
        %v801 = vld [vmem:[%s4] sm:$0x1]
        %v802 = vmul.f32 %v792, %v800
        %v803 = vsub.f32 %v801, %v802
        %vm804 = vcmask 253952
        %805 = vst.msk [vmem:[#allocation3] sm:$0x1] %vm804, %v803
        %806 = vst.msk [vmem:[#allocation2] sm:$0x1] %vm804, %v800
      $region52: #{discriminator_forward.4} parent=39 // pred_fallthru
        _
      // Predicated region
      $region53: #{discriminator_forward.4} parent=39 // pred_check
        %p807 = pneg %p786
      $region54: #{discriminator_forward.4} parent=39 // pred_check_branch
        %809 = sbr.rel (%p807) target = $region56
      $region55: #{discriminator_forward.4} parent=39 // pred_region
        %v810 = vld [vmem:[#allocation2] sm:$0x1]
        %v812 = vlaneseq
        %v813 = vshrl.u32 %v812, 7
        %v814 = vsub.s32 0, %v813
        %v815 = vrot.slane %v810, %v814
        %v817 = vmul.f32 %v647, %v815
        %v818 = vmul.f32 %v650, %v815
        %v819 = vmul.f32 %v655, %v815
        %v820 = vmul.f32 %v658, %v815
        %v821 = vmul.f32 %v663, %v815
        %v822 = vmul.f32 %v666, %v815
        %v823 = vmul.f32 %v671, %v815
        %v824 = vld [vmem:[#allocation3] sm:$0x1]
        %v826 = vlaneseq
        %v827 = vshrl.u32 %v826, 7
        %v828 = vsub.s32 0, %v827
        %v829 = vrot.slane %v824, %v828
        %v831 = vadd.f32 %v817, %v829
        %v832 = vadd.f32 %v818, %v829
        %v833 = vadd.f32 %v819, %v829
        %v834 = vadd.f32 %v820, %v829
        %v835 = vadd.f32 %v821, %v829
        %v836 = vadd.f32 %v822, %v829
        %v837 = vadd.f32 %v823, %v829
        %vm838 = vcmp.ge.f32.partialorder %v831, 0.0
        %vm839 = vcmp.ge.f32.partialorder %v832, 0.0
        %vm840 = vcmp.ge.f32.partialorder %v833, 0.0
        %vm841 = vcmp.ge.f32.partialorder %v834, 0.0
        %vm842 = vcmp.ge.f32.partialorder %v835, 0.0
        %vm843 = vcmp.ge.f32.partialorder %v836, 0.0
        %vm844 = vcmp.ge.f32.partialorder %v837, 0.0
        %v845 = vmul.f32 %v831, 0.2
        %v846 = vmul.f32 %v832, 0.2
        %v847 = vmul.f32 %v833, 0.2
        %v848 = vmul.f32 %v834, 0.2
        %v849 = vmul.f32 %v835, 0.2
        %v850 = vmul.f32 %v836, 0.2
        %v851 = vmul.f32 %v837, 0.2
        %v852 = vsel %vm838, %v831, %v845
        %v853 = vsel %vm839, %v832, %v846
        %v854 = vsel %vm840, %v833, %v847
        %v855 = vsel %vm841, %v834, %v848
        %v856 = vsel %vm842, %v835, %v849
        %v857 = vsel %vm843, %v836, %v850
        %v858 = vsel %vm844, %v837, %v851
        %vm859 = vcmask 261120
        %860 = vst.msk [vmem:[%s241] sm:$0xff] %vm859, %v852
        %861 = vst.msk [vmem:[%s241 + $0x8] sm:$0xff] %vm859, %v853
        %862 = vst.msk [vmem:[%s241 + $0x10] sm:$0xff] %vm859, %v854
        %863 = vst.msk [vmem:[%s241 + $0x18] sm:$0xff] %vm859, %v855
        %864 = vst.msk [vmem:[%s241 + $0x20] sm:$0xff] %vm859, %v856
        %865 = vst.msk [vmem:[%s241 + $0x28] sm:$0xff] %vm859, %v857
        %866 = vst.msk [vmem:[%s241 + $0x30] sm:$0xff] %vm859, %v858
      $region56: #{discriminator_forward.4} parent=39 // pred_fallthru
        _
      %s867 = smul.u32 7, %s21
      %p868 = scmp.lt.s32.totalorder %s867, 6
      %s869 = scalar_select %p868, %s867, 6
      %s870 = smul.addr %s869, 8
      %s871 = scalar_lea.vmem %s5, %s870
      // Predicated region
      $region57: #{discriminator_forward.4} parent=39 // pred_check
        %p872 = pneg %p156
      $region58: #{discriminator_forward.4} parent=39 // pred_check_branch
        %874 = sbr.rel (%p872) target = $region60
      $region59: #{discriminator_forward.4} parent=39 // pred_region
        %s875 = smul.u32 7, %s21
      $region60: #{discriminator_forward.4} parent=39 // pred_fallthru
        _
      // Predicated region
      $region61: #{discriminator_forward.4} parent=39 // pred_check
        %p876 = pneg %p156
      $region62: #{discriminator_forward.4} parent=39 // pred_check_branch
        %878 = sbr.rel (%p876) target = $region64
      $region63: #{discriminator_forward.4} parent=39 // pred_region
        %s879 = smul.u32 7, %s21
        %p880 = scmp.lt.s32.totalorder %s879, 6
        %s881 = scalar_select %p880, %s879, 6
        %s882 = smul.addr %s881, 8
        %s883 = scalar_lea.vmem %s5, %s882
      $region64: #{discriminator_forward.4} parent=39 // pred_fallthru
        _
    $region40: #{discriminator_forward.4} parent=5 // pred_fallthru
      _
    %p884 = scmp.le.s32.totalorder 2, %s11
    // Predicated region
    $region65: #{discriminator_forward.4} parent=5 // pred_check
      %p885 = pneg %p884
    $region66: #{discriminator_forward.4} parent=5 // pred_check_branch
      %887 = sbr.rel (%p885) target = $region68
    $region67: #{discriminator_forward.4} parent=5 // pred_region
      %s888 = ssub.s32 %s11, 2
    $region68: #{discriminator_forward.4} parent=5 // pred_fallthru
      _
  $region6: #{discriminator_forward.4} parent=0 // loop_footer
    %s15 = sadd.s32 1, %s11
  $region7: #{discriminator_forward.4} parent=0 // loop_footer_branch
    %10 = sbr.rel target = $region3
  $region8: #{discriminator_forward.4} parent=0 // loop_exit
    _

// kernel: discriminator_forward.5
$region0: #{discriminator_forward.5}
  #allocation0 [shape = 'u32[]', space=smem, size = 0x4, offset = 0x4, fixed_abs, tag = 'smem constant byte address 0x4 - core index']
  #allocation1 [shape = 'u32[144,128]{1,0:T(1,128)}', space=vmem, size = 0x12000, scoped, tag = 'internal scratch']
  #allocation2 [shape = 'f32[1,64]{1,0:T(1,128)}', space=vmem, size = 0x200, scoped, tag = 'scratch operand']
  #allocation3 [shape = 'f32[1,64]{1,0:T(1,128)}', space=vmem, size = 0x200, scoped, tag = 'scratch operand']
  #allocation4 [shape = 'f32[1,1]{1,0:T(1,128)S(1)}', space=vmem, size = 0x200, scoped, tag = 'scoped memory for discriminator_forward.5']
  %s0 = inlined_call_operand.vmem [shape: bf16[8,800], index: 0, kind: input, shape index: {}]
  %s1 = inlined_call_operand.vmem [shape: bf16[800,64], index: 1, kind: input, shape index: {}]
  %s2 = inlined_call_operand.vmem [shape: f32[1,64], index: 2, kind: input, shape index: {}]
  %s3 = inlined_call_operand.vmem [shape: f32[1,64], index: 3, kind: input, shape index: {}]
  %s4 = inlined_call_operand.vmem [shape: f32[1,64], index: 4, kind: input, shape index: {}]
  %s5 = inlined_call_operand.vmem [shape: f32[1,64], index: 5, kind: input, shape index: {}]
  %s6 = inlined_call_operand.<no memory space> [shape: f32[1,1], index: 6, kind: input, shape index: {}]
  %s7 = inlined_call_operand.vmem [shape: f32[8,1], index: 7, kind: output, shape index: {}]
  %s8 = sld [smem:[#allocation0]]
  $region77: #{discriminator_forward.5} parent=0
    _
  %s10 = ssub.s32 1, %s8
  %s11 = scalar_select 0, %s10, %s8
  %v12 = vstv %s6
  %13 = vst [vmem:[#allocation4] sm:$0x1] %v12
  loop: start=0, step=1, limit=4
  $region2: #{discriminator_forward.5} parent=0 // loop_pre_header
    _
  $region3: #{discriminator_forward.5} parent=0 // loop_header
    %s15 = sphi 0, %s19
    %p16 = scmp.ge.s32.totalorder %s15, 4
    %s22 = sphi 0, %s34
    %s23 = sphi 0, %s30
    %s24 = sphi 0, %s22
    %s25 = sphi 0, %s23
    %s26 = sphi 0, %s24
    %s27 = sphi 0, %s25
    %s37 = sphi 0, %s39
    %s40 = sphi 0, %s37
    %s41 = sphi 0, %s40
    %s57 = sphi 0, %s41
    %s61 = sphi 0, %s61
    %s63 = sphi 0, %s61
    %s64 = sphi 0, %s63
    %s78 = sphi 0, %s64
    %s82 = sphi 0, %s82
    %s84 = sphi 0, %s82
    %s85 = sphi 0, %s84
    %s99 = sphi 0, %s85
    %s103 = sphi 0, %s103
    %s105 = sphi 0, %s103
    %s106 = sphi 0, %s105
    %s120 = sphi 0, %s106
    %s124 = sphi 0, %s124
    %s126 = sphi 0, %s124
    %s127 = sphi 0, %s126
    %s141 = sphi 0, %s127
    %s145 = sphi 0, %s145
    %s147 = sphi 0, %s145
    %s148 = sphi 0, %s147
    %s162 = sphi 0, %s148
    %s166 = sphi 0, %s166
    %s168 = sphi 0, %s166
    %s169 = sphi 0, %s168
    %s183 = sphi 0, %s169
    %s189 = sphi 0, %s191
    %s192 = sphi 0, %s189
    %s193 = sphi 0, %s192
    %s209 = sphi 0, %s193
  $region4: #{discriminator_forward.5} parent=0 // loop_header_branch
    %18 = sbr.rel (%p16) target = $region8
  $region5: #{discriminator_forward.5} parent=0 // loop_body
    %s20 = ssub.s32 %s15, 1
    %s21 = ssub.s32 %s15, 2
    %s28 = sadd.s32 1, %s23
    %p29 = scmp.ge.s32.totalorder %s28, 1
    %s30 = scalar_select %p29, 0, %s28
    %s31 = sadd.s32 1, %s22
    %s32 = scalar_select %p29, %s31, %s22
    %p33 = scmp.ge.s32.totalorder %s32, 2
    %s34 = scalar_select %p33, 0, %s32
    %s35 = ssub.s32 %s23, %s30
    %p36 = scmp.eq.s32.totalorder %s35, 0
    %s38 = sadd.s32 %s37, 1
    %s39 = scalar_select %p36, %s37, %s38
    %p42 = pneg %p36
    %p43 = scmp.eq.s32.totalorder %s15, 1
    %p44 = por %p42, %p43
    %p45 = scmp.ne.s32.totalorder %s37, %s40
    %p46 = scmp.eq.s32.totalorder %s15, 0
    %p47 = por %p45, %p46
    %p48 = scmp.ne.s32.totalorder %s37, %s40
    %p49 = scmp.eq.s32.totalorder %s20, 1
    %p50 = por %p48, %p49
    %p51 = scmp.ne.s32.totalorder %s40, %s41
    %p52 = scmp.eq.s32.totalorder %s20, 0
    %p53 = por %p51, %p52
    %p54 = scmp.ne.s32.totalorder %s40, %s41
    %p55 = scmp.eq.s32.totalorder %s21, 1
    %p56 = por %p54, %p55
    %p58 = scmp.ne.s32.totalorder %s41, %s57
    %p59 = scmp.eq.s32.totalorder %s21, 0
    %p60 = por %p58, %p59
    %s62 = sadd.s32 %s61, 1
    %p65 = scmp.eq.s32.totalorder %s15, 1
    %p66 = scmp.ne.s32.totalorder %s61, %s63
    %p67 = scmp.eq.s32.totalorder %s15, 0
    %p68 = por %p66, %p67
    %p69 = scmp.ne.s32.totalorder %s61, %s63
    %p70 = scmp.eq.s32.totalorder %s20, 1
    %p71 = por %p69, %p70
    %p72 = scmp.ne.s32.totalorder %s63, %s64
    %p73 = scmp.eq.s32.totalorder %s20, 0
    %p74 = por %p72, %p73
    %p75 = scmp.ne.s32.totalorder %s63, %s64
    %p76 = scmp.eq.s32.totalorder %s21, 1
    %p77 = por %p75, %p76
    %p79 = scmp.ne.s32.totalorder %s64, %s78
    %p80 = scmp.eq.s32.totalorder %s21, 0
    %p81 = por %p79, %p80
    %s83 = sadd.s32 %s82, 1
    %p86 = scmp.eq.s32.totalorder %s15, 1
    %p87 = scmp.ne.s32.totalorder %s82, %s84
    %p88 = scmp.eq.s32.totalorder %s15, 0
    %p89 = por %p87, %p88
    %p90 = scmp.ne.s32.totalorder %s82, %s84
    %p91 = scmp.eq.s32.totalorder %s20, 1
    %p92 = por %p90, %p91
    %p93 = scmp.ne.s32.totalorder %s84, %s85
    %p94 = scmp.eq.s32.totalorder %s20, 0
    %p95 = por %p93, %p94
    %p96 = scmp.ne.s32.totalorder %s84, %s85
    %p97 = scmp.eq.s32.totalorder %s21, 1
    %p98 = por %p96, %p97
    %p100 = scmp.ne.s32.totalorder %s85, %s99
    %p101 = scmp.eq.s32.totalorder %s21, 0
    %p102 = por %p100, %p101
    %s104 = sadd.s32 %s103, 1
    %p107 = scmp.eq.s32.totalorder %s15, 1
    %p108 = scmp.ne.s32.totalorder %s103, %s105
    %p109 = scmp.eq.s32.totalorder %s15, 0
    %p110 = por %p108, %p109
    %p111 = scmp.ne.s32.totalorder %s103, %s105
    %p112 = scmp.eq.s32.totalorder %s20, 1
    %p113 = por %p111, %p112
    %p114 = scmp.ne.s32.totalorder %s105, %s106
    %p115 = scmp.eq.s32.totalorder %s20, 0
    %p116 = por %p114, %p115
    %p117 = scmp.ne.s32.totalorder %s105, %s106
    %p118 = scmp.eq.s32.totalorder %s21, 1
    %p119 = por %p117, %p118
    %p121 = scmp.ne.s32.totalorder %s106, %s120
    %p122 = scmp.eq.s32.totalorder %s21, 0
    %p123 = por %p121, %p122
    %s125 = sadd.s32 %s124, 1
    %p128 = scmp.eq.s32.totalorder %s15, 1
    %p129 = scmp.ne.s32.totalorder %s124, %s126
    %p130 = scmp.eq.s32.totalorder %s15, 0
    %p131 = por %p129, %p130
    %p132 = scmp.ne.s32.totalorder %s124, %s126
    %p133 = scmp.eq.s32.totalorder %s20, 1
    %p134 = por %p132, %p133
    %p135 = scmp.ne.s32.totalorder %s126, %s127
    %p136 = scmp.eq.s32.totalorder %s20, 0
    %p137 = por %p135, %p136
    %p138 = scmp.ne.s32.totalorder %s126, %s127
    %p139 = scmp.eq.s32.totalorder %s21, 1
    %p140 = por %p138, %p139
    %p142 = scmp.ne.s32.totalorder %s127, %s141
    %p143 = scmp.eq.s32.totalorder %s21, 0
    %p144 = por %p142, %p143
    %s146 = sadd.s32 %s145, 1
    %p149 = scmp.eq.s32.totalorder %s15, 1
    %p150 = scmp.ne.s32.totalorder %s145, %s147
    %p151 = scmp.eq.s32.totalorder %s15, 0
    %p152 = por %p150, %p151
    %p153 = scmp.ne.s32.totalorder %s145, %s147
    %p154 = scmp.eq.s32.totalorder %s20, 1
    %p155 = por %p153, %p154
    %p156 = scmp.ne.s32.totalorder %s147, %s148
    %p157 = scmp.eq.s32.totalorder %s20, 0
    %p158 = por %p156, %p157
    %p159 = scmp.ne.s32.totalorder %s147, %s148
    %p160 = scmp.eq.s32.totalorder %s21, 1
    %p161 = por %p159, %p160
    %p163 = scmp.ne.s32.totalorder %s148, %s162
    %p164 = scmp.eq.s32.totalorder %s21, 0
    %p165 = por %p163, %p164
    %s167 = sadd.s32 %s166, 1
    %p170 = scmp.eq.s32.totalorder %s15, 1
    %p171 = scmp.ne.s32.totalorder %s166, %s168
    %p172 = scmp.eq.s32.totalorder %s15, 0
    %p173 = por %p171, %p172
    %p174 = scmp.ne.s32.totalorder %s166, %s168
    %p175 = scmp.eq.s32.totalorder %s20, 1
    %p176 = por %p174, %p175
    %p177 = scmp.ne.s32.totalorder %s168, %s169
    %p178 = scmp.eq.s32.totalorder %s20, 0
    %p179 = por %p177, %p178
    %p180 = scmp.ne.s32.totalorder %s168, %s169
    %p181 = scmp.eq.s32.totalorder %s21, 1
    %p182 = por %p180, %p181
    %p184 = scmp.ne.s32.totalorder %s169, %s183
    %p185 = scmp.eq.s32.totalorder %s21, 0
    %p186 = por %p184, %p185
    %s187 = ssub.s32 %s23, %s30
    %p188 = scmp.eq.s32.totalorder %s187, 0
    %s190 = sadd.s32 %s189, 1
    %s191 = scalar_select %p188, %s189, %s190
    %p194 = pneg %p188
    %p195 = scmp.eq.s32.totalorder %s15, 1
    %p196 = por %p194, %p195
    %p197 = scmp.ne.s32.totalorder %s189, %s192
    %p198 = scmp.eq.s32.totalorder %s15, 0
    %p199 = por %p197, %p198
    %p200 = scmp.ne.s32.totalorder %s189, %s192
    %p201 = scmp.eq.s32.totalorder %s20, 1
    %p202 = por %p200, %p201
    %p203 = scmp.ne.s32.totalorder %s192, %s193
    %p204 = scmp.eq.s32.totalorder %s20, 0
    %p205 = por %p203, %p204
    %p206 = scmp.ne.s32.totalorder %s192, %s193
    %p207 = scmp.eq.s32.totalorder %s21, 1
    %p208 = por %p206, %p207
    %p210 = scmp.ne.s32.totalorder %s193, %s209
    %p211 = scmp.eq.s32.totalorder %s21, 0
    %p212 = por %p210, %p211
    %p213 = scmp.le.s32.totalorder 1, %s15
    %p214 = scmp.lt.s32.totalorder %s15, 3
    %p215 = pnand %p213, %p214
    %p216 = pneg %p215
    // Predicated region
    $region9: #{discriminator_forward.5} parent=5 // pred_check
      _
    $region10: #{discriminator_forward.5} parent=5 // pred_check_branch
      %218 = sbr.rel (%p215) target = $region12
    $region11: #{discriminator_forward.5} parent=5 // pred_region
      %s219 = ssub.s32 %s15, 1
      // Predicated region
      $region13: #{discriminator_forward.5} parent=11 // pred_check
        %p220 = pneg %p53
      $region14: #{discriminator_forward.5} parent=11 // pred_check_branch
        %222 = sbr.rel (%p220) target = $region16
      $region15: #{discriminator_forward.5} parent=11 // pred_region
        %p223 = scmp.lt.s32.totalorder %s25, 0
        %s224 = scalar_select %p223, %s25, 0
        %s225 = smul.addr %s224, 7
        %s226 = smul.addr %s225, 4
        %s227 = scalar_lea.vmem %s0, %s226
      $region16: #{discriminator_forward.5} parent=11 // pred_fallthru
        _
      // Predicated region
      $region17: #{discriminator_forward.5} parent=11 // pred_check
        %p228 = pneg %p74
      $region18: #{discriminator_forward.5} parent=11 // pred_check_branch
        %230 = sbr.rel (%p228) target = $region20
      $region19: #{discriminator_forward.5} parent=11 // pred_region
        _
      $region20: #{discriminator_forward.5} parent=11 // pred_fallthru
        _
      // Predicated region
      $region21: #{discriminator_forward.5} parent=11 // pred_check
        %p231 = pneg %p95
      $region22: #{discriminator_forward.5} parent=11 // pred_check_branch
        %233 = sbr.rel (%p231) target = $region24
      $region23: #{discriminator_forward.5} parent=11 // pred_region
        _
      $region24: #{discriminator_forward.5} parent=11 // pred_fallthru
        _
      // Predicated region
      $region25: #{discriminator_forward.5} parent=11 // pred_check
        %p234 = pneg %p116
      $region26: #{discriminator_forward.5} parent=11 // pred_check_branch
        %236 = sbr.rel (%p234) target = $region28
      $region27: #{discriminator_forward.5} parent=11 // pred_region
        _
      $region28: #{discriminator_forward.5} parent=11 // pred_fallthru
        _
      // Predicated region
      $region29: #{discriminator_forward.5} parent=11 // pred_check
        %p237 = pneg %p137
      $region30: #{discriminator_forward.5} parent=11 // pred_check_branch
        %239 = sbr.rel (%p237) target = $region32
      $region31: #{discriminator_forward.5} parent=11 // pred_region
        _
      $region32: #{discriminator_forward.5} parent=11 // pred_fallthru
        _
      // Predicated region
      $region33: #{discriminator_forward.5} parent=11 // pred_check
        %p240 = pneg %p158
      $region34: #{discriminator_forward.5} parent=11 // pred_check_branch
        %242 = sbr.rel (%p240) target = $region36
      $region35: #{discriminator_forward.5} parent=11 // pred_region
        _
      $region36: #{discriminator_forward.5} parent=11 // pred_fallthru
        _
      // Predicated region
      $region37: #{discriminator_forward.5} parent=11 // pred_check
        %p243 = pneg %p179
      $region38: #{discriminator_forward.5} parent=11 // pred_check_branch
        %245 = sbr.rel (%p243) target = $region40
      $region39: #{discriminator_forward.5} parent=11 // pred_region
        _
      $region40: #{discriminator_forward.5} parent=11 // pred_fallthru
        _
    $region12: #{discriminator_forward.5} parent=5 // pred_fallthru
      _
    %p246 = scmp.lt.s32.totalorder %s15, 2
    // Predicated region
    $region41: #{discriminator_forward.5} parent=5 // pred_check
      %p247 = pneg %p246
    $region42: #{discriminator_forward.5} parent=5 // pred_check_branch
      %249 = sbr.rel (%p247) target = $region44
    $region43: #{discriminator_forward.5} parent=5 // pred_region
      _
    $region44: #{discriminator_forward.5} parent=5 // pred_fallthru
      _
    %p250 = scmp.le.s32.totalorder 1, %s15
    %p251 = scmp.lt.s32.totalorder %s15, 3
    %p252 = pnand %p250, %p251
    %p253 = pneg %p252
    // Predicated region
    $region45: #{discriminator_forward.5} parent=5 // pred_check
      _
    $region46: #{discriminator_forward.5} parent=5 // pred_check_branch
      %255 = sbr.rel (%p252) target = $region48
    $region47: #{discriminator_forward.5} parent=5 // pred_region
      %s256 = ssub.s32 %s15, 1
      %p257 = scmp.lt.s32.totalorder %s25, 0
      %s258 = scalar_select %p257, %s25, 0
      %s259 = smul.addr %s258, 7
      %s260 = smul.addr %s259, 4
      %s261 = scalar_lea.vmem %s0, %s260
      %p262 = pneg %p53
      %p263 = pneg %p50
      %p264 = pneg %p74
      %p265 = pneg %p71
      %p266 = pneg %p95
      %p267 = pneg %p92
      %p268 = pneg %p116
      %p269 = pneg %p113
      %p270 = pneg %p137
      %p271 = pneg %p134
      %p272 = pneg %p158
      %p273 = pneg %p155
      %p274 = pneg %p179
      %p275 = pneg %p176
      %p276 = pneg %p205
      %p277 = pneg %p202
      %p278 = scmp.lt.s32.totalorder %s25, 0
      %s279 = scalar_select %p278, %s25, 0
      %s280 = smul.addr %s279, 8
      %s281 = scalar_lea.vmem %s7, %s280
      %p282 = scmp.lt.s32.totalorder %s25, 0
      %s283 = scalar_select %p282, %s25, 0
      %s284 = smul.addr %s283, 7
      %s285 = smul.addr %s284, 4
      %s286 = scalar_lea.vmem %s0, %s285
      %p287 = scmp.lt.s32.totalorder %s25, 0
      %s288 = scalar_select %p287, %s25, 0
      %s289 = smul.addr %s288, 8
      %s290 = scalar_lea.vmem %s7, %s289
      %v292 = vld [vmem:[%s286] sm:$0xff]
      %v293 = vld [vmem:[%s286 + $0x8] sm:$0xff]
      %v294 = vld [vmem:[%s286 + $0x10] sm:$0xff]
      %v295 = vld [vmem:[%s286 + $0x18] sm:$0xf]
      %v296 = vld [vmem:[%s1] sm:$0xf]
      %v297 = vld [vmem:[%s1 + $0x4] sm:$0xf]
      %v298 = vld [vmem:[%s1 + $0x8] sm:$0xf]
      %v299 = vld [vmem:[%s1 + $0xc] sm:$0xf]
      %v300 = vld [vmem:[%s1 + $0x10] sm:$0xf]
      %v301 = vld [vmem:[%s1 + $0x14] sm:$0xf]
      %v302 = vld [vmem:[%s1 + $0x18] sm:$0xf]
      %v303 = vld [vmem:[%s1 + $0x1c] sm:$0xf]
      %v304 = vld [vmem:[%s1 + $0x20] sm:$0xf]
      %v305 = vld [vmem:[%s1 + $0x24] sm:$0xf]
      %v306 = vld [vmem:[%s1 + $0x28] sm:$0xf]
      %v307 = vld [vmem:[%s1 + $0x2c] sm:$0xf]
      %v308 = vld [vmem:[%s1 + $0x30] sm:$0xf]
      %v309 = vld [vmem:[%s1 + $0x34] sm:$0xf]
      %v310 = vld [vmem:[%s1 + $0x38] sm:$0xf]
      %v311 = vld [vmem:[%s1 + $0x3c] sm:$0xf]
      %v312 = vld [vmem:[%s1 + $0x40] sm:$0xf]
      %v313 = vld [vmem:[%s1 + $0x44] sm:$0xf]
      %v314 = vld [vmem:[%s1 + $0x48] sm:$0xf]
      %v315 = vld [vmem:[%s1 + $0x4c] sm:$0xf]
      %v316 = vld [vmem:[%s1 + $0x50] sm:$0xf]
      %v317 = vld [vmem:[%s1 + $0x54] sm:$0xf]
      %v318 = vld [vmem:[%s1 + $0x58] sm:$0xf]
      %v319 = vld [vmem:[%s1 + $0x5c] sm:$0xf]
      %v320 = vld [vmem:[%s1 + $0x60] sm:$0xf]
      %v321 = vld [vmem:[%s1 + $0x64] sm:$0xf]
      %v322 = vld [vmem:[%s1 + $0x68] sm:$0xf]
      %v323 = vld [vmem:[%s1 + $0x6c] sm:$0xf]
      %v324 = vld [vmem:[%s1 + $0x70] sm:$0xf]
      %v325 = vld [vmem:[%s1 + $0x74] sm:$0xf]
      %v326 = vld [vmem:[%s1 + $0x78] sm:$0xf]
      %v327 = vld [vmem:[%s1 + $0x7c] sm:$0xf]
      %v328 = vld [vmem:[%s1 + $0x80] sm:$0xf]
      %v329 = vld [vmem:[%s1 + $0x84] sm:$0xf]
      %v330 = vld [vmem:[%s1 + $0x88] sm:$0xf]
      %v331 = vld [vmem:[%s1 + $0x8c] sm:$0xf]
      %v332 = vld [vmem:[%s1 + $0x90] sm:$0xf]
      %v333 = vld [vmem:[%s1 + $0x94] sm:$0xf]
      %v334 = vld [vmem:[%s1 + $0x98] sm:$0xf]
      %v335 = vld [vmem:[%s1 + $0x9c] sm:$0xf]
      %v336 = vld [vmem:[%s1 + $0xa0] sm:$0xf]
      %v337 = vld [vmem:[%s1 + $0xa4] sm:$0xf]
      %v338 = vld [vmem:[%s1 + $0xa8] sm:$0xf]
      %v339 = vld [vmem:[%s1 + $0xac] sm:$0xf]
      %v340 = vld [vmem:[%s1 + $0xb0] sm:$0xf]
      %v341 = vld [vmem:[%s1 + $0xb4] sm:$0xf]
      %v342 = vld [vmem:[%s1 + $0xb8] sm:$0xf]
      %v343 = vld [vmem:[%s1 + $0xbc] sm:$0xf]
      %v344 = vld [vmem:[%s1 + $0xc0] sm:$0xf]
      %v345 = vld [vmem:[%s1 + $0xc4] sm:$0xf]
      %v346 = vld [vmem:[%s1 + $0xc8] sm:$0xf]
      %v347 = vld [vmem:[%s1 + $0xcc] sm:$0xf]
      %v348 = vld [vmem:[%s1 + $0xd0] sm:$0xf]
      %v349 = vld [vmem:[%s1 + $0xd4] sm:$0xf]
      %v350 = vld [vmem:[%s1 + $0xd8] sm:$0xf]
      %v351 = vld [vmem:[%s1 + $0xdc] sm:$0xf]
      %v352 = vld [vmem:[%s1 + $0xe0] sm:$0xf]
      %v353 = vld [vmem:[%s1 + $0xe4] sm:$0xf]
      %v354 = vld [vmem:[%s1 + $0xe8] sm:$0xf]
      %v355 = vld [vmem:[%s1 + $0xec] sm:$0xf]
      %v356 = vld [vmem:[%s1 + $0xf0] sm:$0xf]
      %v357 = vld [vmem:[%s1 + $0xf4] sm:$0xf]
      %v358 = vld [vmem:[%s1 + $0xf8] sm:$0xf]
      %v359 = vld [vmem:[%s1 + $0xfc] sm:$0xf]
      %v360 = vld [vmem:[%s1 + $0x100] sm:$0xf]
      %v361 = vld [vmem:[%s1 + $0x104] sm:$0xf]
      %v362 = vld [vmem:[%s1 + $0x108] sm:$0xf]
      %v363 = vld [vmem:[%s1 + $0x10c] sm:$0xf]
      %v364 = vld [vmem:[%s1 + $0x110] sm:$0xf]
      %v365 = vld [vmem:[%s1 + $0x114] sm:$0xf]
      %v366 = vld [vmem:[%s1 + $0x118] sm:$0xf]
      %v367 = vld [vmem:[%s1 + $0x11c] sm:$0xf]
      %v368 = vld [vmem:[%s1 + $0x120] sm:$0xf]
      %v369 = vld [vmem:[%s1 + $0x124] sm:$0xf]
      %v370 = vld [vmem:[%s1 + $0x128] sm:$0xf]
      %v371 = vld [vmem:[%s1 + $0x12c] sm:$0xf]
      %v372 = vld [vmem:[%s1 + $0x130] sm:$0xf]
      %v373 = vld [vmem:[%s1 + $0x134] sm:$0xf]
      %v374 = vld [vmem:[%s1 + $0x138] sm:$0xf]
      %v375 = vld [vmem:[%s1 + $0x13c] sm:$0xf]
      %v376 = vld [vmem:[%s1 + $0x140] sm:$0xf]
      %v377 = vld [vmem:[%s1 + $0x144] sm:$0xf]
      %v378 = vld [vmem:[%s1 + $0x148] sm:$0xf]
      %v379 = vld [vmem:[%s1 + $0x14c] sm:$0xf]
      %v380 = vld [vmem:[%s1 + $0x150] sm:$0xf]
      %v381 = vld [vmem:[%s1 + $0x154] sm:$0xf]
      %v382 = vld [vmem:[%s1 + $0x158] sm:$0xf]
      %v383 = vld [vmem:[%s1 + $0x15c] sm:$0xf]
      %v384 = vld [vmem:[%s1 + $0x160] sm:$0xf]
      %v385 = vld [vmem:[%s1 + $0x164] sm:$0xf]
      %v386 = vld [vmem:[%s1 + $0x168] sm:$0xf]
      %v387 = vld [vmem:[%s1 + $0x16c] sm:$0xf]
      %v388 = vld [vmem:[%s1 + $0x170] sm:$0xf]
      %v389 = vld [vmem:[%s1 + $0x174] sm:$0xf]
      %v390 = vld [vmem:[%s1 + $0x178] sm:$0xf]
      %v391 = vld [vmem:[%s1 + $0x17c] sm:$0xf]
      %v392 = vld [vmem:[%s1 + $0x180] sm:$0xf]
      %v393 = vld [vmem:[%s1 + $0x184] sm:$0xf]
      %v394 = vld [vmem:[%s1 + $0x188] sm:$0xf]
      %v395 = vld [vmem:[%s1 + $0x18c] sm:$0xf]
      %v396 = vld [vmem:[%s2] sm:$0x1]
      %v398 = vlaneseq
      %v399 = vshrl.u32 %v398, 7
      %v400 = vsub.s32 0, %v399
      %v401 = vrot.slane %v396, %v400
      %v407 = vunpack.c.l.b16 %v292
      %v408 = vunpack.c.h.b16 %v292
      %v409 = vunpack.c.l.b16 %v293
      %v410 = vunpack.c.h.b16 %v293
      %v411 = vunpack.c.l.b16 %v294
      %v412 = vunpack.c.h.b16 %v294
      %v413 = vunpack.c.l.b16 %v295
      %v414 = vpack.c.b16 %v407, %v407
      %v415 = vpack.c.b16 %v408, %v408
      %v416 = vpack.c.b16 %v409, %v409
      %v417 = vpack.c.b16 %v410, %v410
      %v418 = vpack.c.b16 %v411, %v411
      %v419 = vpack.c.b16 %v412, %v412
      %v420 = vpack.c.b16 %v413, %v413
      %v527 = vunpack.c.l.b16 %v296
      %v528 = vunpack.c.l.b16 %v297
      %v529 = vunpack.c.l.b16 %v298
      %v530 = vunpack.c.l.b16 %v299
      %v531 = vunpack.c.l.b16 %v300
      %v532 = vunpack.c.l.b16 %v301
      %v533 = vunpack.c.l.b16 %v302
      %v534 = vunpack.c.l.b16 %v303
      %v535 = vunpack.c.l.b16 %v304
      %v536 = vunpack.c.l.b16 %v305
      %v537 = vunpack.c.l.b16 %v306
      %v538 = vunpack.c.l.b16 %v307
      %v539 = vunpack.c.l.b16 %v308
      %v540 = vunpack.c.l.b16 %v309
      %v541 = vunpack.c.l.b16 %v310
      %v542 = vunpack.c.l.b16 %v311
      %v543 = vunpack.c.l.b16 %v312
      %v544 = vunpack.c.l.b16 %v313
      %v545 = vunpack.c.l.b16 %v314
      %v546 = vunpack.c.l.b16 %v315
      %v547 = vunpack.c.l.b16 %v316
      %v548 = vunpack.c.l.b16 %v317
      %v549 = vunpack.c.l.b16 %v318
      %v550 = vunpack.c.l.b16 %v319
      %v551 = vunpack.c.l.b16 %v320
      %v552 = vunpack.c.l.b16 %v321
      %v553 = vunpack.c.l.b16 %v322
      %v554 = vunpack.c.l.b16 %v323
      %v555 = vunpack.c.l.b16 %v324
      %v556 = vunpack.c.l.b16 %v325
      %v557 = vunpack.c.l.b16 %v326
      %v558 = vunpack.c.l.b16 %v327
      %v559 = vunpack.c.l.b16 %v328
      %v560 = vunpack.c.l.b16 %v329
      %v561 = vunpack.c.l.b16 %v330
      %v562 = vunpack.c.l.b16 %v331
      %v563 = vunpack.c.l.b16 %v332
      %v564 = vunpack.c.l.b16 %v333
      %v565 = vunpack.c.l.b16 %v334
      %v566 = vunpack.c.l.b16 %v335
      %v567 = vunpack.c.l.b16 %v336
      %v568 = vunpack.c.l.b16 %v337
      %v569 = vunpack.c.l.b16 %v338
      %v570 = vunpack.c.l.b16 %v339
      %v571 = vunpack.c.l.b16 %v340
      %v572 = vunpack.c.l.b16 %v341
      %v573 = vunpack.c.l.b16 %v342
      %v574 = vunpack.c.l.b16 %v343
      %v575 = vunpack.c.l.b16 %v344
      %v576 = vunpack.c.l.b16 %v345
      %v577 = vunpack.c.l.b16 %v346
      %v578 = vunpack.c.l.b16 %v347
      %v579 = vunpack.c.l.b16 %v348
      %v580 = vunpack.c.l.b16 %v349
      %v581 = vunpack.c.l.b16 %v350
      %v582 = vunpack.c.l.b16 %v351
      %v583 = vunpack.c.l.b16 %v352
      %v584 = vunpack.c.l.b16 %v353
      %v585 = vunpack.c.l.b16 %v354
      %v586 = vunpack.c.l.b16 %v355
      %v587 = vunpack.c.l.b16 %v356
      %v588 = vunpack.c.l.b16 %v357
      %v589 = vunpack.c.l.b16 %v358
      %v590 = vunpack.c.l.b16 %v359
      %v591 = vunpack.c.l.b16 %v360
      %v592 = vunpack.c.l.b16 %v361
      %v593 = vunpack.c.l.b16 %v362
      %v594 = vunpack.c.l.b16 %v363
      %v595 = vunpack.c.l.b16 %v364
      %v596 = vunpack.c.l.b16 %v365
      %v597 = vunpack.c.l.b16 %v366
      %v598 = vunpack.c.l.b16 %v367
      %v599 = vunpack.c.l.b16 %v368
      %v600 = vunpack.c.l.b16 %v369
      %v601 = vunpack.c.l.b16 %v370
      %v602 = vunpack.c.l.b16 %v371
      %v603 = vunpack.c.l.b16 %v372
      %v604 = vunpack.c.l.b16 %v373
      %v605 = vunpack.c.l.b16 %v374
      %v606 = vunpack.c.l.b16 %v375
      %v607 = vunpack.c.l.b16 %v376
      %v608 = vunpack.c.l.b16 %v377
      %v609 = vunpack.c.l.b16 %v378
      %v610 = vunpack.c.l.b16 %v379
      %v611 = vunpack.c.l.b16 %v380
      %v612 = vunpack.c.l.b16 %v381
      %v613 = vunpack.c.l.b16 %v382
      %v614 = vunpack.c.l.b16 %v383
      %v615 = vunpack.c.l.b16 %v384
      %v616 = vunpack.c.l.b16 %v385
      %v617 = vunpack.c.l.b16 %v386
      %v618 = vunpack.c.l.b16 %v387
      %v619 = vunpack.c.l.b16 %v388
      %v620 = vunpack.c.l.b16 %v389
      %v621 = vunpack.c.l.b16 %v390
      %v622 = vunpack.c.l.b16 %v391
      %v623 = vunpack.c.l.b16 %v392
      %v624 = vunpack.c.l.b16 %v393
      %v625 = vunpack.c.l.b16 %v394
      %v626 = vunpack.c.l.b16 %v395
      %v627 = vpack.c.b16 %v528, %v527
      %v628 = vpack.c.b16 %v530, %v529
      %v629 = vpack.c.b16 %v532, %v531
      %v630 = vpack.c.b16 %v534, %v533
      %v631 = vpack.c.b16 %v536, %v535
      %v632 = vpack.c.b16 %v538, %v537
      %v633 = vpack.c.b16 %v540, %v539
      %v634 = vpack.c.b16 %v542, %v541
      %v635 = vpack.c.b16 %v544, %v543
      %v636 = vpack.c.b16 %v546, %v545
      %v637 = vpack.c.b16 %v548, %v547
      %v638 = vpack.c.b16 %v550, %v549
      %v639 = vpack.c.b16 %v552, %v551
      %v640 = vpack.c.b16 %v554, %v553
      %v641 = vpack.c.b16 %v556, %v555
      %v642 = vpack.c.b16 %v558, %v557
      %v643 = vpack.c.b16 %v560, %v559
      %v644 = vpack.c.b16 %v562, %v561
      %v645 = vpack.c.b16 %v564, %v563
      %v646 = vpack.c.b16 %v566, %v565
      %v647 = vpack.c.b16 %v568, %v567
      %v648 = vpack.c.b16 %v570, %v569
      %v649 = vpack.c.b16 %v572, %v571
      %v650 = vpack.c.b16 %v574, %v573
      %v651 = vpack.c.b16 %v576, %v575
      %v652 = vpack.c.b16 %v578, %v577
      %v653 = vpack.c.b16 %v580, %v579
      %v654 = vpack.c.b16 %v582, %v581
      %v655 = vpack.c.b16 %v584, %v583
      %v656 = vpack.c.b16 %v586, %v585
      %v657 = vpack.c.b16 %v588, %v587
      %v658 = vpack.c.b16 %v590, %v589
      %v659 = vpack.c.b16 %v592, %v591
      %v660 = vpack.c.b16 %v594, %v593
      %v661 = vpack.c.b16 %v596, %v595
      %v662 = vpack.c.b16 %v598, %v597
      %v663 = vpack.c.b16 %v600, %v599
      %v664 = vpack.c.b16 %v602, %v601
      %v665 = vpack.c.b16 %v604, %v603
      %v666 = vpack.c.b16 %v606, %v605
      %v667 = vpack.c.b16 %v608, %v607
      %v668 = vpack.c.b16 %v610, %v609
      %v669 = vpack.c.b16 %v612, %v611
      %v670 = vpack.c.b16 %v614, %v613
      %v671 = vpack.c.b16 %v616, %v615
      %v672 = vpack.c.b16 %v618, %v617
      %v673 = vpack.c.b16 %v620, %v619
      %v674 = vpack.c.b16 %v622, %v621
      %v675 = vpack.c.b16 %v624, %v623
      %v676 = vpack.c.b16 %v626, %v625
      %vm727 = vcmask 261120
      %v729 = vsel %vm727, %v420, 0
      %731 = vmatprep.subr.bf16.mxu0 0
      %732 = vmatpush1.bf16.msra.mxu0 %v627
      %733 = vmatprep.subr.bf16.mxu0 0
      %734 = vmatpush1.bf16.msra.mxu0 %v628
      %735 = vmatprep.subr.bf16.mxu0 0
      %736 = vmatpush1.bf16.msra.mxu0 %v629
      %737 = vmatprep.subr.bf16.mxu0 0
      %738 = vmatpush1.bf16.msra.mxu0 %v630
      %739 = vmatprep.subr.bf16.mxu0 0
      %740 = vmatpush1.bf16.msra.mxu0 %v631
      %741 = vmatprep.subr.bf16.mxu0 0
      %742 = vmatpush1.bf16.msra.mxu0 %v632
      %743 = vmatprep.subr.bf16.mxu0 0
      %744 = vmatpush1.bf16.msra.mxu0 %v633
      %745 = vmatprep.subr.bf16.mxu0 0
      %746 = vmatpush1.bf16.msra.mxu0 %v634
      %747 = vmatprep.subr.bf16.mxu0 0
      %748 = vmatpush1.bf16.msra.mxu0 %v635
      %749 = vmatprep.subr.bf16.mxu0 0
      %750 = vmatpush1.bf16.msra.mxu0 %v636
      %751 = vmatprep.subr.bf16.mxu0 0
      %752 = vmatpush1.bf16.msra.mxu0 %v637
      %753 = vmatprep.subr.bf16.mxu0 0
      %754 = vmatpush1.bf16.msra.mxu0 %v638
      %755 = vmatprep.subr.bf16.mxu0 0
      %756 = vmatpush1.bf16.msra.mxu0 %v639
      %757 = vmatprep.subr.bf16.mxu0 0
      %758 = vmatpush1.bf16.msra.mxu0 %v640
      %759 = vmatprep.subr.bf16.mxu0 0
      %760 = vmatpush1.bf16.msra.mxu0 %v641
      %761 = vmatprep.subr.bf16.mxu0 0
      %762 = vmatpush1.bf16.msra.mxu0 %v642
      %763 = vmatprep.mubr.bf16.mxu0 %v415
      %764 = vmatmul.mubr.bf16.gmra.mrb[0].mxu0 %v414
      %v765 = vpop.f32.mrb[0].mxu0
      %v766 = vadd.f32 %v401, %v765
      %v767 = vpop.f32.mrb[0].mxu0
      %v768 = vpop.f32.mrb[0].mxu0
      %v769 = vpop.f32.mrb[0].mxu0
      %770 = vdwg.mxu0
      %771 = vmatprep.subr.bf16.mxu0 0
      %772 = vmatpush1.bf16.msra.mxu0 %v643
      %773 = vmatprep.subr.bf16.mxu0 0
      %774 = vmatpush1.bf16.msra.mxu0 %v644
      %775 = vmatprep.subr.bf16.mxu0 0
      %776 = vmatpush1.bf16.msra.mxu0 %v645
      %777 = vmatprep.subr.bf16.mxu0 0
      %778 = vmatpush1.bf16.msra.mxu0 %v646
      %779 = vmatprep.subr.bf16.mxu0 0
      %780 = vmatpush1.bf16.msra.mxu0 %v647
      %781 = vmatprep.subr.bf16.mxu0 0
      %782 = vmatpush1.bf16.msra.mxu0 %v648
      %783 = vmatprep.subr.bf16.mxu0 0
      %784 = vmatpush1.bf16.msra.mxu0 %v649
      %785 = vmatprep.subr.bf16.mxu0 0
      %786 = vmatpush1.bf16.msra.mxu0 %v650
      %787 = vmatprep.subr.bf16.mxu0 0
      %788 = vmatpush1.bf16.msra.mxu0 %v651
      %789 = vmatprep.subr.bf16.mxu0 0
      %790 = vmatpush1.bf16.msra.mxu0 %v652
      %791 = vmatprep.subr.bf16.mxu0 0
      %792 = vmatpush1.bf16.msra.mxu0 %v653
      %793 = vmatprep.subr.bf16.mxu0 0
      %794 = vmatpush1.bf16.msra.mxu0 %v654
      %795 = vmatprep.subr.bf16.mxu0 0
      %796 = vmatpush1.bf16.msra.mxu0 %v655
      %797 = vmatprep.subr.bf16.mxu0 0
      %798 = vmatpush1.bf16.msra.mxu0 %v656
      %799 = vmatprep.subr.bf16.mxu0 0
      %800 = vmatpush1.bf16.msra.mxu0 %v657
      %801 = vmatprep.subr.bf16.mxu0 0
      %802 = vmatpush1.bf16.msra.mxu0 %v658
      %803 = vmatprep.mubr.bf16.mxu0 %v417
      %804 = vmatmul.mubr.bf16.gmra.mrb[0].mxu0 %v416
      %v805 = vpop.f32.mrb[0].mxu0
      %v806 = vadd.f32 %v766, %v805
      %v807 = vpop.f32.mrb[0].mxu0
      %v808 = vpop.f32.mrb[0].mxu0
      %v809 = vpop.f32.mrb[0].mxu0
      %810 = vdwg.mxu0
      %811 = vmatprep.subr.bf16.mxu0 0
      %812 = vmatpush1.bf16.msra.mxu0 %v659
      %813 = vmatprep.subr.bf16.mxu0 0
      %814 = vmatpush1.bf16.msra.mxu0 %v660
      %815 = vmatprep.subr.bf16.mxu0 0
      %816 = vmatpush1.bf16.msra.mxu0 %v661
      %817 = vmatprep.subr.bf16.mxu0 0
      %818 = vmatpush1.bf16.msra.mxu0 %v662
      %819 = vmatprep.subr.bf16.mxu0 0
      %820 = vmatpush1.bf16.msra.mxu0 %v663
      %821 = vmatprep.subr.bf16.mxu0 0
      %822 = vmatpush1.bf16.msra.mxu0 %v664
      %823 = vmatprep.subr.bf16.mxu0 0
      %824 = vmatpush1.bf16.msra.mxu0 %v665
      %825 = vmatprep.subr.bf16.mxu0 0
      %826 = vmatpush1.bf16.msra.mxu0 %v666
      %827 = vmatprep.subr.bf16.mxu0 0
      %828 = vmatpush1.bf16.msra.mxu0 %v667
      %829 = vmatprep.subr.bf16.mxu0 0
      %830 = vmatpush1.bf16.msra.mxu0 %v668
      %831 = vmatprep.subr.bf16.mxu0 0
      %832 = vmatpush1.bf16.msra.mxu0 %v669
      %833 = vmatprep.subr.bf16.mxu0 0
      %834 = vmatpush1.bf16.msra.mxu0 %v670
      %835 = vmatprep.subr.bf16.mxu0 0
      %836 = vmatpush1.bf16.msra.mxu0 %v671
      %837 = vmatprep.subr.bf16.mxu0 0
      %838 = vmatpush1.bf16.msra.mxu0 %v672
      %839 = vmatprep.subr.bf16.mxu0 0
      %840 = vmatpush1.bf16.msra.mxu0 %v673
      %841 = vmatprep.subr.bf16.mxu0 0
      %842 = vmatpush1.bf16.msra.mxu0 %v674
      %843 = vmatprep.mubr.bf16.mxu0 %v419
      %844 = vmatmul.mubr.bf16.gmra.mrb[0].mxu0 %v418
      %v845 = vpop.f32.mrb[0].mxu0
      %v846 = vadd.f32 %v806, %v845
      %v847 = vpop.f32.mrb[0].mxu0
      %v848 = vpop.f32.mrb[0].mxu0
      %v849 = vpop.f32.mrb[0].mxu0
      %850 = vdwg.mxu0
      %851 = vmatprep.subr.bf16.mxu0 0
      %852 = vmatpush1.bf16.msra.mxu0 %v675
      %853 = vmatprep.subr.bf16.mxu0 0
      %854 = vmatpush1.bf16.msra.mxu0 %v676
      %855 = vmatprep.subr.bf16.mxu0 0
      %856 = vmatpush1.bf16.msra.mxu0 0
      %857 = vmatprep.subr.bf16.mxu0 0
      %858 = vmatpush1.bf16.msra.mxu0 0
      %859 = vmatprep.subr.bf16.mxu0 0
      %860 = vmatpush1.bf16.msra.mxu0 0
      %861 = vmatprep.subr.bf16.mxu0 0
      %862 = vmatpush1.bf16.msra.mxu0 0
      %863 = vmatprep.subr.bf16.mxu0 0
      %864 = vmatpush1.bf16.msra.mxu0 0
      %865 = vmatprep.subr.bf16.mxu0 0
      %866 = vmatpush1.bf16.msra.mxu0 0
      %867 = vmatprep.subr.bf16.mxu0 0
      %868 = vmatpush1.bf16.msra.mxu0 0
      %869 = vmatprep.subr.bf16.mxu0 0
      %870 = vmatpush1.bf16.msra.mxu0 0
      %871 = vmatprep.subr.bf16.mxu0 0
      %872 = vmatpush1.bf16.msra.mxu0 0
      %873 = vmatprep.subr.bf16.mxu0 0
      %874 = vmatpush1.bf16.msra.mxu0 0
      %875 = vmatprep.subr.bf16.mxu0 0
      %876 = vmatpush1.bf16.msra.mxu0 0
      %877 = vmatprep.subr.bf16.mxu0 0
      %878 = vmatpush1.bf16.msra.mxu0 0
      %879 = vmatprep.subr.bf16.mxu0 0
      %880 = vmatpush1.bf16.msra.mxu0 0
      %881 = vmatprep.subr.bf16.mxu0 0
      %882 = vmatpush1.bf16.msra.mxu0 0
      %883 = vmatprep.mubr.bf16.mxu0 0
      %884 = vmatmul.mubr.bf16.gmra.mrb[0].mxu0 %v729
      %v885 = vpop.f32.mrb[0].mxu0
      %v886 = vadd.f32 %v846, %v885
      %v887 = vpop.f32.mrb[0].mxu0
      %v888 = vpop.f32.mrb[0].mxu0
      %v889 = vpop.f32.mrb[0].mxu0
      %890 = vdwg.mxu0
      %p891 = scmp.eq.s32.totalorder %s24, 0
      %p892 = scmp.eq.s32.totalorder %s25, 0
      %p893 = pnand %p891, %p892
      %p894 = pneg %p893
      // Predicated region
      $region49: #{discriminator_forward.5} parent=47 // pred_check
        _
      $region50: #{discriminator_forward.5} parent=47 // pred_check_branch
        %896 = sbr.rel (%p893) target = $region52
      $region51: #{discriminator_forward.5} parent=47 // pred_region
        %vm897 = vcmask 516096
        %898 = vst.msk [vmem:[#allocation2] sm:$0x1] %vm897, 0.0
        %899 = vst.msk [vmem:[#allocation3] sm:$0x1] %vm897, 0.0
      $region52: #{discriminator_forward.5} parent=47 // pred_fallthru
        _
      // Predicated region
      $region53: #{discriminator_forward.5} parent=47 // pred_check
        %p900 = pneg %p891
      $region54: #{discriminator_forward.5} parent=47 // pred_check_branch
        %902 = sbr.rel (%p900) target = $region56
      $region55: #{discriminator_forward.5} parent=47 // pred_region
        %s903 = smul.u32 %s25, 8
        %v904 = vlaneseq
        %v905 = vshrl.u32 %v904, 7
        %v906 = vstv %s903
        %v907 = vadd.s32 %v906, %v905
        %vm908 = vcmp.lt.s32.totalorder %v907, 2
        %v909 = vsel %vm908, 1, 0
        %vm910 = vcmp.eq.s32.totalorder %v909, 1
        %v911 = vsel %vm910, %v886, 0.0
        %v912 = vld [vmem:[#allocation2] sm:$0x1]
        %vm913 = vcmask 523264
        %v914 = vsel %vm913, %v911, 0.0
        %v915 = vrot.slane %v914, 4
        %v916 = vadd.f32 %v914, %v915
        %v917 = vrot.slane %v916, 2
        %v918 = vadd.f32 %v916, %v917
        %v919 = vrot.slane %v918, 1
        %v920 = vadd.f32 %v918, %v919
        %v921 = vadd.f32 %v912, %v920
        %vm922 = vcmask 516096
        %923 = vst.msk [vmem:[#allocation2] sm:$0x1] %vm922, %v921
        %v924 = vld [vmem:[#allocation3] sm:$0x1]
        %v925 = vmul.f32 %v911, %v911
        %v926 = vsel %vm913, %v925, 0.0
        %v927 = vrot.slane %v926, 4
        %v928 = vadd.f32 %v926, %v927
        %v929 = vrot.slane %v928, 2
        %v930 = vadd.f32 %v928, %v929
        %v931 = vrot.slane %v930, 1
        %v932 = vadd.f32 %v930, %v931
        %v933 = vadd.f32 %v924, %v932
        %934 = vst.msk [vmem:[#allocation3] sm:$0x1] %vm922, %v933
      $region56: #{discriminator_forward.5} parent=47 // pred_fallthru
        _
      %p935 = scmp.eq.s32.totalorder %s24, 1
      %p936 = pnand %p935, %p892
      %p937 = pneg %p936
      // Predicated region
      $region57: #{discriminator_forward.5} parent=47 // pred_check
        _
      $region58: #{discriminator_forward.5} parent=47 // pred_check_branch
        %939 = sbr.rel (%p936) target = $region60
      $region59: #{discriminator_forward.5} parent=47 // pred_region
        %v940 = vld [vmem:[#allocation2] sm:$0x1]
        %v941 = vmul.f32 %v940, 0.5
        %v942 = vld [vmem:[#allocation3] sm:$0x1]
        %v943 = vmul.f32 %v942, 0.5
        %v944 = vmul.f32 %v941, %v941
        %v945 = vsub.f32 %v943, %v944
        %v946 = vadd.f32 %v945, 1e-05
        %v947 = vrsqrt.pop %v946
        %v948 = vld [vmem:[%s3] sm:$0x1]
        %v949 = vmul.f32 %v948, %v947
        %v950 = vld [vmem:[%s4] sm:$0x1]
        %v951 = vmul.f32 %v941, %v949
        %v952 = vsub.f32 %v950, %v951
        %vm953 = vcmask 516096
        %954 = vst.msk [vmem:[#allocation3] sm:$0x1] %vm953, %v952
        %955 = vst.msk [vmem:[#allocation2] sm:$0x1] %vm953, %v949
      $region60: #{discriminator_forward.5} parent=47 // pred_fallthru
        _
      // Predicated region
      $region61: #{discriminator_forward.5} parent=47 // pred_check
        %p956 = pneg %p935
      $region62: #{discriminator_forward.5} parent=47 // pred_check_branch
        %958 = sbr.rel (%p956) target = $region64
      $region63: #{discriminator_forward.5} parent=47 // pred_region
        %v959 = vld [vmem:[#allocation2] sm:$0x1]
        %v961 = vlaneseq
        %v962 = vshrl.u32 %v961, 7
        %v963 = vsub.s32 0, %v962
        %v964 = vrot.slane %v959, %v963
        %v966 = vmul.f32 %v886, %v964
        %v967 = vld [vmem:[#allocation3] sm:$0x1]
        %v969 = vlaneseq
        %v970 = vshrl.u32 %v969, 7
        %v971 = vsub.s32 0, %v970
        %v972 = vrot.slane %v967, %v971
        %v974 = vadd.f32 %v966, %v972
        %vm975 = vcmp.ge.f32.partialorder %v974, 0.0
        %v976 = vmul.f32 %v974, 0.2
        %v977 = vsel %vm975, %v974, %v976
        %v978 = vld [vmem:[%s5] sm:$0x1]
        %v980 = vlaneseq
        %v981 = vshrl.u32 %v980, 7
        %v982 = vsub.s32 0, %v981
        %v983 = vrot.slane %v978, %v982
        %v985 = vmul.f32 %v977, %v983
        %vm986 = vcmask 523264
        %v987 = vsel %vm986, %v985, 0.0
        %988 = vadd.xlane.f32.xlu0 %v987
        %v989 = vpop.xlane.xlu0 %988
        %v990 = vld [vmem:[#allocation4] sm:$0x1]
        %v992 = vlaneseq
        %v993 = vshrl.u32 %v992, 7
        %v994 = vsub.s32 0, %v993
        %v995 = vrot.slane %v990, %v994
        %v997 = vadd.f32 %v989, %v995
        %vm998 = vcmask 7168
        %999 = vst.msk [vmem:[%s290] sm:$0xff] %vm998, %v997
      $region64: #{discriminator_forward.5} parent=47 // pred_fallthru
        _
      %p1000 = scmp.lt.s32.totalorder %s25, 0
      %s1001 = scalar_select %p1000, %s25, 0
      %s1002 = smul.addr %s1001, 8
      %s1003 = scalar_lea.vmem %s7, %s1002
      // Predicated region
      $region65: #{discriminator_forward.5} parent=47 // pred_check
        %p1004 = pneg %p202
      $region66: #{discriminator_forward.5} parent=47 // pred_check_branch
        %1006 = sbr.rel (%p1004) target = $region68
      $region67: #{discriminator_forward.5} parent=47 // pred_region
        _
      $region68: #{discriminator_forward.5} parent=47 // pred_fallthru
        _
      // Predicated region
      $region69: #{discriminator_forward.5} parent=47 // pred_check
        %p1007 = pneg %p202
      $region70: #{discriminator_forward.5} parent=47 // pred_check_branch
        %1009 = sbr.rel (%p1007) target = $region72
      $region71: #{discriminator_forward.5} parent=47 // pred_region
        %p1010 = scmp.lt.s32.totalorder %s25, 0
        %s1011 = scalar_select %p1010, %s25, 0
        %s1012 = smul.addr %s1011, 8
        %s1013 = scalar_lea.vmem %s7, %s1012
      $region72: #{discriminator_forward.5} parent=47 // pred_fallthru
        _
    $region48: #{discriminator_forward.5} parent=5 // pred_fallthru
      _
    %p1014 = scmp.le.s32.totalorder 2, %s15
    // Predicated region
    $region73: #{discriminator_forward.5} parent=5 // pred_check
      %p1015 = pneg %p1014
    $region74: #{discriminator_forward.5} parent=5 // pred_check_branch
      %1017 = sbr.rel (%p1015) target = $region76
    $region75: #{discriminator_forward.5} parent=5 // pred_region
      %s1018 = ssub.s32 %s15, 2
    $region76: #{discriminator_forward.5} parent=5 // pred_fallthru
      _
  $region6: #{discriminator_forward.5} parent=0 // loop_footer
    %s19 = sadd.s32 1, %s15
  $region7: #{discriminator_forward.5} parent=0 // loop_footer_branch
    %14 = sbr.rel target = $region3
  $region8: #{discriminator_forward.5} parent=0 // loop_exit
    _

</llo_original>
